<compile_context>
chip_gen: v7x
topology: tpu7x:2x2x1
jax: 0.10.0
libtpu: 0.0.40
codegen_flags: <defaults>
</compile_context>

<pallas_src>
import jax
import jax.numpy as jnp
import numpy as np
from jax.experimental import pallas as pl
from jax.experimental.pallas import tpu as pltpu

# ----- "opt" hyperparameters (small, consistent with the module) -----
N_CLASSES = 10
ENC_DIM = 16
CHANNELS = 4
HIDDEN = 512
IN_DIM = ENC_DIM + CHANNELS   # enc_dim + prod(img_shape)
K_PAD = 32                    # layer-1 K padded to a clean 32-lane bf16 tile
TILE_B = 512                  # target batch tile (pipelined over the grid)


def _disc_mlp_kernel(din_ref, w1_ref, b1_ref, w2_ref, b2_ref, w3_ref, b3_ref,
                     w4_ref, b4_ref, out_ref):
    """One batch tile of the fused 4-layer MLP with LeakyReLU(0.2)."""
    block_b = din_ref.shape[0]
    # 2-way sub-tile unroll (when the tile is big enough) so each sub-tile's VPU
    # epilogue overlaps the next sub-tile's MXU matmuls.
    n_sub = 2 if (block_b % 256 == 0) else 1
    sb = block_b // n_sub

    b4 = b4_ref[0, 0]                      # scalar bias from SMEM

    def lrelu(h):                          # f32 on the VPU (v5e-safe)
        return jnp.where(h >= 0, h, 0.2 * h)

    nt_dims = (((1,), (1,)), ((), ()))     # contract last dims: A · Bᵀ

    for s in range(n_sub):                 # static unroll
        x = din_ref[pl.ds(s * sb, sb), :]                               # (sb, 32) bf16

        # Layer 1: single fused (padded-K) matmul; padded input columns are zero.
        h = jnp.dot(x, w1_ref[...], preferred_element_type=jnp.float32) + b1_ref[...]
        h = lrelu(h).astype(jnp.bfloat16)

        # Layer 2 (+ Dropout(0.4): identity in eval mode)
        h = jnp.dot(h, w2_ref[...], preferred_element_type=jnp.float32) + b2_ref[...]
        h = lrelu(h).astype(jnp.bfloat16)

        # Layer 3 (+ Dropout(0.4): identity in eval mode)
        h = jnp.dot(h, w3_ref[...], preferred_element_type=jnp.float32) + b3_ref[...]
        h = lrelu(h).astype(jnp.bfloat16)

        # Layer 4: Linear(512, 1). Computed as w4_pad (8,512) · hᵀ -> (8, sb) so the
        # per-row result comes out lane-major; only row 0 is real (rows 1..7 are zero).
        v = jax.lax.dot_general(w4_ref[...], h, nt_dims,
                                preferred_element_type=jnp.float32)     # (8, sb)
        out_ref[:, pl.ds(s * sb, sb)] = v[0:1, :] + b4                  # lane-dense store


def _choose_tiles(b_img):
    """Pick (block_b, n_tiles): big tiles, but always >= 2 tiles for v7x's 2 TCs."""
    if b_img >= 2 * TILE_B:
        block_b = TILE_B
        n_tiles = -(-b_img // block_b)
    else:
        half = -(-b_img // 2)
        block_b = max(16, ((half + 15) // 16) * 16)   # bf16 sublane packing: multiple of 16
        n_tiles = 2
    return block_b, n_tiles


def discriminator_forward(img, labels, params):
    """img: (B_img, channels), labels: (B_lab, enc_dim). Returns (B_img, 1) f32."""
    b_img, channels = img.shape
    b_lab, enc_dim = labels.shape
    assert b_img % b_lab == 0, "labels batch must evenly divide img batch"
    rep = b_img // b_lab

    # labels.unsqueeze(1).expand(-1, rep, -1).reshape(B_img, -1)   (cheap JAX glue)
    labels_rep = jnp.broadcast_to(labels[:, None, :],
                                  (b_lab, rep, enc_dim)).reshape(b_img, enc_dim)

    # Fused bf16 layer-1 input: [img | labels | zero-pad] -> (B, 32)
    d_in = jnp.concatenate([img, labels_rep], axis=-1).astype(jnp.bfloat16)

    block_b, n_tiles = _choose_tiles(b_img)
    b_pad = block_b * n_tiles
    d_in = jnp.pad(d_in, ((0, b_pad - b_img), (0, K_PAD - (channels + enc_dim))))

    const = lambda i: (0, 0)   # weights/biases: same block every step -> VMEM-resident

    # Advisory cost hint for XLA scheduling when embedded in a larger graph.
    flops = 2 * b_pad * HIDDEN * (K_PAD + 2 * HIDDEN + 8)
    bytes_accessed = (b_pad * K_PAD * 2 + b_pad * 4
                      + (K_PAD + 2 * HIDDEN + 8) * HIDDEN * 2 + 3 * HIDDEN * 4 + 4)

    out = pl.pallas_call(
        _disc_mlp_kernel,
        out_shape=jax.ShapeDtypeStruct((n_tiles, 1, block_b), jnp.float32),
        grid=(n_tiles,),
        in_specs=[
            pl.BlockSpec((block_b, K_PAD), lambda i: (i, 0)),      # d_in tile (bf16)
            pl.BlockSpec((K_PAD, HIDDEN), const),                  # w1 padded (bf16)
            pl.BlockSpec((1, HIDDEN), const),                      # b1 (f32)
            pl.BlockSpec((HIDDEN, HIDDEN), const),                 # w2 (bf16)
            pl.BlockSpec((1, HIDDEN), const),                      # b2 (f32)
            pl.BlockSpec((HIDDEN, HIDDEN), const),                 # w3 (bf16)
            pl.BlockSpec((1, HIDDEN), const),                      # b3 (f32)
            pl.BlockSpec((8, HIDDEN), const),                      # w4 padded rows (bf16)
            pl.BlockSpec(memory_space=pltpu.MemorySpace.SMEM),     # b4 scalar (1,1) f32
        ],
        out_specs=pl.BlockSpec((None, 1, block_b), lambda i: (i, 0, 0)),
        compiler_params=pltpu.CompilerParams(
            dimension_semantics=("parallel",),   # shards batch tiles across TCs on v7x
        ),
        cost_estimate=pl.CostEstimate(flops=flops, transcendentals=0,
                                      bytes_accessed=bytes_accessed),
    )(d_in, params["w1p"], params["b1"], params["w2"], params["b2"],
      params["w3"], params["b3"], params["w4p"], params["b4"])

    return out.reshape(b_pad, 1)[:b_img]


def init_params(key):
    """Deterministic synthetic weights (Linear layers of the PyTorch module)."""
    ks = jax.random.split(key, 8)

    def linear(kw, kb, fan_in, fan_out):
        bound = 1.0 / np.sqrt(fan_in)
        w = jax.random.uniform(kw, (fan_in, fan_out), jnp.float32, -bound, bound)
        b = jax.random.uniform(kb, (1, fan_out), jnp.float32, -bound, bound)
        return w, b

    w1, b1 = linear(ks[0], ks[1], IN_DIM, HIDDEN)
    w2, b2 = linear(ks[2], ks[3], HIDDEN, HIDDEN)
    w3, b3 = linear(ks[4], ks[5], HIDDEN, HIDDEN)
    w4, b4 = linear(ks[6], ks[7], HIDDEN, 1)

    # w1 zero-padded along K to 32 (matches the zero-padded input columns).
    w1p = jnp.zeros((K_PAD, HIDDEN), jnp.float32).at[:IN_DIM].set(w1).astype(jnp.bfloat16)
    # w4 as 8 padded rows (row 0 real, rows 1..7 zero) for a clean (8,512) MXU operand.
    w4p = jnp.zeros((8, HIDDEN), jnp.float32).at[0].set(w4[:, 0]).astype(jnp.bfloat16)

    return dict(
        w1p=w1p, b1=b1,
        w2=w2.astype(jnp.bfloat16), b2=b2,
        w3=w3.astype(jnp.bfloat16), b3=b3,
        w4p=w4p, b4=b4.reshape(1, 1),
    )


def reference_forward(img, labels, params):
    """Pure-JAX reference with the same bf16-weights / f32-accumulation math."""
    b_img = img.shape[0]
    b_lab, enc_dim = labels.shape
    rep = b_img // b_lab
    lab = jnp.broadcast_to(labels[:, None, :],
                           (b_lab, rep, enc_dim)).reshape(b_img, enc_dim)
    d_in = jnp.concatenate([img, lab], axis=-1).astype(jnp.bfloat16)

    def lrelu(x):
        return jnp.where(x >= 0, x, 0.2 * x)

    h = jnp.dot(d_in, params["w1p"][:IN_DIM],
                preferred_element_type=jnp.float32) + params["b1"]
    h = lrelu(h).astype(jnp.bfloat16)
    h = jnp.dot(h, params["w2"], preferred_element_type=jnp.float32) + params["b2"]
    h = lrelu(h).astype(jnp.bfloat16)
    h = jnp.dot(h, params["w3"], preferred_element_type=jnp.float32) + params["b3"]
    h = lrelu(h).astype(jnp.bfloat16)
    w4col = params["w4p"][0:1].T                      # (512, 1) bf16
    return jnp.dot(h, w4col, preferred_element_type=jnp.float32) + params["b4"]


if __name__ == "__main__":
    key = jax.random.PRNGKey(0)
    k_img, k_lab, k_par = jax.random.split(key, 3)

    B_IMG = 256   # img batch (2 tiles -> both v7x TensorCores busy)
    B_LAB = 64    # label batch (expansion factor 4)

    img = jax.random.normal(k_img, (B_IMG, CHANNELS), jnp.float32)
    labels = jax.random.normal(k_lab, (B_LAB, ENC_DIM), jnp.float32)
    params = init_params(k_par)

    validity = jax.block_until_ready(discriminator_forward(img, labels, params))

    ref = reference_forward(img, labels, params)
    assert validity.shape == (B_IMG, 1)
    np.testing.assert_allclose(np.asarray(validity), np.asarray(ref),
                               rtol=2e-2, atol=2e-2)
    print("KERNEL_OK")
</pallas_src>

<mosaic_0001>
module attributes {stable_mosaic.version = 11 : i64} {
  func.func @_disc_mlp_kernel(%arg0: i32, %arg1: memref<128x32xbf16, #tpu.memory_space<vmem>>, %arg2: memref<32x512xbf16, #tpu.memory_space<vmem>>, %arg3: memref<1x512xf32, #tpu.memory_space<vmem>>, %arg4: memref<512x512xbf16, #tpu.memory_space<vmem>>, %arg5: memref<1x512xf32, #tpu.memory_space<vmem>>, %arg6: memref<512x512xbf16, #tpu.memory_space<vmem>>, %arg7: memref<1x512xf32, #tpu.memory_space<vmem>>, %arg8: memref<8x512xbf16, #tpu.memory_space<vmem>>, %arg9: memref<1x1xf32, #tpu.memory_space<smem>>, %arg10: memref<1x1x128xf32, #tpu.memory_space<vmem>>) attributes {dimension_semantics = [#tpu.dimension_semantics<parallel>], iteration_bounds = array<i64: 2>, scalar_prefetch = 0 : i64, scratch_operands = 0 : i64, tpu.core_type = #tpu.core_type<tc>, window_params = [{transform_indices = @transform_0, window_bounds = array<i64: 128, 32>}, {pipeline_mode = #tpu.pipeline_mode<synchronous>, transform_indices = @transform_1, window_bounds = array<i64: 32, 512>}, {pipeline_mode = #tpu.pipeline_mode<synchronous>, transform_indices = @transform_2, window_bounds = array<i64: 1, 512>}, {pipeline_mode = #tpu.pipeline_mode<synchronous>, transform_indices = @transform_3, window_bounds = array<i64: 512, 512>}, {pipeline_mode = #tpu.pipeline_mode<synchronous>, transform_indices = @transform_4, window_bounds = array<i64: 1, 512>}, {pipeline_mode = #tpu.pipeline_mode<synchronous>, transform_indices = @transform_5, window_bounds = array<i64: 512, 512>}, {pipeline_mode = #tpu.pipeline_mode<synchronous>, transform_indices = @transform_6, window_bounds = array<i64: 1, 512>}, {pipeline_mode = #tpu.pipeline_mode<synchronous>, transform_indices = @transform_7, window_bounds = array<i64: 8, 512>}, {transform_indices = @transform_8, window_bounds = array<i64: 1, 1>}, {transform_indices = @transform_9, window_bounds = array<i64: 1, 1, 128>}]} {
    %c0 = arith.constant 0 : index
    %c0_0 = arith.constant 0 : index
    %0 = memref.load %arg9[%c0, %c0_0] : memref<1x1xf32, #tpu.memory_space<smem>>
    %c0_1 = arith.constant 0 : index
    %c0_2 = arith.constant 0 : index
    %1 = vector.load %arg1[%c0_1, %c0_2] : memref<128x32xbf16, #tpu.memory_space<vmem>>, vector<128x32xbf16>
    %c0_3 = arith.constant 0 : index
    %c0_4 = arith.constant 0 : index
    %2 = vector.load %arg2[%c0_3, %c0_4] : memref<32x512xbf16, #tpu.memory_space<vmem>>, vector<32x512xbf16>
    %cst = arith.constant dense<0.000000e+00> : vector<128x512xf32>
    %3 = tpu.matmul %1, %2, %cst {dimension_numbers = #tpu.dot_dimension_numbers<[1], [0], [0], [1], [0, 0, 1, 1], [], []>} : vector<128x32xbf16>, vector<32x512xbf16>, vector<128x512xf32> -> vector<128x512xf32>
    %c0_5 = arith.constant 0 : index
    %c0_6 = arith.constant 0 : index
    %4 = vector.load %arg3[%c0_5, %c0_6] : memref<1x512xf32, #tpu.memory_space<vmem>>, vector<1x512xf32>
    %5 = vector.broadcast %4 : vector<1x512xf32> to vector<128x512xf32>
    %6 = arith.addf %3, %5 : vector<128x512xf32>
    %cst_7 = arith.constant 0.000000e+00 : f32
    %7 = vector.broadcast %cst_7 : f32 to vector<128x512xf32>
    %8 = arith.cmpf oge, %6, %7 : vector<128x512xf32>
    %cst_8 = arith.constant 2.000000e-01 : f32
    %9 = vector.broadcast %cst_8 : f32 to vector<128x512xf32>
    %10 = arith.mulf %9, %6 : vector<128x512xf32>
    %11 = arith.select %8, %6, %10 : vector<128x512xi1>, vector<128x512xf32>
    %12 = arith.truncf %11 : vector<128x512xf32> to vector<128x512xbf16>
    %c0_9 = arith.constant 0 : index
    %c0_10 = arith.constant 0 : index
    %13 = vector.load %arg4[%c0_9, %c0_10] : memref<512x512xbf16, #tpu.memory_space<vmem>>, vector<512x512xbf16>
    %cst_11 = arith.constant dense<0.000000e+00> : vector<128x512xf32>
    %14 = tpu.matmul %12, %13, %cst_11 {dimension_numbers = #tpu.dot_dimension_numbers<[1], [0], [0], [1], [0, 0, 1, 1], [], []>} : vector<128x512xbf16>, vector<512x512xbf16>, vector<128x512xf32> -> vector<128x512xf32>
    %c0_12 = arith.constant 0 : index
    %c0_13 = arith.constant 0 : index
    %15 = vector.load %arg5[%c0_12, %c0_13] : memref<1x512xf32, #tpu.memory_space<vmem>>, vector<1x512xf32>
    %16 = vector.broadcast %15 : vector<1x512xf32> to vector<128x512xf32>
    %17 = arith.addf %14, %16 : vector<128x512xf32>
    %cst_14 = arith.constant 0.000000e+00 : f32
    %18 = vector.broadcast %cst_14 : f32 to vector<128x512xf32>
    %19 = arith.cmpf oge, %17, %18 : vector<128x512xf32>
    %cst_15 = arith.constant 2.000000e-01 : f32
    %20 = vector.broadcast %cst_15 : f32 to vector<128x512xf32>
    %21 = arith.mulf %20, %17 : vector<128x512xf32>
    %22 = arith.select %19, %17, %21 : vector<128x512xi1>, vector<128x512xf32>
    %23 = arith.truncf %22 : vector<128x512xf32> to vector<128x512xbf16>
    %c0_16 = arith.constant 0 : index
    %c0_17 = arith.constant 0 : index
    %24 = vector.load %arg6[%c0_16, %c0_17] : memref<512x512xbf16, #tpu.memory_space<vmem>>, vector<512x512xbf16>
    %cst_18 = arith.constant dense<0.000000e+00> : vector<128x512xf32>
    %25 = tpu.matmul %23, %24, %cst_18 {dimension_numbers = #tpu.dot_dimension_numbers<[1], [0], [0], [1], [0, 0, 1, 1], [], []>} : vector<128x512xbf16>, vector<512x512xbf16>, vector<128x512xf32> -> vector<128x512xf32>
    %c0_19 = arith.constant 0 : index
    %c0_20 = arith.constant 0 : index
    %26 = vector.load %arg7[%c0_19, %c0_20] : memref<1x512xf32, #tpu.memory_space<vmem>>, vector<1x512xf32>
    %27 = vector.broadcast %26 : vector<1x512xf32> to vector<128x512xf32>
    %28 = arith.addf %25, %27 : vector<128x512xf32>
    %cst_21 = arith.constant 0.000000e+00 : f32
    %29 = vector.broadcast %cst_21 : f32 to vector<128x512xf32>
    %30 = arith.cmpf oge, %28, %29 : vector<128x512xf32>
    %cst_22 = arith.constant 2.000000e-01 : f32
    %31 = vector.broadcast %cst_22 : f32 to vector<128x512xf32>
    %32 = arith.mulf %31, %28 : vector<128x512xf32>
    %33 = arith.select %30, %28, %32 : vector<128x512xi1>, vector<128x512xf32>
    %34 = arith.truncf %33 : vector<128x512xf32> to vector<128x512xbf16>
    %c0_23 = arith.constant 0 : index
    %c0_24 = arith.constant 0 : index
    %35 = vector.load %arg8[%c0_23, %c0_24] : memref<8x512xbf16, #tpu.memory_space<vmem>>, vector<8x512xbf16>
    %cst_25 = arith.constant dense<0.000000e+00> : vector<8x128xf32>
    %36 = tpu.matmul %35, %34, %cst_25 {dimension_numbers = #tpu.dot_dimension_numbers<[1], [1], [0], [0], [0, 0, 1, 0], [], []>} : vector<8x512xbf16>, vector<128x512xbf16>, vector<8x128xf32> -> vector<8x128xf32>
    %37 = vector.extract_strided_slice %36 {offsets = [0, 0], sizes = [1, 128], strides = [1, 1]} : vector<8x128xf32> to vector<1x128xf32>
    %38 = vector.broadcast %0 : f32 to vector<1x128xf32>
    %39 = arith.addf %37, %38 : vector<1x128xf32>
    %c0_26 = arith.constant 0 : index
    %c0_27 = arith.constant 0 : index
    %c0_28 = arith.constant 0 : index
    %40 = vector.load %arg10[%c0_26, %c0_27, %c0_28] : memref<1x1x128xf32, #tpu.memory_space<vmem>>, vector<1x1x128xf32>
    %41 = vector.shape_cast %40 : vector<1x1x128xf32> to vector<1x128xf32>
    %42 = vector.shape_cast %39 : vector<1x128xf32> to vector<1x1x128xf32>
    tpu.vector_store %arg10[%c0_26, %c0_27, %c0_28], %42 {strides = array<i32>} : memref<1x1x128xf32, #tpu.memory_space<vmem>>, vector<1x1x128xf32>,
    return
  }
  func.func @transform_0(%arg0: i32) -> (i32, i32) {
    %c0_i32 = arith.constant 0 : i32
    %c0_i32_0 = arith.constant 0 : i32
    return %arg0, %c0_i32 : i32, i32
  }
  func.func @transform_1(%arg0: i32) -> (i32, i32) {
    %c0_i32 = arith.constant 0 : i32
    %c0_i32_0 = arith.constant 0 : i32
    %c0_i32_1 = arith.constant 0 : i32
    return %c0_i32, %c0_i32_0 : i32, i32
  }
  func.func @transform_2(%arg0: i32) -> (i32, i32) {
    %c0_i32 = arith.constant 0 : i32
    %c0_i32_0 = arith.constant 0 : i32
    %c0_i32_1 = arith.constant 0 : i32
    return %c0_i32, %c0_i32_0 : i32, i32
  }
  func.func @transform_3(%arg0: i32) -> (i32, i32) {
    %c0_i32 = arith.constant 0 : i32
    %c0_i32_0 = arith.constant 0 : i32
    %c0_i32_1 = arith.constant 0 : i32
    return %c0_i32, %c0_i32_0 : i32, i32
  }
  func.func @transform_4(%arg0: i32) -> (i32, i32) {
    %c0_i32 = arith.constant 0 : i32
    %c0_i32_0 = arith.constant 0 : i32
    %c0_i32_1 = arith.constant 0 : i32
    return %c0_i32, %c0_i32_0 : i32, i32
  }
  func.func @transform_5(%arg0: i32) -> (i32, i32) {
    %c0_i32 = arith.constant 0 : i32
    %c0_i32_0 = arith.constant 0 : i32
    %c0_i32_1 = arith.constant 0 : i32
    return %c0_i32, %c0_i32_0 : i32, i32
  }
  func.func @transform_6(%arg0: i32) -> (i32, i32) {
    %c0_i32 = arith.constant 0 : i32
    %c0_i32_0 = arith.constant 0 : i32
    %c0_i32_1 = arith.constant 0 : i32
    return %c0_i32, %c0_i32_0 : i32, i32
  }
  func.func @transform_7(%arg0: i32) -> (i32, i32) {
    %c0_i32 = arith.constant 0 : i32
    %c0_i32_0 = arith.constant 0 : i32
    %c0_i32_1 = arith.constant 0 : i32
    return %c0_i32, %c0_i32_0 : i32, i32
  }
  func.func @transform_8(%arg0: i32) -> (i32, i32) {
    %c0_i32 = arith.constant 0 : i32
    %c0_i32_0 = arith.constant 0 : i32
    %c0_i32_1 = arith.constant 0 : i32
    return %c0_i32, %c0_i32_0 : i32, i32
  }
  func.func @transform_9(%arg0: i32) -> (i32, i32, i32) {
    %c0_i32 = arith.constant 0 : i32
    %c0_i32_0 = arith.constant 0 : i32
    %c0_i32_1 = arith.constant 0 : i32
    return %arg0, %c0_i32, %c0_i32_0 : i32, i32, i32
  }
}

</mosaic_0001>

<llo_original>
// kernel: tpu_custom_call.1
$region0: #{tpu_custom_call.1}
  #allocation0 [shape = 'u32[]', space=smem, size = 0x4, offset = 0x4, fixed_abs, tag = 'smem constant byte address 0x4 - core index']
  #allocation1 [shape = 'u32[144,128]{1,0:T(1,128)}', space=vmem, size = 0x12000, scoped, tag = 'internal scratch']
  #allocation2 [shape = 'f32[1,1]{1,0:T(1,128)S(6)}', space=smem, size = 0x200, scoped, tag = 'scoped memory for tpu_custom_call.1']
  %s0 = inlined_call_operand.vmem [shape: bf16[256,32], index: 0, kind: input, shape index: {}]
  %s1 = inlined_call_operand.vmem [shape: bf16[32,512], index: 1, kind: input, shape index: {}]
  %s2 = inlined_call_operand.vmem [shape: f32[1,512], index: 2, kind: input, shape index: {}]
  %s3 = inlined_call_operand.hbm [shape: bf16[512,512], index: 3, kind: input, shape index: {}]
  %s4 = inlined_call_operand.vmem [shape: f32[1,512], index: 4, kind: input, shape index: {}]
  %s5 = inlined_call_operand.hbm [shape: bf16[512,512], index: 5, kind: input, shape index: {}]
  %s6 = inlined_call_operand.vmem [shape: f32[1,512], index: 6, kind: input, shape index: {}]
  %s7 = inlined_call_operand.vmem [shape: bf16[8,512], index: 7, kind: input, shape index: {}]
  %s8 = inlined_call_operand.<no memory space> [shape: f32[1,1], index: 8, kind: input, shape index: {}]
  %s9 = inlined_call_operand.hbm [shape: f32[2,1,128], index: 9, kind: output, shape index: {}]
  %s10 = sld [smem:[#allocation0]]
  $region77: #{tpu_custom_call.1} parent=0
    _
  %s12 = ssub.s32 1, %s10
  %s13 = scalar_select 0, %s12, %s10
  %14 = sst [smem:[#allocation2]] %s8
  $region1: #{tpu_custom_call.1} parent=0
    #allocation3 [shape = 'u8[524288]{0}', space=vmem, size = 0x80000, scoped, tag = 'input window, operand 3, single buffered']
    #allocation4 [shape = 's32[2]{0}', space=sflag, size = 0x8, scoped, tag = 'scoped memory for tpu_custom_call.1']
    #allocation5 [shape = 's32[2]{0}', space=sflag, size = 0x8, scoped, tag = 'scoped memory for tpu_custom_call.1']
    #allocation6 [shape = 'u8[524288]{0}', space=vmem, size = 0x80000, scoped, tag = 'input window, operand 5, single buffered']
    #allocation7 [shape = 's32[1]{0}', space=sflag, size = 0x4, scoped, tag = 'scoped memory for tpu_custom_call.1']
    #allocation8 [shape = 'u8[1024]{0}', space=vmem, size = 0x400, scoped, tag = 'output window, operand 0']
    %15 = vsyncpa [#allocation4], 0
    %16 = vsyncpa [#allocation7], 0
    %17 = vsyncpa [#allocation5], 0
    %s18 = scalar_lea.sflag [#allocation5], 1
    %19 = vsyncpa %s18, 0
    loop: start=0, step=1, limit=4
    $region2: #{tpu_custom_call.1} parent=1 // loop_pre_header
      _
    $region3: #{tpu_custom_call.1} parent=1 // loop_header
      %s21 = sphi 0, %s25
      %p22 = scmp.ge.s32.totalorder %s21, 4
      %s31 = sphi 0, %s33
      %s34 = sphi 0, %s31
      %s35 = sphi 0, %s34
      %s51 = sphi 0, %s35
      %s55 = sphi 0, %s55
      %s57 = sphi 0, %s55
      %s58 = sphi 0, %s57
      %s72 = sphi 0, %s58
      %s76 = sphi 0, %s76
      %s78 = sphi 0, %s76
      %s79 = sphi 0, %s78
      %s93 = sphi 0, %s79
      %s97 = sphi 0, %s97
      %s99 = sphi 0, %s97
      %s100 = sphi 0, %s99
      %s114 = sphi 0, %s100
      %s118 = sphi 0, %s118
      %s120 = sphi 0, %s118
      %s121 = sphi 0, %s120
      %s135 = sphi 0, %s121
      %s139 = sphi 0, %s139
      %s141 = sphi 0, %s139
      %s142 = sphi 0, %s141
      %s156 = sphi 0, %s142
      %s160 = sphi 0, %s160
      %s162 = sphi 0, %s160
      %s163 = sphi 0, %s162
      %s177 = sphi 0, %s163
      %s181 = sphi 0, %s181
      %s183 = sphi 0, %s181
      %s184 = sphi 0, %s183
      %s198 = sphi 0, %s184
      %s202 = sphi 0, %s202
      %s204 = sphi 0, %s202
      %s205 = sphi 0, %s204
      %s219 = sphi 0, %s205
      %s225 = sphi 0, %s227
      %s228 = sphi 0, %s225
      %s229 = sphi 0, %s228
      %s245 = sphi 0, %s229
    $region4: #{tpu_custom_call.1} parent=1 // loop_header_branch
      %24 = sbr.rel (%p22) target = $region8
    $region5: #{tpu_custom_call.1} parent=1 // loop_body
      %s26 = ssub.s32 %s21, 1
      %s27 = ssub.s32 %s21, 2
      %s28 = sadd.s32 %s21, 1
      %s29 = ssub.s32 %s21, %s28
      %p30 = scmp.eq.s32.totalorder %s29, 0
      %s32 = sadd.s32 %s31, 1
      %s33 = scalar_select %p30, %s31, %s32
      %p36 = pneg %p30
      %p37 = scmp.eq.s32.totalorder %s21, 1
      %p38 = por %p36, %p37
      %p39 = scmp.ne.s32.totalorder %s31, %s34
      %p40 = scmp.eq.s32.totalorder %s21, 0
      %p41 = por %p39, %p40
      %p42 = scmp.ne.s32.totalorder %s31, %s34
      %p43 = scmp.eq.s32.totalorder %s26, 1
      %p44 = por %p42, %p43
      %p45 = scmp.ne.s32.totalorder %s34, %s35
      %p46 = scmp.eq.s32.totalorder %s26, 0
      %p47 = por %p45, %p46
      %p48 = scmp.ne.s32.totalorder %s34, %s35
      %p49 = scmp.eq.s32.totalorder %s27, 1
      %p50 = por %p48, %p49
      %p52 = scmp.ne.s32.totalorder %s35, %s51
      %p53 = scmp.eq.s32.totalorder %s27, 0
      %p54 = por %p52, %p53
      %s56 = sadd.s32 %s55, 1
      %p59 = scmp.eq.s32.totalorder %s21, 1
      %p60 = scmp.ne.s32.totalorder %s55, %s57
      %p61 = scmp.eq.s32.totalorder %s21, 0
      %p62 = por %p60, %p61
      %p63 = scmp.ne.s32.totalorder %s55, %s57
      %p64 = scmp.eq.s32.totalorder %s26, 1
      %p65 = por %p63, %p64
      %p66 = scmp.ne.s32.totalorder %s57, %s58
      %p67 = scmp.eq.s32.totalorder %s26, 0
      %p68 = por %p66, %p67
      %p69 = scmp.ne.s32.totalorder %s57, %s58
      %p70 = scmp.eq.s32.totalorder %s27, 1
      %p71 = por %p69, %p70
      %p73 = scmp.ne.s32.totalorder %s58, %s72
      %p74 = scmp.eq.s32.totalorder %s27, 0
      %p75 = por %p73, %p74
      %s77 = sadd.s32 %s76, 1
      %p80 = scmp.eq.s32.totalorder %s21, 1
      %p81 = scmp.ne.s32.totalorder %s76, %s78
      %p82 = scmp.eq.s32.totalorder %s21, 0
      %p83 = por %p81, %p82
      %p84 = scmp.ne.s32.totalorder %s76, %s78
      %p85 = scmp.eq.s32.totalorder %s26, 1
      %p86 = por %p84, %p85
      %p87 = scmp.ne.s32.totalorder %s78, %s79
      %p88 = scmp.eq.s32.totalorder %s26, 0
      %p89 = por %p87, %p88
      %p90 = scmp.ne.s32.totalorder %s78, %s79
      %p91 = scmp.eq.s32.totalorder %s27, 1
      %p92 = por %p90, %p91
      %p94 = scmp.ne.s32.totalorder %s79, %s93
      %p95 = scmp.eq.s32.totalorder %s27, 0
      %p96 = por %p94, %p95
      %s98 = sadd.s32 %s97, 1
      %p101 = scmp.eq.s32.totalorder %s21, 1
      %p102 = scmp.ne.s32.totalorder %s97, %s99
      %p103 = scmp.eq.s32.totalorder %s21, 0
      %p104 = por %p102, %p103
      %p105 = scmp.ne.s32.totalorder %s97, %s99
      %p106 = scmp.eq.s32.totalorder %s26, 1
      %p107 = por %p105, %p106
      %p108 = scmp.ne.s32.totalorder %s99, %s100
      %p109 = scmp.eq.s32.totalorder %s26, 0
      %p110 = por %p108, %p109
      %p111 = scmp.ne.s32.totalorder %s99, %s100
      %p112 = scmp.eq.s32.totalorder %s27, 1
      %p113 = por %p111, %p112
      %p115 = scmp.ne.s32.totalorder %s100, %s114
      %p116 = scmp.eq.s32.totalorder %s27, 0
      %p117 = por %p115, %p116
      %s119 = sadd.s32 %s118, 1
      %p122 = scmp.eq.s32.totalorder %s21, 1
      %p123 = scmp.ne.s32.totalorder %s118, %s120
      %p124 = scmp.eq.s32.totalorder %s21, 0
      %p125 = por %p123, %p124
      %p126 = scmp.ne.s32.totalorder %s118, %s120
      %p127 = scmp.eq.s32.totalorder %s26, 1
      %p128 = por %p126, %p127
      %p129 = scmp.ne.s32.totalorder %s120, %s121
      %p130 = scmp.eq.s32.totalorder %s26, 0
      %p131 = por %p129, %p130
      %p132 = scmp.ne.s32.totalorder %s120, %s121
      %p133 = scmp.eq.s32.totalorder %s27, 1
      %p134 = por %p132, %p133
      %p136 = scmp.ne.s32.totalorder %s121, %s135
      %p137 = scmp.eq.s32.totalorder %s27, 0
      %p138 = por %p136, %p137
      %s140 = sadd.s32 %s139, 1
      %p143 = scmp.eq.s32.totalorder %s21, 1
      %p144 = scmp.ne.s32.totalorder %s139, %s141
      %p145 = scmp.eq.s32.totalorder %s21, 0
      %p146 = por %p144, %p145
      %p147 = scmp.ne.s32.totalorder %s139, %s141
      %p148 = scmp.eq.s32.totalorder %s26, 1
      %p149 = por %p147, %p148
      %p150 = scmp.ne.s32.totalorder %s141, %s142
      %p151 = scmp.eq.s32.totalorder %s26, 0
      %p152 = por %p150, %p151
      %p153 = scmp.ne.s32.totalorder %s141, %s142
      %p154 = scmp.eq.s32.totalorder %s27, 1
      %p155 = por %p153, %p154
      %p157 = scmp.ne.s32.totalorder %s142, %s156
      %p158 = scmp.eq.s32.totalorder %s27, 0
      %p159 = por %p157, %p158
      %s161 = sadd.s32 %s160, 1
      %p164 = scmp.eq.s32.totalorder %s21, 1
      %p165 = scmp.ne.s32.totalorder %s160, %s162
      %p166 = scmp.eq.s32.totalorder %s21, 0
      %p167 = por %p165, %p166
      %p168 = scmp.ne.s32.totalorder %s160, %s162
      %p169 = scmp.eq.s32.totalorder %s26, 1
      %p170 = por %p168, %p169
      %p171 = scmp.ne.s32.totalorder %s162, %s163
      %p172 = scmp.eq.s32.totalorder %s26, 0
      %p173 = por %p171, %p172
      %p174 = scmp.ne.s32.totalorder %s162, %s163
      %p175 = scmp.eq.s32.totalorder %s27, 1
      %p176 = por %p174, %p175
      %p178 = scmp.ne.s32.totalorder %s163, %s177
      %p179 = scmp.eq.s32.totalorder %s27, 0
      %p180 = por %p178, %p179
      %s182 = sadd.s32 %s181, 1
      %p185 = scmp.eq.s32.totalorder %s21, 1
      %p186 = scmp.ne.s32.totalorder %s181, %s183
      %p187 = scmp.eq.s32.totalorder %s21, 0
      %p188 = por %p186, %p187
      %p189 = scmp.ne.s32.totalorder %s181, %s183
      %p190 = scmp.eq.s32.totalorder %s26, 1
      %p191 = por %p189, %p190
      %p192 = scmp.ne.s32.totalorder %s183, %s184
      %p193 = scmp.eq.s32.totalorder %s26, 0
      %p194 = por %p192, %p193
      %p195 = scmp.ne.s32.totalorder %s183, %s184
      %p196 = scmp.eq.s32.totalorder %s27, 1
      %p197 = por %p195, %p196
      %p199 = scmp.ne.s32.totalorder %s184, %s198
      %p200 = scmp.eq.s32.totalorder %s27, 0
      %p201 = por %p199, %p200
      %s203 = sadd.s32 %s202, 1
      %p206 = scmp.eq.s32.totalorder %s21, 1
      %p207 = scmp.ne.s32.totalorder %s202, %s204
      %p208 = scmp.eq.s32.totalorder %s21, 0
      %p209 = por %p207, %p208
      %p210 = scmp.ne.s32.totalorder %s202, %s204
      %p211 = scmp.eq.s32.totalorder %s26, 1
      %p212 = por %p210, %p211
      %p213 = scmp.ne.s32.totalorder %s204, %s205
      %p214 = scmp.eq.s32.totalorder %s26, 0
      %p215 = por %p213, %p214
      %p216 = scmp.ne.s32.totalorder %s204, %s205
      %p217 = scmp.eq.s32.totalorder %s27, 1
      %p218 = por %p216, %p217
      %p220 = scmp.ne.s32.totalorder %s205, %s219
      %p221 = scmp.eq.s32.totalorder %s27, 0
      %p222 = por %p220, %p221
      %s223 = ssub.s32 %s21, %s28
      %p224 = scmp.eq.s32.totalorder %s223, 0
      %s226 = sadd.s32 %s225, 1
      %s227 = scalar_select %p224, %s225, %s226
      %p230 = pneg %p224
      %p231 = scmp.eq.s32.totalorder %s21, 1
      %p232 = por %p230, %p231
      %p233 = scmp.ne.s32.totalorder %s225, %s228
      %p234 = scmp.eq.s32.totalorder %s21, 0
      %p235 = por %p233, %p234
      %p236 = scmp.ne.s32.totalorder %s225, %s228
      %p237 = scmp.eq.s32.totalorder %s26, 1
      %p238 = por %p236, %p237
      %p239 = scmp.ne.s32.totalorder %s228, %s229
      %p240 = scmp.eq.s32.totalorder %s26, 0
      %p241 = por %p239, %p240
      %p242 = scmp.ne.s32.totalorder %s228, %s229
      %p243 = scmp.eq.s32.totalorder %s27, 1
      %p244 = por %p242, %p243
      %p246 = scmp.ne.s32.totalorder %s229, %s245
      %p247 = scmp.eq.s32.totalorder %s27, 0
      %p248 = por %p246, %p247
      %p249 = scmp.le.s32.totalorder 1, %s21
      %p250 = scmp.lt.s32.totalorder %s21, 3
      %p251 = pnand %p249, %p250
      %p252 = pneg %p251
      // Predicated region
      $region9: #{tpu_custom_call.1} parent=5 // pred_check
        _
      $region10: #{tpu_custom_call.1} parent=5 // pred_check_branch
        %254 = sbr.rel (%p251) target = $region12
      $region11: #{tpu_custom_call.1} parent=5 // pred_region
        %s255 = ssub.s32 %s21, 1
        // Predicated region
        $region13: #{tpu_custom_call.1} parent=11 // pred_check
          %p256 = pneg %p68
        $region14: #{tpu_custom_call.1} parent=11 // pred_check_branch
          %258 = sbr.rel (%p256) target = $region16
        $region15: #{tpu_custom_call.1} parent=11 // pred_region
          _
        $region16: #{tpu_custom_call.1} parent=11 // pred_fallthru
          _
        // Predicated region
        $region17: #{tpu_custom_call.1} parent=11 // pred_check
          %p259 = pneg %p89
        $region18: #{tpu_custom_call.1} parent=11 // pred_check_branch
          %261 = sbr.rel (%p259) target = $region20
        $region19: #{tpu_custom_call.1} parent=11 // pred_region
          _
        $region20: #{tpu_custom_call.1} parent=11 // pred_fallthru
          _
        // Predicated region
        $region21: #{tpu_custom_call.1} parent=11 // pred_check
          %p262 = pneg %p110
        $region22: #{tpu_custom_call.1} parent=11 // pred_check_branch
          %264 = sbr.rel (%p262) target = $region24
        $region23: #{tpu_custom_call.1} parent=11 // pred_region
          %s266 = ssub.s32 16384, 16384
          %267 = vsyncadd [#allocation4], %s266
          %s268 = sshll.u32 [#allocation3], 4
          %s269 = int_to_ptr.vmem [resolvable:$true] %s268
          %274 = dma.hbm_to_vmem [thread:$0]  %s3, 16384, %s269, [#allocation4], 256, 256, 16
        $region24: #{tpu_custom_call.1} parent=11 // pred_fallthru
          _
        // Predicated region
        $region25: #{tpu_custom_call.1} parent=11 // pred_check
          %p275 = pneg %p131
        $region26: #{tpu_custom_call.1} parent=11 // pred_check_branch
          %277 = sbr.rel (%p275) target = $region28
        $region27: #{tpu_custom_call.1} parent=11 // pred_region
          _
        $region28: #{tpu_custom_call.1} parent=11 // pred_fallthru
          _
        // Predicated region
        $region29: #{tpu_custom_call.1} parent=11 // pred_check
          %p278 = pneg %p152
        $region30: #{tpu_custom_call.1} parent=11 // pred_check_branch
          %280 = sbr.rel (%p278) target = $region32
        $region31: #{tpu_custom_call.1} parent=11 // pred_region
          %s282 = ssub.s32 16384, 16384
          %283 = vsyncadd [#allocation7], %s282
          %s284 = sshll.u32 [#allocation6], 4
          %s285 = int_to_ptr.vmem [resolvable:$true] %s284
          %290 = dma.hbm_to_vmem [thread:$0]  %s5, 16384, %s285, [#allocation7], 256, 256, 16
        $region32: #{tpu_custom_call.1} parent=11 // pred_fallthru
          _
        // Predicated region
        $region33: #{tpu_custom_call.1} parent=11 // pred_check
          %p291 = pneg %p173
        $region34: #{tpu_custom_call.1} parent=11 // pred_check_branch
          %293 = sbr.rel (%p291) target = $region36
        $region35: #{tpu_custom_call.1} parent=11 // pred_region
          _
        $region36: #{tpu_custom_call.1} parent=11 // pred_fallthru
          _
        // Predicated region
        $region37: #{tpu_custom_call.1} parent=11 // pred_check
          %p294 = pneg %p194
        $region38: #{tpu_custom_call.1} parent=11 // pred_check_branch
          %296 = sbr.rel (%p294) target = $region40
        $region39: #{tpu_custom_call.1} parent=11 // pred_region
          _
        $region40: #{tpu_custom_call.1} parent=11 // pred_fallthru
          _
        // Predicated region
        $region41: #{tpu_custom_call.1} parent=11 // pred_check
          %p297 = pneg %p215
        $region42: #{tpu_custom_call.1} parent=11 // pred_check_branch
          %299 = sbr.rel (%p297) target = $region44
        $region43: #{tpu_custom_call.1} parent=11 // pred_region
          _
        $region44: #{tpu_custom_call.1} parent=11 // pred_fallthru
          _
      $region12: #{tpu_custom_call.1} parent=5 // pred_fallthru
        _
      %p300 = scmp.lt.s32.totalorder %s21, 2
      // Predicated region
      $region45: #{tpu_custom_call.1} parent=5 // pred_check
        %p301 = pneg %p300
      $region46: #{tpu_custom_call.1} parent=5 // pred_check_branch
        %303 = sbr.rel (%p301) target = $region48
      $region47: #{tpu_custom_call.1} parent=5 // pred_region
        // Predicated region
        $region49: #{tpu_custom_call.1} parent=47 // pred_check
          %p304 = pneg %p41
        $region50: #{tpu_custom_call.1} parent=47 // pred_check_branch
          %306 = sbr.rel (%p304) target = $region52
        $region51: #{tpu_custom_call.1} parent=47 // pred_region
          %s307 = smul.u32 16, %s21
          %p308 = scmp.lt.s32.totalorder %s307, 31
          %s309 = scalar_select %p308, %s307, 31
          %s310 = smul.addr %s309, 4
          %s311 = scalar_lea.vmem %s0, %s310
          %s312 = smul.u32 16, %s21
        $region52: #{tpu_custom_call.1} parent=47 // pred_fallthru
          _
      $region48: #{tpu_custom_call.1} parent=5 // pred_fallthru
        _
      %p313 = scmp.le.s32.totalorder 1, %s21
      %p314 = scmp.lt.s32.totalorder %s21, 3
      %p315 = pnand %p313, %p314
      %p316 = pneg %p315
      // Predicated region
      $region53: #{tpu_custom_call.1} parent=5 // pred_check
        _
      $region54: #{tpu_custom_call.1} parent=5 // pred_check_branch
        %318 = sbr.rel (%p315) target = $region56
      $region55: #{tpu_custom_call.1} parent=5 // pred_region
        %s319 = ssub.s32 %s21, 1
        // Predicated region
        $region57: #{tpu_custom_call.1} parent=55 // pred_check
          %p320 = pneg %p110
        $region58: #{tpu_custom_call.1} parent=55 // pred_check_branch
          %322 = sbr.rel (%p320) target = $region60
        $region59: #{tpu_custom_call.1} parent=55 // pred_region
          %323 = dma.done [#allocation4], 16384
        $region60: #{tpu_custom_call.1} parent=55 // pred_fallthru
          _
        // Predicated region
        $region61: #{tpu_custom_call.1} parent=55 // pred_check
          %p324 = pneg %p152
        $region62: #{tpu_custom_call.1} parent=55 // pred_check_branch
          %326 = sbr.rel (%p324) target = $region64
        $region63: #{tpu_custom_call.1} parent=55 // pred_region
          %327 = dma.done [#allocation7], 16384
        $region64: #{tpu_custom_call.1} parent=55 // pred_fallthru
          _
        %s328 = smul.u32 16, %s26
        %p329 = scmp.lt.s32.totalorder %s328, 31
        %s330 = scalar_select %p329, %s328, 31
        %s331 = smul.addr %s330, 4
        %s332 = scalar_lea.vmem %s0, %s331
        %p333 = pneg %p47
        %p334 = pneg %p44
        %p335 = pneg %p68
        %p336 = pneg %p65
        %p337 = pneg %p89
        %p338 = pneg %p86
        %p339 = pneg %p110
        %p340 = pneg %p107
        %p341 = pneg %p131
        %p342 = pneg %p128
        %p343 = pneg %p152
        %p344 = pneg %p149
        %p345 = pneg %p173
        %p346 = pneg %p170
        %p347 = pneg %p194
        %p348 = pneg %p191
        %p349 = pneg %p215
        %p350 = pneg %p212
        %p351 = pneg %p241
        %p352 = pneg %p238
        %s353 = sand.u32 %s228, 1
        %s354 = scalar_lea.sflag [#allocation5], %s353
        %s355 = sand.u32 %s228, 1
        %s356 = scalar_lea.vmem [#allocation8], %s355
        %s357 = smul.u32 16, %s26
        %p358 = scmp.lt.s32.totalorder %s357, 31
        %s359 = scalar_select %p358, %s357, 31
        %s360 = smul.addr %s359, 4
        %s361 = scalar_lea.vmem %s0, %s360
        %s362 = smul.u32 16, %s26
        %s364 = sld [smem:[#allocation2]]
        %v365 = vld [vmem:[%s361] sm:$0xf]
        %v366 = vld [vmem:[%s361 + $0x4] sm:$0xf]
        %v367 = vld [vmem:[%s361 + $0x8] sm:$0xf]
        %v368 = vld [vmem:[%s361 + $0xc] sm:$0xf]
        %v369 = vld [vmem:[%s361 + $0x10] sm:$0xf]
        %v370 = vld [vmem:[%s361 + $0x14] sm:$0xf]
        %v371 = vld [vmem:[%s361 + $0x18] sm:$0xf]
        %v372 = vld [vmem:[%s361 + $0x1c] sm:$0xf]
        %v373 = vld [vmem:[%s361 + $0x20] sm:$0xf]
        %v374 = vld [vmem:[%s361 + $0x24] sm:$0xf]
        %v375 = vld [vmem:[%s361 + $0x28] sm:$0xf]
        %v376 = vld [vmem:[%s361 + $0x2c] sm:$0xf]
        %v377 = vld [vmem:[%s361 + $0x30] sm:$0xf]
        %v378 = vld [vmem:[%s361 + $0x34] sm:$0xf]
        %v379 = vld [vmem:[%s361 + $0x38] sm:$0xf]
        %v380 = vld [vmem:[%s361 + $0x3c] sm:$0xf]
        %v381 = vld [vmem:[%s1] sm:$0xff]
        %v382 = vld [vmem:[%s1 + $0x8] sm:$0xff]
        %v383 = vld [vmem:[%s1 + $0x10] sm:$0xff]
        %v384 = vld [vmem:[%s1 + $0x18] sm:$0xff]
        %v385 = vld [vmem:[%s1 + $0x20] sm:$0xff]
        %v386 = vld [vmem:[%s1 + $0x28] sm:$0xff]
        %v387 = vld [vmem:[%s1 + $0x30] sm:$0xff]
        %v388 = vld [vmem:[%s1 + $0x38] sm:$0xff]
        %v389 = vld [vmem:[%s2] sm:$0xf]
        %v391 = vlaneseq
        %v392 = vshrl.u32 %v391, 7
        %v393 = vsub.s32 0, %v392
        %v394 = vrot.slane %v389, %v393
        %v395 = vlaneseq
        %v396 = vshrl.u32 %v395, 7
        %v397 = vsub.s32 1, %v396
        %v398 = vrot.slane %v389, %v397
        %v399 = vlaneseq
        %v400 = vshrl.u32 %v399, 7
        %v401 = vsub.s32 2, %v400
        %v402 = vrot.slane %v389, %v401
        %v403 = vlaneseq
        %v404 = vshrl.u32 %v403, 7
        %v405 = vsub.s32 3, %v404
        %v406 = vrot.slane %v389, %v405
        %v427 = vunpack.c.l.b16 %v365
        %v428 = vunpack.c.l.b16 %v366
        %v429 = vunpack.c.l.b16 %v367
        %v430 = vunpack.c.l.b16 %v368
        %v431 = vunpack.c.l.b16 %v369
        %v432 = vunpack.c.l.b16 %v370
        %v433 = vunpack.c.l.b16 %v371
        %v434 = vunpack.c.l.b16 %v372
        %v435 = vunpack.c.l.b16 %v373
        %v436 = vunpack.c.l.b16 %v374
        %v437 = vunpack.c.l.b16 %v375
        %v438 = vunpack.c.l.b16 %v376
        %v439 = vunpack.c.l.b16 %v377
        %v440 = vunpack.c.l.b16 %v378
        %v441 = vunpack.c.l.b16 %v379
        %v442 = vunpack.c.l.b16 %v380
        %v443 = vpack.c.b16 %v428, %v427
        %v444 = vpack.c.b16 %v430, %v429
        %v445 = vpack.c.b16 %v432, %v431
        %v446 = vpack.c.b16 %v434, %v433
        %v447 = vpack.c.b16 %v436, %v435
        %v448 = vpack.c.b16 %v438, %v437
        %v449 = vpack.c.b16 %v440, %v439
        %v450 = vpack.c.b16 %v442, %v441
        %v459 = vunpack.c.l.b16 %v381
        %v460 = vunpack.c.h.b16 %v381
        %v461 = vunpack.c.l.b16 %v382
        %v462 = vunpack.c.h.b16 %v382
        %v463 = vunpack.c.l.b16 %v383
        %v464 = vunpack.c.h.b16 %v383
        %v465 = vunpack.c.l.b16 %v384
        %v466 = vunpack.c.h.b16 %v384
        %v467 = vunpack.c.l.b16 %v385
        %v468 = vunpack.c.h.b16 %v385
        %v469 = vunpack.c.l.b16 %v386
        %v470 = vunpack.c.h.b16 %v386
        %v471 = vunpack.c.l.b16 %v387
        %v472 = vunpack.c.h.b16 %v387
        %v473 = vunpack.c.l.b16 %v388
        %v474 = vunpack.c.h.b16 %v388
        %v475 = vpack.c.b16 %v463, %v459
        %v476 = vpack.c.b16 %v464, %v460
        %v477 = vpack.c.b16 %v465, %v461
        %v478 = vpack.c.b16 %v466, %v462
        %v479 = vpack.c.b16 %v471, %v467
        %v480 = vpack.c.b16 %v472, %v468
        %v481 = vpack.c.b16 %v473, %v469
        %v482 = vpack.c.b16 %v474, %v470
        %vm491 = vcmask 261120
        %v493 = vsel %vm491, %v443, 0
        %v496 = vsel %vm491, %v444, 0
        %v499 = vsel %vm491, %v445, 0
        %v502 = vsel %vm491, %v446, 0
        %v505 = vsel %vm491, %v447, 0
        %v508 = vsel %vm491, %v448, 0
        %v511 = vsel %vm491, %v449, 0
        %v514 = vsel %vm491, %v450, 0
        %516 = vmatprep.subr.bf16.mxu0 %v476
        %517 = vmatpush1.bf16.msra.mxu0 %v475
        %518 = vmatprep.subr.bf16.mxu0 %v480
        %519 = vmatpush1.bf16.msra.mxu0 %v479
        %520 = vmatprep.subr.bf16.mxu0 0
        %521 = vmatpush1.bf16.msra.mxu0 0
        %522 = vmatprep.subr.bf16.mxu0 0
        %523 = vmatpush1.bf16.msra.mxu0 0
        %524 = vmatprep.subr.bf16.mxu0 0
        %525 = vmatpush1.bf16.msra.mxu0 0
        %526 = vmatprep.subr.bf16.mxu0 0
        %527 = vmatpush1.bf16.msra.mxu0 0
        %528 = vmatprep.subr.bf16.mxu0 0
        %529 = vmatpush1.bf16.msra.mxu0 0
        %530 = vmatprep.subr.bf16.mxu0 0
        %531 = vmatpush1.bf16.msra.mxu0 0
        %532 = vmatprep.subr.bf16.mxu0 0
        %533 = vmatpush1.bf16.msra.mxu0 0
        %534 = vmatprep.subr.bf16.mxu0 0
        %535 = vmatpush1.bf16.msra.mxu0 0
        %536 = vmatprep.subr.bf16.mxu0 0
        %537 = vmatpush1.bf16.msra.mxu0 0
        %538 = vmatprep.subr.bf16.mxu0 0
        %539 = vmatpush1.bf16.msra.mxu0 0
        %540 = vmatprep.subr.bf16.mxu0 0
        %541 = vmatpush1.bf16.msra.mxu0 0
        %542 = vmatprep.subr.bf16.mxu0 0
        %543 = vmatpush1.bf16.msra.mxu0 0
        %544 = vmatprep.subr.bf16.mxu0 0
        %545 = vmatpush1.bf16.msra.mxu0 0
        %546 = vmatprep.subr.bf16.mxu0 0
        %547 = vmatpush1.bf16.msra.mxu0 0
        %548 = vmatprep.mubr.bf16.mxu0 0
        %549 = vmatmul.mubr.bf16.gmra.mrb[0].mxu0 %v493
        %v550 = vpop.f32.mrb[0].mxu0
        %v551 = vadd.f32 %v394, %v550
        %v552 = vpop.f32.mrb[0].mxu0
        %v553 = vadd.f32 %v398, %v552
        %v554 = vpop.f32.mrb[0].mxu0
        %v555 = vadd.f32 %v394, %v554
        %v556 = vpop.f32.mrb[0].mxu0
        %v557 = vadd.f32 %v398, %v556
        %558 = vmatprep.mubr.bf16.mxu0 0
        %559 = vmatmul.mubr.bf16.gmra.mrb[0].mxu0 %v496
        %v560 = vpop.f32.mrb[0].mxu0
        %v561 = vadd.f32 %v394, %v560
        %v562 = vpop.f32.mrb[0].mxu0
        %v563 = vadd.f32 %v398, %v562
        %v564 = vpop.f32.mrb[0].mxu0
        %v565 = vadd.f32 %v394, %v564
        %v566 = vpop.f32.mrb[0].mxu0
        %v567 = vadd.f32 %v398, %v566
        %568 = vmatprep.mubr.bf16.mxu0 0
        %569 = vmatmul.mubr.bf16.gmra.mrb[0].mxu0 %v499
        %v570 = vpop.f32.mrb[0].mxu0
        %v571 = vadd.f32 %v394, %v570
        %v572 = vpop.f32.mrb[0].mxu0
        %v573 = vadd.f32 %v398, %v572
        %v574 = vpop.f32.mrb[0].mxu0
        %v575 = vadd.f32 %v394, %v574
        %v576 = vpop.f32.mrb[0].mxu0
        %v577 = vadd.f32 %v398, %v576
        %578 = vmatprep.mubr.bf16.mxu0 0
        %579 = vmatmul.mubr.bf16.gmra.mrb[0].mxu0 %v502
        %v580 = vpop.f32.mrb[0].mxu0
        %v581 = vadd.f32 %v394, %v580
        %v582 = vpop.f32.mrb[0].mxu0
        %v583 = vadd.f32 %v398, %v582
        %v584 = vpop.f32.mrb[0].mxu0
        %v585 = vadd.f32 %v394, %v584
        %v586 = vpop.f32.mrb[0].mxu0
        %v587 = vadd.f32 %v398, %v586
        %588 = vmatprep.mubr.bf16.mxu0 0
        %589 = vmatmul.mubr.bf16.gmra.mrb[0].mxu0 %v505
        %v590 = vpop.f32.mrb[0].mxu0
        %v591 = vadd.f32 %v394, %v590
        %v592 = vpop.f32.mrb[0].mxu0
        %v593 = vadd.f32 %v398, %v592
        %v594 = vpop.f32.mrb[0].mxu0
        %v595 = vadd.f32 %v394, %v594
        %v596 = vpop.f32.mrb[0].mxu0
        %v597 = vadd.f32 %v398, %v596
        %598 = vmatprep.mubr.bf16.mxu0 0
        %599 = vmatmul.mubr.bf16.gmra.mrb[0].mxu0 %v508
        %v600 = vpop.f32.mrb[0].mxu0
        %v601 = vadd.f32 %v394, %v600
        %v602 = vpop.f32.mrb[0].mxu0
        %v603 = vadd.f32 %v398, %v602
        %v604 = vpop.f32.mrb[0].mxu0
        %v605 = vadd.f32 %v394, %v604
        %v606 = vpop.f32.mrb[0].mxu0
        %v607 = vadd.f32 %v398, %v606
        %608 = vmatprep.mubr.bf16.mxu0 0
        %609 = vmatmul.mubr.bf16.gmra.mrb[0].mxu0 %v511
        %v610 = vpop.f32.mrb[0].mxu0
        %v611 = vadd.f32 %v394, %v610
        %v612 = vpop.f32.mrb[0].mxu0
        %v613 = vadd.f32 %v398, %v612
        %v614 = vpop.f32.mrb[0].mxu0
        %v615 = vadd.f32 %v394, %v614
        %v616 = vpop.f32.mrb[0].mxu0
        %v617 = vadd.f32 %v398, %v616
        %618 = vmatprep.mubr.bf16.mxu0 0
        %619 = vmatmul.mubr.bf16.gmra.mrb[0].mxu0 %v514
        %v620 = vpop.f32.mrb[0].mxu0
        %v621 = vadd.f32 %v394, %v620
        %v622 = vpop.f32.mrb[0].mxu0
        %v623 = vadd.f32 %v398, %v622
        %v624 = vpop.f32.mrb[0].mxu0
        %v625 = vadd.f32 %v394, %v624
        %v626 = vpop.f32.mrb[0].mxu0
        %v627 = vadd.f32 %v398, %v626
        %628 = vdwg.mxu0
        %629 = vmatprep.subr.bf16.mxu0 %v478
        %630 = vmatpush1.bf16.msra.mxu0 %v477
        %631 = vmatprep.subr.bf16.mxu0 %v482
        %632 = vmatpush1.bf16.msra.mxu0 %v481
        %633 = vmatprep.subr.bf16.mxu0 0
        %634 = vmatpush1.bf16.msra.mxu0 0
        %635 = vmatprep.subr.bf16.mxu0 0
        %636 = vmatpush1.bf16.msra.mxu0 0
        %637 = vmatprep.subr.bf16.mxu0 0
        %638 = vmatpush1.bf16.msra.mxu0 0
        %639 = vmatprep.subr.bf16.mxu0 0
        %640 = vmatpush1.bf16.msra.mxu0 0
        %641 = vmatprep.subr.bf16.mxu0 0
        %642 = vmatpush1.bf16.msra.mxu0 0
        %643 = vmatprep.subr.bf16.mxu0 0
        %644 = vmatpush1.bf16.msra.mxu0 0
        %645 = vmatprep.subr.bf16.mxu0 0
        %646 = vmatpush1.bf16.msra.mxu0 0
        %647 = vmatprep.subr.bf16.mxu0 0
        %648 = vmatpush1.bf16.msra.mxu0 0
        %649 = vmatprep.subr.bf16.mxu0 0
        %650 = vmatpush1.bf16.msra.mxu0 0
        %651 = vmatprep.subr.bf16.mxu0 0
        %652 = vmatpush1.bf16.msra.mxu0 0
        %653 = vmatprep.subr.bf16.mxu0 0
        %654 = vmatpush1.bf16.msra.mxu0 0
        %655 = vmatprep.subr.bf16.mxu0 0
        %656 = vmatpush1.bf16.msra.mxu0 0
        %657 = vmatprep.subr.bf16.mxu0 0
        %658 = vmatpush1.bf16.msra.mxu0 0
        %659 = vmatprep.subr.bf16.mxu0 0
        %660 = vmatpush1.bf16.msra.mxu0 0
        %661 = vmatprep.mubr.bf16.mxu0 0
        %662 = vmatmul.mubr.bf16.gmra.mrb[0].mxu0 %v493
        %v663 = vpop.f32.mrb[0].mxu0
        %v664 = vadd.f32 %v402, %v663
        %v665 = vpop.f32.mrb[0].mxu0
        %v666 = vadd.f32 %v406, %v665
        %v667 = vpop.f32.mrb[0].mxu0
        %v668 = vadd.f32 %v402, %v667
        %v669 = vpop.f32.mrb[0].mxu0
        %v670 = vadd.f32 %v406, %v669
        %671 = vmatprep.mubr.bf16.mxu0 0
        %672 = vmatmul.mubr.bf16.gmra.mrb[0].mxu0 %v496
        %v673 = vpop.f32.mrb[0].mxu0
        %v674 = vadd.f32 %v402, %v673
        %v675 = vpop.f32.mrb[0].mxu0
        %v676 = vadd.f32 %v406, %v675
        %v677 = vpop.f32.mrb[0].mxu0
        %v678 = vadd.f32 %v402, %v677
        %v679 = vpop.f32.mrb[0].mxu0
        %v680 = vadd.f32 %v406, %v679
        %681 = vmatprep.mubr.bf16.mxu0 0
        %682 = vmatmul.mubr.bf16.gmra.mrb[0].mxu0 %v499
        %v683 = vpop.f32.mrb[0].mxu0
        %v684 = vadd.f32 %v402, %v683
        %v685 = vpop.f32.mrb[0].mxu0
        %v686 = vadd.f32 %v406, %v685
        %v687 = vpop.f32.mrb[0].mxu0
        %v688 = vadd.f32 %v402, %v687
        %v689 = vpop.f32.mrb[0].mxu0
        %v690 = vadd.f32 %v406, %v689
        %691 = vmatprep.mubr.bf16.mxu0 0
        %692 = vmatmul.mubr.bf16.gmra.mrb[0].mxu0 %v502
        %v693 = vpop.f32.mrb[0].mxu0
        %v694 = vadd.f32 %v402, %v693
        %v695 = vpop.f32.mrb[0].mxu0
        %v696 = vadd.f32 %v406, %v695
        %v697 = vpop.f32.mrb[0].mxu0
        %v698 = vadd.f32 %v402, %v697
        %v699 = vpop.f32.mrb[0].mxu0
        %v700 = vadd.f32 %v406, %v699
        %701 = vmatprep.mubr.bf16.mxu0 0
        %702 = vmatmul.mubr.bf16.gmra.mrb[0].mxu0 %v505
        %v703 = vpop.f32.mrb[0].mxu0
        %v704 = vadd.f32 %v402, %v703
        %v705 = vpop.f32.mrb[0].mxu0
        %v706 = vadd.f32 %v406, %v705
        %v707 = vpop.f32.mrb[0].mxu0
        %v708 = vadd.f32 %v402, %v707
        %v709 = vpop.f32.mrb[0].mxu0
        %v710 = vadd.f32 %v406, %v709
        %711 = vmatprep.mubr.bf16.mxu0 0
        %712 = vmatmul.mubr.bf16.gmra.mrb[0].mxu0 %v508
        %v713 = vpop.f32.mrb[0].mxu0
        %v714 = vadd.f32 %v402, %v713
        %v715 = vpop.f32.mrb[0].mxu0
        %v716 = vadd.f32 %v406, %v715
        %v717 = vpop.f32.mrb[0].mxu0
        %v718 = vadd.f32 %v402, %v717
        %v719 = vpop.f32.mrb[0].mxu0
        %v720 = vadd.f32 %v406, %v719
        %721 = vmatprep.mubr.bf16.mxu0 0
        %722 = vmatmul.mubr.bf16.gmra.mrb[0].mxu0 %v511
        %v723 = vpop.f32.mrb[0].mxu0
        %v724 = vadd.f32 %v402, %v723
        %v725 = vpop.f32.mrb[0].mxu0
        %v726 = vadd.f32 %v406, %v725
        %v727 = vpop.f32.mrb[0].mxu0
        %v728 = vadd.f32 %v402, %v727
        %v729 = vpop.f32.mrb[0].mxu0
        %v730 = vadd.f32 %v406, %v729
        %731 = vmatprep.mubr.bf16.mxu0 0
        %732 = vmatmul.mubr.bf16.gmra.mrb[0].mxu0 %v514
        %v733 = vpop.f32.mrb[0].mxu0
        %v734 = vadd.f32 %v402, %v733
        %v735 = vpop.f32.mrb[0].mxu0
        %v736 = vadd.f32 %v406, %v735
        %v737 = vpop.f32.mrb[0].mxu0
        %v738 = vadd.f32 %v402, %v737
        %v739 = vpop.f32.mrb[0].mxu0
        %v740 = vadd.f32 %v406, %v739
        %741 = vdwg.mxu0
        %vm742 = vcmp.ge.f32.partialorder %v551, 0.0
        %vm743 = vcmp.ge.f32.partialorder %v553, 0.0
        %vm744 = vcmp.ge.f32.partialorder %v664, 0.0
        %vm745 = vcmp.ge.f32.partialorder %v666, 0.0
        %vm746 = vcmp.ge.f32.partialorder %v555, 0.0
        %vm747 = vcmp.ge.f32.partialorder %v557, 0.0
        %vm748 = vcmp.ge.f32.partialorder %v668, 0.0
        %vm749 = vcmp.ge.f32.partialorder %v670, 0.0
        %vm750 = vcmp.ge.f32.partialorder %v561, 0.0
        %vm751 = vcmp.ge.f32.partialorder %v563, 0.0
        %vm752 = vcmp.ge.f32.partialorder %v674, 0.0
        %vm753 = vcmp.ge.f32.partialorder %v676, 0.0
        %vm754 = vcmp.ge.f32.partialorder %v565, 0.0
        %vm755 = vcmp.ge.f32.partialorder %v567, 0.0
        %vm756 = vcmp.ge.f32.partialorder %v678, 0.0
        %vm757 = vcmp.ge.f32.partialorder %v680, 0.0
        %vm758 = vcmp.ge.f32.partialorder %v571, 0.0
        %vm759 = vcmp.ge.f32.partialorder %v573, 0.0
        %vm760 = vcmp.ge.f32.partialorder %v684, 0.0
        %vm761 = vcmp.ge.f32.partialorder %v686, 0.0
        %vm762 = vcmp.ge.f32.partialorder %v575, 0.0
        %vm763 = vcmp.ge.f32.partialorder %v577, 0.0
        %vm764 = vcmp.ge.f32.partialorder %v688, 0.0
        %vm765 = vcmp.ge.f32.partialorder %v690, 0.0
        %vm766 = vcmp.ge.f32.partialorder %v581, 0.0
        %vm767 = vcmp.ge.f32.partialorder %v583, 0.0
        %vm768 = vcmp.ge.f32.partialorder %v694, 0.0
        %vm769 = vcmp.ge.f32.partialorder %v696, 0.0
        %vm770 = vcmp.ge.f32.partialorder %v585, 0.0
        %vm771 = vcmp.ge.f32.partialorder %v587, 0.0
        %vm772 = vcmp.ge.f32.partialorder %v698, 0.0
        %vm773 = vcmp.ge.f32.partialorder %v700, 0.0
        %vm774 = vcmp.ge.f32.partialorder %v591, 0.0
        %vm775 = vcmp.ge.f32.partialorder %v593, 0.0
        %vm776 = vcmp.ge.f32.partialorder %v704, 0.0
        %vm777 = vcmp.ge.f32.partialorder %v706, 0.0
        %vm778 = vcmp.ge.f32.partialorder %v595, 0.0
        %vm779 = vcmp.ge.f32.partialorder %v597, 0.0
        %vm780 = vcmp.ge.f32.partialorder %v708, 0.0
        %vm781 = vcmp.ge.f32.partialorder %v710, 0.0
        %vm782 = vcmp.ge.f32.partialorder %v601, 0.0
        %vm783 = vcmp.ge.f32.partialorder %v603, 0.0
        %vm784 = vcmp.ge.f32.partialorder %v714, 0.0
        %vm785 = vcmp.ge.f32.partialorder %v716, 0.0
        %vm786 = vcmp.ge.f32.partialorder %v605, 0.0
        %vm787 = vcmp.ge.f32.partialorder %v607, 0.0
        %vm788 = vcmp.ge.f32.partialorder %v718, 0.0
        %vm789 = vcmp.ge.f32.partialorder %v720, 0.0
        %vm790 = vcmp.ge.f32.partialorder %v611, 0.0
        %vm791 = vcmp.ge.f32.partialorder %v613, 0.0
        %vm792 = vcmp.ge.f32.partialorder %v724, 0.0
        %vm793 = vcmp.ge.f32.partialorder %v726, 0.0
        %vm794 = vcmp.ge.f32.partialorder %v615, 0.0
        %vm795 = vcmp.ge.f32.partialorder %v617, 0.0
        %vm796 = vcmp.ge.f32.partialorder %v728, 0.0
        %vm797 = vcmp.ge.f32.partialorder %v730, 0.0
        %vm798 = vcmp.ge.f32.partialorder %v621, 0.0
        %vm799 = vcmp.ge.f32.partialorder %v623, 0.0
        %vm800 = vcmp.ge.f32.partialorder %v734, 0.0
        %vm801 = vcmp.ge.f32.partialorder %v736, 0.0
        %vm802 = vcmp.ge.f32.partialorder %v625, 0.0
        %vm803 = vcmp.ge.f32.partialorder %v627, 0.0
        %vm804 = vcmp.ge.f32.partialorder %v738, 0.0
        %vm805 = vcmp.ge.f32.partialorder %v740, 0.0
        %v806 = vmul.f32 %v551, 0.2
        %v807 = vmul.f32 %v553, 0.2
        %v808 = vmul.f32 %v664, 0.2
        %v809 = vmul.f32 %v666, 0.2
        %v810 = vmul.f32 %v555, 0.2
        %v811 = vmul.f32 %v557, 0.2
        %v812 = vmul.f32 %v668, 0.2
        %v813 = vmul.f32 %v670, 0.2
        %v814 = vmul.f32 %v561, 0.2
        %v815 = vmul.f32 %v563, 0.2
        %v816 = vmul.f32 %v674, 0.2
        %v817 = vmul.f32 %v676, 0.2
        %v818 = vmul.f32 %v565, 0.2
        %v819 = vmul.f32 %v567, 0.2
        %v820 = vmul.f32 %v678, 0.2
        %v821 = vmul.f32 %v680, 0.2
        %v822 = vmul.f32 %v571, 0.2
        %v823 = vmul.f32 %v573, 0.2
        %v824 = vmul.f32 %v684, 0.2
        %v825 = vmul.f32 %v686, 0.2
        %v826 = vmul.f32 %v575, 0.2
        %v827 = vmul.f32 %v577, 0.2
        %v828 = vmul.f32 %v688, 0.2
        %v829 = vmul.f32 %v690, 0.2
        %v830 = vmul.f32 %v581, 0.2
        %v831 = vmul.f32 %v583, 0.2
        %v832 = vmul.f32 %v694, 0.2
        %v833 = vmul.f32 %v696, 0.2
        %v834 = vmul.f32 %v585, 0.2
        %v835 = vmul.f32 %v587, 0.2
        %v836 = vmul.f32 %v698, 0.2
        %v837 = vmul.f32 %v700, 0.2
        %v838 = vmul.f32 %v591, 0.2
        %v839 = vmul.f32 %v593, 0.2
        %v840 = vmul.f32 %v704, 0.2
        %v841 = vmul.f32 %v706, 0.2
        %v842 = vmul.f32 %v595, 0.2
        %v843 = vmul.f32 %v597, 0.2
        %v844 = vmul.f32 %v708, 0.2
        %v845 = vmul.f32 %v710, 0.2
        %v846 = vmul.f32 %v601, 0.2
        %v847 = vmul.f32 %v603, 0.2
        %v848 = vmul.f32 %v714, 0.2
        %v849 = vmul.f32 %v716, 0.2
        %v850 = vmul.f32 %v605, 0.2
        %v851 = vmul.f32 %v607, 0.2
        %v852 = vmul.f32 %v718, 0.2
        %v853 = vmul.f32 %v720, 0.2
        %v854 = vmul.f32 %v611, 0.2
        %v855 = vmul.f32 %v613, 0.2
        %v856 = vmul.f32 %v724, 0.2
        %v857 = vmul.f32 %v726, 0.2
        %v858 = vmul.f32 %v615, 0.2
        %v859 = vmul.f32 %v617, 0.2
        %v860 = vmul.f32 %v728, 0.2
        %v861 = vmul.f32 %v730, 0.2
        %v862 = vmul.f32 %v621, 0.2
        %v863 = vmul.f32 %v623, 0.2
        %v864 = vmul.f32 %v734, 0.2
        %v865 = vmul.f32 %v736, 0.2
        %v866 = vmul.f32 %v625, 0.2
        %v867 = vmul.f32 %v627, 0.2
        %v868 = vmul.f32 %v738, 0.2
        %v869 = vmul.f32 %v740, 0.2
        %v870 = vsel %vm742, %v551, %v806
        %v871 = vsel %vm743, %v553, %v807
        %v872 = vsel %vm744, %v664, %v808
        %v873 = vsel %vm745, %v666, %v809
        %v874 = vsel %vm746, %v555, %v810
        %v875 = vsel %vm747, %v557, %v811
        %v876 = vsel %vm748, %v668, %v812
        %v877 = vsel %vm749, %v670, %v813
        %v878 = vsel %vm750, %v561, %v814
        %v879 = vsel %vm751, %v563, %v815
        %v880 = vsel %vm752, %v674, %v816
        %v881 = vsel %vm753, %v676, %v817
        %v882 = vsel %vm754, %v565, %v818
        %v883 = vsel %vm755, %v567, %v819
        %v884 = vsel %vm756, %v678, %v820
        %v885 = vsel %vm757, %v680, %v821
        %v886 = vsel %vm758, %v571, %v822
        %v887 = vsel %vm759, %v573, %v823
        %v888 = vsel %vm760, %v684, %v824
        %v889 = vsel %vm761, %v686, %v825
        %v890 = vsel %vm762, %v575, %v826
        %v891 = vsel %vm763, %v577, %v827
        %v892 = vsel %vm764, %v688, %v828
        %v893 = vsel %vm765, %v690, %v829
        %v894 = vsel %vm766, %v581, %v830
        %v895 = vsel %vm767, %v583, %v831
        %v896 = vsel %vm768, %v694, %v832
        %v897 = vsel %vm769, %v696, %v833
        %v898 = vsel %vm770, %v585, %v834
        %v899 = vsel %vm771, %v587, %v835
        %v900 = vsel %vm772, %v698, %v836
        %v901 = vsel %vm773, %v700, %v837
        %v902 = vsel %vm774, %v591, %v838
        %v903 = vsel %vm775, %v593, %v839
        %v904 = vsel %vm776, %v704, %v840
        %v905 = vsel %vm777, %v706, %v841
        %v906 = vsel %vm778, %v595, %v842
        %v907 = vsel %vm779, %v597, %v843
        %v908 = vsel %vm780, %v708, %v844
        %v909 = vsel %vm781, %v710, %v845
        %v910 = vsel %vm782, %v601, %v846
        %v911 = vsel %vm783, %v603, %v847
        %v912 = vsel %vm784, %v714, %v848
        %v913 = vsel %vm785, %v716, %v849
        %v914 = vsel %vm786, %v605, %v850
        %v915 = vsel %vm787, %v607, %v851
        %v916 = vsel %vm788, %v718, %v852
        %v917 = vsel %vm789, %v720, %v853
        %v918 = vsel %vm790, %v611, %v854
        %v919 = vsel %vm791, %v613, %v855
        %v920 = vsel %vm792, %v724, %v856
        %v921 = vsel %vm793, %v726, %v857
        %v922 = vsel %vm794, %v615, %v858
        %v923 = vsel %vm795, %v617, %v859
        %v924 = vsel %vm796, %v728, %v860
        %v925 = vsel %vm797, %v730, %v861
        %v926 = vsel %vm798, %v621, %v862
        %v927 = vsel %vm799, %v623, %v863
        %v928 = vsel %vm800, %v734, %v864
        %v929 = vsel %vm801, %v736, %v865
        %v930 = vsel %vm802, %v625, %v866
        %v931 = vsel %vm803, %v627, %v867
        %v932 = vsel %vm804, %v738, %v868
        %v933 = vsel %vm805, %v740, %v869
        %v934 = vpack.c.bf16 %v874, %v870
        %v935 = vpack.c.bf16 %v875, %v871
        %v936 = vpack.c.bf16 %v876, %v872
        %v937 = vpack.c.bf16 %v877, %v873
        %v938 = vpack.c.bf16 %v882, %v878
        %v939 = vpack.c.bf16 %v883, %v879
        %v940 = vpack.c.bf16 %v884, %v880
        %v941 = vpack.c.bf16 %v885, %v881
        %v942 = vpack.c.bf16 %v890, %v886
        %v943 = vpack.c.bf16 %v891, %v887
        %v944 = vpack.c.bf16 %v892, %v888
        %v945 = vpack.c.bf16 %v893, %v889
        %v946 = vpack.c.bf16 %v898, %v894
        %v947 = vpack.c.bf16 %v899, %v895
        %v948 = vpack.c.bf16 %v900, %v896
        %v949 = vpack.c.bf16 %v901, %v897
        %v950 = vpack.c.bf16 %v906, %v902
        %v951 = vpack.c.bf16 %v907, %v903
        %v952 = vpack.c.bf16 %v908, %v904
        %v953 = vpack.c.bf16 %v909, %v905
        %v954 = vpack.c.bf16 %v914, %v910
        %v955 = vpack.c.bf16 %v915, %v911
        %v956 = vpack.c.bf16 %v916, %v912
        %v957 = vpack.c.bf16 %v917, %v913
        %v958 = vpack.c.bf16 %v922, %v918
        %v959 = vpack.c.bf16 %v923, %v919
        %v960 = vpack.c.bf16 %v924, %v920
        %v961 = vpack.c.bf16 %v925, %v921
        %v962 = vpack.c.bf16 %v930, %v926
        %v963 = vpack.c.bf16 %v931, %v927
        %v964 = vpack.c.bf16 %v932, %v928
        %v965 = vpack.c.bf16 %v933, %v929
        %v966 = vld [vmem:[#allocation3] sm:$0xff]
        %v967 = vld [vmem:[#allocation3 + $0x8] sm:$0xff]
        %v968 = vld [vmem:[#allocation3 + $0x10] sm:$0xff]
        %v969 = vld [vmem:[#allocation3 + $0x18] sm:$0xff]
        %v970 = vld [vmem:[#allocation3 + $0x20] sm:$0xff]
        %v971 = vld [vmem:[#allocation3 + $0x28] sm:$0xff]
        %v972 = vld [vmem:[#allocation3 + $0x30] sm:$0xff]
        %v973 = vld [vmem:[#allocation3 + $0x38] sm:$0xff]
        %v974 = vld [vmem:[#allocation3 + $0x40] sm:$0xff]
        %v975 = vld [vmem:[#allocation3 + $0x48] sm:$0xff]
        %v976 = vld [vmem:[#allocation3 + $0x50] sm:$0xff]
        %v977 = vld [vmem:[#allocation3 + $0x58] sm:$0xff]
        %v978 = vld [vmem:[#allocation3 + $0x60] sm:$0xff]
        %v979 = vld [vmem:[#allocation3 + $0x68] sm:$0xff]
        %v980 = vld [vmem:[#allocation3 + $0x70] sm:$0xff]
        %v981 = vld [vmem:[#allocation3 + $0x78] sm:$0xff]
        %v982 = vld [vmem:[#allocation3 + $0x80] sm:$0xff]
        %v983 = vld [vmem:[#allocation3 + $0x88] sm:$0xff]
        %v984 = vld [vmem:[#allocation3 + $0x90] sm:$0xff]
        %v985 = vld [vmem:[#allocation3 + $0x98] sm:$0xff]
        %v986 = vld [vmem:[#allocation3 + $0xa0] sm:$0xff]
        %v987 = vld [vmem:[#allocation3 + $0xa8] sm:$0xff]
        %v988 = vld [vmem:[#allocation3 + $0xb0] sm:$0xff]
        %v989 = vld [vmem:[#allocation3 + $0xb8] sm:$0xff]
        %v990 = vld [vmem:[#allocation3 + $0xc0] sm:$0xff]
        %v991 = vld [vmem:[#allocation3 + $0xc8] sm:$0xff]
        %v992 = vld [vmem:[#allocation3 + $0xd0] sm:$0xff]
        %v993 = vld [vmem:[#allocation3 + $0xd8] sm:$0xff]
        %v994 = vld [vmem:[#allocation3 + $0xe0] sm:$0xff]
        %v995 = vld [vmem:[#allocation3 + $0xe8] sm:$0xff]
        %v996 = vld [vmem:[#allocation3 + $0xf0] sm:$0xff]
        %v997 = vld [vmem:[#allocation3 + $0xf8] sm:$0xff]
        %v998 = vld [vmem:[#allocation3 + $0x100] sm:$0xff]
        %v999 = vld [vmem:[#allocation3 + $0x108] sm:$0xff]
        %v1000 = vld [vmem:[#allocation3 + $0x110] sm:$0xff]
        %v1001 = vld [vmem:[#allocation3 + $0x118] sm:$0xff]
        %v1002 = vld [vmem:[#allocation3 + $0x120] sm:$0xff]
        %v1003 = vld [vmem:[#allocation3 + $0x128] sm:$0xff]
        %v1004 = vld [vmem:[#allocation3 + $0x130] sm:$0xff]
        %v1005 = vld [vmem:[#allocation3 + $0x138] sm:$0xff]
        %v1006 = vld [vmem:[#allocation3 + $0x140] sm:$0xff]
        %v1007 = vld [vmem:[#allocation3 + $0x148] sm:$0xff]
        %v1008 = vld [vmem:[#allocation3 + $0x150] sm:$0xff]
        %v1009 = vld [vmem:[#allocation3 + $0x158] sm:$0xff]
        %v1010 = vld [vmem:[#allocation3 + $0x160] sm:$0xff]
        %v1011 = vld [vmem:[#allocation3 + $0x168] sm:$0xff]
        %v1012 = vld [vmem:[#allocation3 + $0x170] sm:$0xff]
        %v1013 = vld [vmem:[#allocation3 + $0x178] sm:$0xff]
        %v1014 = vld [vmem:[#allocation3 + $0x180] sm:$0xff]
        %v1015 = vld [vmem:[#allocation3 + $0x188] sm:$0xff]
        %v1016 = vld [vmem:[#allocation3 + $0x190] sm:$0xff]
        %v1017 = vld [vmem:[#allocation3 + $0x198] sm:$0xff]
        %v1018 = vld [vmem:[#allocation3 + $0x1a0] sm:$0xff]
        %v1019 = vld [vmem:[#allocation3 + $0x1a8] sm:$0xff]
        %v1020 = vld [vmem:[#allocation3 + $0x1b0] sm:$0xff]
        %v1021 = vld [vmem:[#allocation3 + $0x1b8] sm:$0xff]
        %v1022 = vld [vmem:[#allocation3 + $0x1c0] sm:$0xff]
        %v1023 = vld [vmem:[#allocation3 + $0x1c8] sm:$0xff]
        %v1024 = vld [vmem:[#allocation3 + $0x1d0] sm:$0xff]
        %v1025 = vld [vmem:[#allocation3 + $0x1d8] sm:$0xff]
        %v1026 = vld [vmem:[#allocation3 + $0x1e0] sm:$0xff]
        %v1027 = vld [vmem:[#allocation3 + $0x1e8] sm:$0xff]
        %v1028 = vld [vmem:[#allocation3 + $0x1f0] sm:$0xff]
        %v1029 = vld [vmem:[#allocation3 + $0x1f8] sm:$0xff]
        %v1030 = vld [vmem:[#allocation3 + $0x200] sm:$0xff]
        %v1031 = vld [vmem:[#allocation3 + $0x208] sm:$0xff]
        %v1032 = vld [vmem:[#allocation3 + $0x210] sm:$0xff]
        %v1033 = vld [vmem:[#allocation3 + $0x218] sm:$0xff]
        %v1034 = vld [vmem:[#allocation3 + $0x220] sm:$0xff]
        %v1035 = vld [vmem:[#allocation3 + $0x228] sm:$0xff]
        %v1036 = vld [vmem:[#allocation3 + $0x230] sm:$0xff]
        %v1037 = vld [vmem:[#allocation3 + $0x238] sm:$0xff]
        %v1038 = vld [vmem:[#allocation3 + $0x240] sm:$0xff]
        %v1039 = vld [vmem:[#allocation3 + $0x248] sm:$0xff]
        %v1040 = vld [vmem:[#allocation3 + $0x250] sm:$0xff]
        %v1041 = vld [vmem:[#allocation3 + $0x258] sm:$0xff]
        %v1042 = vld [vmem:[#allocation3 + $0x260] sm:$0xff]
        %v1043 = vld [vmem:[#allocation3 + $0x268] sm:$0xff]
        %v1044 = vld [vmem:[#allocation3 + $0x270] sm:$0xff]
        %v1045 = vld [vmem:[#allocation3 + $0x278] sm:$0xff]
        %v1046 = vld [vmem:[#allocation3 + $0x280] sm:$0xff]
        %v1047 = vld [vmem:[#allocation3 + $0x288] sm:$0xff]
        %v1048 = vld [vmem:[#allocation3 + $0x290] sm:$0xff]
        %v1049 = vld [vmem:[#allocation3 + $0x298] sm:$0xff]
        %v1050 = vld [vmem:[#allocation3 + $0x2a0] sm:$0xff]
        %v1051 = vld [vmem:[#allocation3 + $0x2a8] sm:$0xff]
        %v1052 = vld [vmem:[#allocation3 + $0x2b0] sm:$0xff]
        %v1053 = vld [vmem:[#allocation3 + $0x2b8] sm:$0xff]
        %v1054 = vld [vmem:[#allocation3 + $0x2c0] sm:$0xff]
        %v1055 = vld [vmem:[#allocation3 + $0x2c8] sm:$0xff]
        %v1056 = vld [vmem:[#allocation3 + $0x2d0] sm:$0xff]
        %v1057 = vld [vmem:[#allocation3 + $0x2d8] sm:$0xff]
        %v1058 = vld [vmem:[#allocation3 + $0x2e0] sm:$0xff]
        %v1059 = vld [vmem:[#allocation3 + $0x2e8] sm:$0xff]
        %v1060 = vld [vmem:[#allocation3 + $0x2f0] sm:$0xff]
        %v1061 = vld [vmem:[#allocation3 + $0x2f8] sm:$0xff]
        %v1062 = vld [vmem:[#allocation3 + $0x300] sm:$0xff]
        %v1063 = vld [vmem:[#allocation3 + $0x308] sm:$0xff]
        %v1064 = vld [vmem:[#allocation3 + $0x310] sm:$0xff]
        %v1065 = vld [vmem:[#allocation3 + $0x318] sm:$0xff]
        %v1066 = vld [vmem:[#allocation3 + $0x320] sm:$0xff]
        %v1067 = vld [vmem:[#allocation3 + $0x328] sm:$0xff]
        %v1068 = vld [vmem:[#allocation3 + $0x330] sm:$0xff]
        %v1069 = vld [vmem:[#allocation3 + $0x338] sm:$0xff]
        %v1070 = vld [vmem:[#allocation3 + $0x340] sm:$0xff]
        %v1071 = vld [vmem:[#allocation3 + $0x348] sm:$0xff]
        %v1072 = vld [vmem:[#allocation3 + $0x350] sm:$0xff]
        %v1073 = vld [vmem:[#allocation3 + $0x358] sm:$0xff]
        %v1074 = vld [vmem:[#allocation3 + $0x360] sm:$0xff]
        %v1075 = vld [vmem:[#allocation3 + $0x368] sm:$0xff]
        %v1076 = vld [vmem:[#allocation3 + $0x370] sm:$0xff]
        %v1077 = vld [vmem:[#allocation3 + $0x378] sm:$0xff]
        %v1078 = vld [vmem:[#allocation3 + $0x380] sm:$0xff]
        %v1079 = vld [vmem:[#allocation3 + $0x388] sm:$0xff]
        %v1080 = vld [vmem:[#allocation3 + $0x390] sm:$0xff]
        %v1081 = vld [vmem:[#allocation3 + $0x398] sm:$0xff]
        %v1082 = vld [vmem:[#allocation3 + $0x3a0] sm:$0xff]
        %v1083 = vld [vmem:[#allocation3 + $0x3a8] sm:$0xff]
        %v1084 = vld [vmem:[#allocation3 + $0x3b0] sm:$0xff]
        %v1085 = vld [vmem:[#allocation3 + $0x3b8] sm:$0xff]
        %v1086 = vld [vmem:[#allocation3 + $0x3c0] sm:$0xff]
        %v1087 = vld [vmem:[#allocation3 + $0x3c8] sm:$0xff]
        %v1088 = vld [vmem:[#allocation3 + $0x3d0] sm:$0xff]
        %v1089 = vld [vmem:[#allocation3 + $0x3d8] sm:$0xff]
        %v1090 = vld [vmem:[#allocation3 + $0x3e0] sm:$0xff]
        %v1091 = vld [vmem:[#allocation3 + $0x3e8] sm:$0xff]
        %v1092 = vld [vmem:[#allocation3 + $0x3f0] sm:$0xff]
        %v1093 = vld [vmem:[#allocation3 + $0x3f8] sm:$0xff]
        %v1094 = vld [vmem:[%s4] sm:$0xf]
        %v1096 = vlaneseq
        %v1097 = vshrl.u32 %v1096, 7
        %v1098 = vsub.s32 0, %v1097
        %v1099 = vrot.slane %v1094, %v1098
        %v1100 = vlaneseq
        %v1101 = vshrl.u32 %v1100, 7
        %v1102 = vsub.s32 1, %v1101
        %v1103 = vrot.slane %v1094, %v1102
        %v1104 = vlaneseq
        %v1105 = vshrl.u32 %v1104, 7
        %v1106 = vsub.s32 2, %v1105
        %v1107 = vrot.slane %v1094, %v1106
        %v1108 = vlaneseq
        %v1109 = vshrl.u32 %v1108, 7
        %v1110 = vsub.s32 3, %v1109
        %v1111 = vrot.slane %v1094, %v1110
        %v1244 = vunpack.c.l.b16 %v966
        %v1245 = vunpack.c.h.b16 %v966
        %v1246 = vunpack.c.l.b16 %v967
        %v1247 = vunpack.c.h.b16 %v967
        %v1248 = vunpack.c.l.b16 %v968
        %v1249 = vunpack.c.h.b16 %v968
        %v1250 = vunpack.c.l.b16 %v969
        %v1251 = vunpack.c.h.b16 %v969
        %v1252 = vunpack.c.l.b16 %v970
        %v1253 = vunpack.c.h.b16 %v970
        %v1254 = vunpack.c.l.b16 %v971
        %v1255 = vunpack.c.h.b16 %v971
        %v1256 = vunpack.c.l.b16 %v972
        %v1257 = vunpack.c.h.b16 %v972
        %v1258 = vunpack.c.l.b16 %v973
        %v1259 = vunpack.c.h.b16 %v973
        %v1260 = vunpack.c.l.b16 %v974
        %v1261 = vunpack.c.h.b16 %v974
        %v1262 = vunpack.c.l.b16 %v975
        %v1263 = vunpack.c.h.b16 %v975
        %v1264 = vunpack.c.l.b16 %v976
        %v1265 = vunpack.c.h.b16 %v976
        %v1266 = vunpack.c.l.b16 %v977
        %v1267 = vunpack.c.h.b16 %v977
        %v1268 = vunpack.c.l.b16 %v978
        %v1269 = vunpack.c.h.b16 %v978
        %v1270 = vunpack.c.l.b16 %v979
        %v1271 = vunpack.c.h.b16 %v979
        %v1272 = vunpack.c.l.b16 %v980
        %v1273 = vunpack.c.h.b16 %v980
        %v1274 = vunpack.c.l.b16 %v981
        %v1275 = vunpack.c.h.b16 %v981
        %v1276 = vunpack.c.l.b16 %v982
        %v1277 = vunpack.c.h.b16 %v982
        %v1278 = vunpack.c.l.b16 %v983
        %v1279 = vunpack.c.h.b16 %v983
        %v1280 = vunpack.c.l.b16 %v984
        %v1281 = vunpack.c.h.b16 %v984
        %v1282 = vunpack.c.l.b16 %v985
        %v1283 = vunpack.c.h.b16 %v985
        %v1284 = vunpack.c.l.b16 %v986
        %v1285 = vunpack.c.h.b16 %v986
        %v1286 = vunpack.c.l.b16 %v987
        %v1287 = vunpack.c.h.b16 %v987
        %v1288 = vunpack.c.l.b16 %v988
        %v1289 = vunpack.c.h.b16 %v988
        %v1290 = vunpack.c.l.b16 %v989
        %v1291 = vunpack.c.h.b16 %v989
        %v1292 = vunpack.c.l.b16 %v990
        %v1293 = vunpack.c.h.b16 %v990
        %v1294 = vunpack.c.l.b16 %v991
        %v1295 = vunpack.c.h.b16 %v991
        %v1296 = vunpack.c.l.b16 %v992
        %v1297 = vunpack.c.h.b16 %v992
        %v1298 = vunpack.c.l.b16 %v993
        %v1299 = vunpack.c.h.b16 %v993
        %v1300 = vunpack.c.l.b16 %v994
        %v1301 = vunpack.c.h.b16 %v994
        %v1302 = vunpack.c.l.b16 %v995
        %v1303 = vunpack.c.h.b16 %v995
        %v1304 = vunpack.c.l.b16 %v996
        %v1305 = vunpack.c.h.b16 %v996
        %v1306 = vunpack.c.l.b16 %v997
        %v1307 = vunpack.c.h.b16 %v997
        %v1308 = vunpack.c.l.b16 %v998
        %v1309 = vunpack.c.h.b16 %v998
        %v1310 = vunpack.c.l.b16 %v999
        %v1311 = vunpack.c.h.b16 %v999
        %v1312 = vunpack.c.l.b16 %v1000
        %v1313 = vunpack.c.h.b16 %v1000
        %v1314 = vunpack.c.l.b16 %v1001
        %v1315 = vunpack.c.h.b16 %v1001
        %v1316 = vunpack.c.l.b16 %v1002
        %v1317 = vunpack.c.h.b16 %v1002
        %v1318 = vunpack.c.l.b16 %v1003
        %v1319 = vunpack.c.h.b16 %v1003
        %v1320 = vunpack.c.l.b16 %v1004
        %v1321 = vunpack.c.h.b16 %v1004
        %v1322 = vunpack.c.l.b16 %v1005
        %v1323 = vunpack.c.h.b16 %v1005
        %v1324 = vunpack.c.l.b16 %v1006
        %v1325 = vunpack.c.h.b16 %v1006
        %v1326 = vunpack.c.l.b16 %v1007
        %v1327 = vunpack.c.h.b16 %v1007
        %v1328 = vunpack.c.l.b16 %v1008
        %v1329 = vunpack.c.h.b16 %v1008
        %v1330 = vunpack.c.l.b16 %v1009
        %v1331 = vunpack.c.h.b16 %v1009
        %v1332 = vunpack.c.l.b16 %v1010
        %v1333 = vunpack.c.h.b16 %v1010
        %v1334 = vunpack.c.l.b16 %v1011
        %v1335 = vunpack.c.h.b16 %v1011
        %v1336 = vunpack.c.l.b16 %v1012
        %v1337 = vunpack.c.h.b16 %v1012
        %v1338 = vunpack.c.l.b16 %v1013
        %v1339 = vunpack.c.h.b16 %v1013
        %v1340 = vunpack.c.l.b16 %v1014
        %v1341 = vunpack.c.h.b16 %v1014
        %v1342 = vunpack.c.l.b16 %v1015
        %v1343 = vunpack.c.h.b16 %v1015
        %v1344 = vunpack.c.l.b16 %v1016
        %v1345 = vunpack.c.h.b16 %v1016
        %v1346 = vunpack.c.l.b16 %v1017
        %v1347 = vunpack.c.h.b16 %v1017
        %v1348 = vunpack.c.l.b16 %v1018
        %v1349 = vunpack.c.h.b16 %v1018
        %v1350 = vunpack.c.l.b16 %v1019
        %v1351 = vunpack.c.h.b16 %v1019
        %v1352 = vunpack.c.l.b16 %v1020
        %v1353 = vunpack.c.h.b16 %v1020
        %v1354 = vunpack.c.l.b16 %v1021
        %v1355 = vunpack.c.h.b16 %v1021
        %v1356 = vunpack.c.l.b16 %v1022
        %v1357 = vunpack.c.h.b16 %v1022
        %v1358 = vunpack.c.l.b16 %v1023
        %v1359 = vunpack.c.h.b16 %v1023
        %v1360 = vunpack.c.l.b16 %v1024
        %v1361 = vunpack.c.h.b16 %v1024
        %v1362 = vunpack.c.l.b16 %v1025
        %v1363 = vunpack.c.h.b16 %v1025
        %v1364 = vunpack.c.l.b16 %v1026
        %v1365 = vunpack.c.h.b16 %v1026
        %v1366 = vunpack.c.l.b16 %v1027
        %v1367 = vunpack.c.h.b16 %v1027
        %v1368 = vunpack.c.l.b16 %v1028
        %v1369 = vunpack.c.h.b16 %v1028
        %v1370 = vunpack.c.l.b16 %v1029
        %v1371 = vunpack.c.h.b16 %v1029
        %v1372 = vunpack.c.l.b16 %v1030
        %v1373 = vunpack.c.h.b16 %v1030
        %v1374 = vunpack.c.l.b16 %v1031
        %v1375 = vunpack.c.h.b16 %v1031
        %v1376 = vunpack.c.l.b16 %v1032
        %v1377 = vunpack.c.h.b16 %v1032
        %v1378 = vunpack.c.l.b16 %v1033
        %v1379 = vunpack.c.h.b16 %v1033
        %v1380 = vunpack.c.l.b16 %v1034
        %v1381 = vunpack.c.h.b16 %v1034
        %v1382 = vunpack.c.l.b16 %v1035
        %v1383 = vunpack.c.h.b16 %v1035
        %v1384 = vunpack.c.l.b16 %v1036
        %v1385 = vunpack.c.h.b16 %v1036
        %v1386 = vunpack.c.l.b16 %v1037
        %v1387 = vunpack.c.h.b16 %v1037
        %v1388 = vunpack.c.l.b16 %v1038
        %v1389 = vunpack.c.h.b16 %v1038
        %v1390 = vunpack.c.l.b16 %v1039
        %v1391 = vunpack.c.h.b16 %v1039
        %v1392 = vunpack.c.l.b16 %v1040
        %v1393 = vunpack.c.h.b16 %v1040
        %v1394 = vunpack.c.l.b16 %v1041
        %v1395 = vunpack.c.h.b16 %v1041
        %v1396 = vunpack.c.l.b16 %v1042
        %v1397 = vunpack.c.h.b16 %v1042
        %v1398 = vunpack.c.l.b16 %v1043
        %v1399 = vunpack.c.h.b16 %v1043
        %v1400 = vunpack.c.l.b16 %v1044
        %v1401 = vunpack.c.h.b16 %v1044
        %v1402 = vunpack.c.l.b16 %v1045
        %v1403 = vunpack.c.h.b16 %v1045
        %v1404 = vunpack.c.l.b16 %v1046
        %v1405 = vunpack.c.h.b16 %v1046
        %v1406 = vunpack.c.l.b16 %v1047
        %v1407 = vunpack.c.h.b16 %v1047
        %v1408 = vunpack.c.l.b16 %v1048
        %v1409 = vunpack.c.h.b16 %v1048
        %v1410 = vunpack.c.l.b16 %v1049
        %v1411 = vunpack.c.h.b16 %v1049
        %v1412 = vunpack.c.l.b16 %v1050
        %v1413 = vunpack.c.h.b16 %v1050
        %v1414 = vunpack.c.l.b16 %v1051
        %v1415 = vunpack.c.h.b16 %v1051
        %v1416 = vunpack.c.l.b16 %v1052
        %v1417 = vunpack.c.h.b16 %v1052
        %v1418 = vunpack.c.l.b16 %v1053
        %v1419 = vunpack.c.h.b16 %v1053
        %v1420 = vunpack.c.l.b16 %v1054
        %v1421 = vunpack.c.h.b16 %v1054
        %v1422 = vunpack.c.l.b16 %v1055
        %v1423 = vunpack.c.h.b16 %v1055
        %v1424 = vunpack.c.l.b16 %v1056
        %v1425 = vunpack.c.h.b16 %v1056
        %v1426 = vunpack.c.l.b16 %v1057
        %v1427 = vunpack.c.h.b16 %v1057
        %v1428 = vunpack.c.l.b16 %v1058
        %v1429 = vunpack.c.h.b16 %v1058
        %v1430 = vunpack.c.l.b16 %v1059
        %v1431 = vunpack.c.h.b16 %v1059
        %v1432 = vunpack.c.l.b16 %v1060
        %v1433 = vunpack.c.h.b16 %v1060
        %v1434 = vunpack.c.l.b16 %v1061
        %v1435 = vunpack.c.h.b16 %v1061
        %v1436 = vunpack.c.l.b16 %v1062
        %v1437 = vunpack.c.h.b16 %v1062
        %v1438 = vunpack.c.l.b16 %v1063
        %v1439 = vunpack.c.h.b16 %v1063
        %v1440 = vunpack.c.l.b16 %v1064
        %v1441 = vunpack.c.h.b16 %v1064
        %v1442 = vunpack.c.l.b16 %v1065
        %v1443 = vunpack.c.h.b16 %v1065
        %v1444 = vunpack.c.l.b16 %v1066
        %v1445 = vunpack.c.h.b16 %v1066
        %v1446 = vunpack.c.l.b16 %v1067
        %v1447 = vunpack.c.h.b16 %v1067
        %v1448 = vunpack.c.l.b16 %v1068
        %v1449 = vunpack.c.h.b16 %v1068
        %v1450 = vunpack.c.l.b16 %v1069
        %v1451 = vunpack.c.h.b16 %v1069
        %v1452 = vunpack.c.l.b16 %v1070
        %v1453 = vunpack.c.h.b16 %v1070
        %v1454 = vunpack.c.l.b16 %v1071
        %v1455 = vunpack.c.h.b16 %v1071
        %v1456 = vunpack.c.l.b16 %v1072
        %v1457 = vunpack.c.h.b16 %v1072
        %v1458 = vunpack.c.l.b16 %v1073
        %v1459 = vunpack.c.h.b16 %v1073
        %v1460 = vunpack.c.l.b16 %v1074
        %v1461 = vunpack.c.h.b16 %v1074
        %v1462 = vunpack.c.l.b16 %v1075
        %v1463 = vunpack.c.h.b16 %v1075
        %v1464 = vunpack.c.l.b16 %v1076
        %v1465 = vunpack.c.h.b16 %v1076
        %v1466 = vunpack.c.l.b16 %v1077
        %v1467 = vunpack.c.h.b16 %v1077
        %v1468 = vunpack.c.l.b16 %v1078
        %v1469 = vunpack.c.h.b16 %v1078
        %v1470 = vunpack.c.l.b16 %v1079
        %v1471 = vunpack.c.h.b16 %v1079
        %v1472 = vunpack.c.l.b16 %v1080
        %v1473 = vunpack.c.h.b16 %v1080
        %v1474 = vunpack.c.l.b16 %v1081
        %v1475 = vunpack.c.h.b16 %v1081
        %v1476 = vunpack.c.l.b16 %v1082
        %v1477 = vunpack.c.h.b16 %v1082
        %v1478 = vunpack.c.l.b16 %v1083
        %v1479 = vunpack.c.h.b16 %v1083
        %v1480 = vunpack.c.l.b16 %v1084
        %v1481 = vunpack.c.h.b16 %v1084
        %v1482 = vunpack.c.l.b16 %v1085
        %v1483 = vunpack.c.h.b16 %v1085
        %v1484 = vunpack.c.l.b16 %v1086
        %v1485 = vunpack.c.h.b16 %v1086
        %v1486 = vunpack.c.l.b16 %v1087
        %v1487 = vunpack.c.h.b16 %v1087
        %v1488 = vunpack.c.l.b16 %v1088
        %v1489 = vunpack.c.h.b16 %v1088
        %v1490 = vunpack.c.l.b16 %v1089
        %v1491 = vunpack.c.h.b16 %v1089
        %v1492 = vunpack.c.l.b16 %v1090
        %v1493 = vunpack.c.h.b16 %v1090
        %v1494 = vunpack.c.l.b16 %v1091
        %v1495 = vunpack.c.h.b16 %v1091
        %v1496 = vunpack.c.l.b16 %v1092
        %v1497 = vunpack.c.h.b16 %v1092
        %v1498 = vunpack.c.l.b16 %v1093
        %v1499 = vunpack.c.h.b16 %v1093
        %v1500 = vpack.c.b16 %v1248, %v1244
        %v1501 = vpack.c.b16 %v1249, %v1245
        %v1502 = vpack.c.b16 %v1250, %v1246
        %v1503 = vpack.c.b16 %v1251, %v1247
        %v1504 = vpack.c.b16 %v1256, %v1252
        %v1505 = vpack.c.b16 %v1257, %v1253
        %v1506 = vpack.c.b16 %v1258, %v1254
        %v1507 = vpack.c.b16 %v1259, %v1255
        %v1508 = vpack.c.b16 %v1264, %v1260
        %v1509 = vpack.c.b16 %v1265, %v1261
        %v1510 = vpack.c.b16 %v1266, %v1262
        %v1511 = vpack.c.b16 %v1267, %v1263
        %v1512 = vpack.c.b16 %v1272, %v1268
        %v1513 = vpack.c.b16 %v1273, %v1269
        %v1514 = vpack.c.b16 %v1274, %v1270
        %v1515 = vpack.c.b16 %v1275, %v1271
        %v1516 = vpack.c.b16 %v1280, %v1276
        %v1517 = vpack.c.b16 %v1281, %v1277
        %v1518 = vpack.c.b16 %v1282, %v1278
        %v1519 = vpack.c.b16 %v1283, %v1279
        %v1520 = vpack.c.b16 %v1288, %v1284
        %v1521 = vpack.c.b16 %v1289, %v1285
        %v1522 = vpack.c.b16 %v1290, %v1286
        %v1523 = vpack.c.b16 %v1291, %v1287
        %v1524 = vpack.c.b16 %v1296, %v1292
        %v1525 = vpack.c.b16 %v1297, %v1293
        %v1526 = vpack.c.b16 %v1298, %v1294
        %v1527 = vpack.c.b16 %v1299, %v1295
        %v1528 = vpack.c.b16 %v1304, %v1300
        %v1529 = vpack.c.b16 %v1305, %v1301
        %v1530 = vpack.c.b16 %v1306, %v1302
        %v1531 = vpack.c.b16 %v1307, %v1303
        %v1532 = vpack.c.b16 %v1312, %v1308
        %v1533 = vpack.c.b16 %v1313, %v1309
        %v1534 = vpack.c.b16 %v1314, %v1310
        %v1535 = vpack.c.b16 %v1315, %v1311
        %v1536 = vpack.c.b16 %v1320, %v1316
        %v1537 = vpack.c.b16 %v1321, %v1317
        %v1538 = vpack.c.b16 %v1322, %v1318
        %v1539 = vpack.c.b16 %v1323, %v1319
        %v1540 = vpack.c.b16 %v1328, %v1324
        %v1541 = vpack.c.b16 %v1329, %v1325
        %v1542 = vpack.c.b16 %v1330, %v1326
        %v1543 = vpack.c.b16 %v1331, %v1327
        %v1544 = vpack.c.b16 %v1336, %v1332
        %v1545 = vpack.c.b16 %v1337, %v1333
        %v1546 = vpack.c.b16 %v1338, %v1334
        %v1547 = vpack.c.b16 %v1339, %v1335
        %v1548 = vpack.c.b16 %v1344, %v1340
        %v1549 = vpack.c.b16 %v1345, %v1341
        %v1550 = vpack.c.b16 %v1346, %v1342
        %v1551 = vpack.c.b16 %v1347, %v1343
        %v1552 = vpack.c.b16 %v1352, %v1348
        %v1553 = vpack.c.b16 %v1353, %v1349
        %v1554 = vpack.c.b16 %v1354, %v1350
        %v1555 = vpack.c.b16 %v1355, %v1351
        %v1556 = vpack.c.b16 %v1360, %v1356
        %v1557 = vpack.c.b16 %v1361, %v1357
        %v1558 = vpack.c.b16 %v1362, %v1358
        %v1559 = vpack.c.b16 %v1363, %v1359
        %v1560 = vpack.c.b16 %v1368, %v1364
        %v1561 = vpack.c.b16 %v1369, %v1365
        %v1562 = vpack.c.b16 %v1370, %v1366
        %v1563 = vpack.c.b16 %v1371, %v1367
        %v1564 = vpack.c.b16 %v1376, %v1372
        %v1565 = vpack.c.b16 %v1377, %v1373
        %v1566 = vpack.c.b16 %v1378, %v1374
        %v1567 = vpack.c.b16 %v1379, %v1375
        %v1568 = vpack.c.b16 %v1384, %v1380
        %v1569 = vpack.c.b16 %v1385, %v1381
        %v1570 = vpack.c.b16 %v1386, %v1382
        %v1571 = vpack.c.b16 %v1387, %v1383
        %v1572 = vpack.c.b16 %v1392, %v1388
        %v1573 = vpack.c.b16 %v1393, %v1389
        %v1574 = vpack.c.b16 %v1394, %v1390
        %v1575 = vpack.c.b16 %v1395, %v1391
        %v1576 = vpack.c.b16 %v1400, %v1396
        %v1577 = vpack.c.b16 %v1401, %v1397
        %v1578 = vpack.c.b16 %v1402, %v1398
        %v1579 = vpack.c.b16 %v1403, %v1399
        %v1580 = vpack.c.b16 %v1408, %v1404
        %v1581 = vpack.c.b16 %v1409, %v1405
        %v1582 = vpack.c.b16 %v1410, %v1406
        %v1583 = vpack.c.b16 %v1411, %v1407
        %v1584 = vpack.c.b16 %v1416, %v1412
        %v1585 = vpack.c.b16 %v1417, %v1413
        %v1586 = vpack.c.b16 %v1418, %v1414
        %v1587 = vpack.c.b16 %v1419, %v1415
        %v1588 = vpack.c.b16 %v1424, %v1420
        %v1589 = vpack.c.b16 %v1425, %v1421
        %v1590 = vpack.c.b16 %v1426, %v1422
        %v1591 = vpack.c.b16 %v1427, %v1423
        %v1592 = vpack.c.b16 %v1432, %v1428
        %v1593 = vpack.c.b16 %v1433, %v1429
        %v1594 = vpack.c.b16 %v1434, %v1430
        %v1595 = vpack.c.b16 %v1435, %v1431
        %v1596 = vpack.c.b16 %v1440, %v1436
        %v1597 = vpack.c.b16 %v1441, %v1437
        %v1598 = vpack.c.b16 %v1442, %v1438
        %v1599 = vpack.c.b16 %v1443, %v1439
        %v1600 = vpack.c.b16 %v1448, %v1444
        %v1601 = vpack.c.b16 %v1449, %v1445
        %v1602 = vpack.c.b16 %v1450, %v1446
        %v1603 = vpack.c.b16 %v1451, %v1447
        %v1604 = vpack.c.b16 %v1456, %v1452
        %v1605 = vpack.c.b16 %v1457, %v1453
        %v1606 = vpack.c.b16 %v1458, %v1454
        %v1607 = vpack.c.b16 %v1459, %v1455
        %v1608 = vpack.c.b16 %v1464, %v1460
        %v1609 = vpack.c.b16 %v1465, %v1461
        %v1610 = vpack.c.b16 %v1466, %v1462
        %v1611 = vpack.c.b16 %v1467, %v1463
        %v1612 = vpack.c.b16 %v1472, %v1468
        %v1613 = vpack.c.b16 %v1473, %v1469
        %v1614 = vpack.c.b16 %v1474, %v1470
        %v1615 = vpack.c.b16 %v1475, %v1471
        %v1616 = vpack.c.b16 %v1480, %v1476
        %v1617 = vpack.c.b16 %v1481, %v1477
        %v1618 = vpack.c.b16 %v1482, %v1478
        %v1619 = vpack.c.b16 %v1483, %v1479
        %v1620 = vpack.c.b16 %v1488, %v1484
        %v1621 = vpack.c.b16 %v1489, %v1485
        %v1622 = vpack.c.b16 %v1490, %v1486
        %v1623 = vpack.c.b16 %v1491, %v1487
        %v1624 = vpack.c.b16 %v1496, %v1492
        %v1625 = vpack.c.b16 %v1497, %v1493
        %v1626 = vpack.c.b16 %v1498, %v1494
        %v1627 = vpack.c.b16 %v1499, %v1495
        %1756 = vmatprep.subr.bf16.mxu0 %v1501
        %1757 = vmatpush1.bf16.msra.mxu0 %v1500
        %1758 = vmatprep.subr.bf16.mxu0 %v1505
        %1759 = vmatpush1.bf16.msra.mxu0 %v1504
        %1760 = vmatprep.subr.bf16.mxu0 %v1509
        %1761 = vmatpush1.bf16.msra.mxu0 %v1508
        %1762 = vmatprep.subr.bf16.mxu0 %v1513
        %1763 = vmatpush1.bf16.msra.mxu0 %v1512
        %1764 = vmatprep.subr.bf16.mxu0 %v1517
        %1765 = vmatpush1.bf16.msra.mxu0 %v1516
        %1766 = vmatprep.subr.bf16.mxu0 %v1521
        %1767 = vmatpush1.bf16.msra.mxu0 %v1520
        %1768 = vmatprep.subr.bf16.mxu0 %v1525
        %1769 = vmatpush1.bf16.msra.mxu0 %v1524
        %1770 = vmatprep.subr.bf16.mxu0 %v1529
        %1771 = vmatpush1.bf16.msra.mxu0 %v1528
        %1772 = vmatprep.subr.bf16.mxu0 %v1533
        %1773 = vmatpush1.bf16.msra.mxu0 %v1532
        %1774 = vmatprep.subr.bf16.mxu0 %v1537
        %1775 = vmatpush1.bf16.msra.mxu0 %v1536
        %1776 = vmatprep.subr.bf16.mxu0 %v1541
        %1777 = vmatpush1.bf16.msra.mxu0 %v1540
        %1778 = vmatprep.subr.bf16.mxu0 %v1545
        %1779 = vmatpush1.bf16.msra.mxu0 %v1544
        %1780 = vmatprep.subr.bf16.mxu0 %v1549
        %1781 = vmatpush1.bf16.msra.mxu0 %v1548
        %1782 = vmatprep.subr.bf16.mxu0 %v1553
        %1783 = vmatpush1.bf16.msra.mxu0 %v1552
        %1784 = vmatprep.subr.bf16.mxu0 %v1557
        %1785 = vmatpush1.bf16.msra.mxu0 %v1556
        %1786 = vmatprep.subr.bf16.mxu0 %v1561
        %1787 = vmatpush1.bf16.msra.mxu0 %v1560
        %1788 = vmatprep.mubr.bf16.mxu0 %v935
        %1789 = vmatmul.mubr.bf16.gmra.mrb[0].mxu0 %v934
        %v1790 = vpop.f32.mrb[0].mxu0
        %v1791 = vadd.f32 %v1099, %v1790
        %v1792 = vpop.f32.mrb[0].mxu0
        %v1793 = vadd.f32 %v1103, %v1792
        %v1794 = vpop.f32.mrb[0].mxu0
        %v1795 = vadd.f32 %v1099, %v1794
        %v1796 = vpop.f32.mrb[0].mxu0
        %v1797 = vadd.f32 %v1103, %v1796
        %1798 = vmatprep.mubr.bf16.mxu0 %v939
        %1799 = vmatmul.mubr.bf16.gmra.mrb[0].mxu0 %v938
        %v1800 = vpop.f32.mrb[0].mxu0
        %v1801 = vadd.f32 %v1099, %v1800
        %v1802 = vpop.f32.mrb[0].mxu0
        %v1803 = vadd.f32 %v1103, %v1802
        %v1804 = vpop.f32.mrb[0].mxu0
        %v1805 = vadd.f32 %v1099, %v1804
        %v1806 = vpop.f32.mrb[0].mxu0
        %v1807 = vadd.f32 %v1103, %v1806
        %1808 = vmatprep.mubr.bf16.mxu0 %v943
        %1809 = vmatmul.mubr.bf16.gmra.mrb[0].mxu0 %v942
        %v1810 = vpop.f32.mrb[0].mxu0
        %v1811 = vadd.f32 %v1099, %v1810
        %v1812 = vpop.f32.mrb[0].mxu0
        %v1813 = vadd.f32 %v1103, %v1812
        %v1814 = vpop.f32.mrb[0].mxu0
        %v1815 = vadd.f32 %v1099, %v1814
        %v1816 = vpop.f32.mrb[0].mxu0
        %v1817 = vadd.f32 %v1103, %v1816
        %1818 = vmatprep.mubr.bf16.mxu0 %v947
        %1819 = vmatmul.mubr.bf16.gmra.mrb[0].mxu0 %v946
        %v1820 = vpop.f32.mrb[0].mxu0
        %v1821 = vadd.f32 %v1099, %v1820
        %v1822 = vpop.f32.mrb[0].mxu0
        %v1823 = vadd.f32 %v1103, %v1822
        %v1824 = vpop.f32.mrb[0].mxu0
        %v1825 = vadd.f32 %v1099, %v1824
        %v1826 = vpop.f32.mrb[0].mxu0
        %v1827 = vadd.f32 %v1103, %v1826
        %1828 = vmatprep.mubr.bf16.mxu0 %v951
        %1829 = vmatmul.mubr.bf16.gmra.mrb[0].mxu0 %v950
        %v1830 = vpop.f32.mrb[0].mxu0
        %v1831 = vadd.f32 %v1099, %v1830
        %v1832 = vpop.f32.mrb[0].mxu0
        %v1833 = vadd.f32 %v1103, %v1832
        %v1834 = vpop.f32.mrb[0].mxu0
        %v1835 = vadd.f32 %v1099, %v1834
        %v1836 = vpop.f32.mrb[0].mxu0
        %v1837 = vadd.f32 %v1103, %v1836
        %1838 = vmatprep.mubr.bf16.mxu0 %v955
        %1839 = vmatmul.mubr.bf16.gmra.mrb[0].mxu0 %v954
        %v1840 = vpop.f32.mrb[0].mxu0
        %v1841 = vadd.f32 %v1099, %v1840
        %v1842 = vpop.f32.mrb[0].mxu0
        %v1843 = vadd.f32 %v1103, %v1842
        %v1844 = vpop.f32.mrb[0].mxu0
        %v1845 = vadd.f32 %v1099, %v1844
        %v1846 = vpop.f32.mrb[0].mxu0
        %v1847 = vadd.f32 %v1103, %v1846
        %1848 = vmatprep.mubr.bf16.mxu0 %v959
        %1849 = vmatmul.mubr.bf16.gmra.mrb[0].mxu0 %v958
        %v1850 = vpop.f32.mrb[0].mxu0
        %v1851 = vadd.f32 %v1099, %v1850
        %v1852 = vpop.f32.mrb[0].mxu0
        %v1853 = vadd.f32 %v1103, %v1852
        %v1854 = vpop.f32.mrb[0].mxu0
        %v1855 = vadd.f32 %v1099, %v1854
        %v1856 = vpop.f32.mrb[0].mxu0
        %v1857 = vadd.f32 %v1103, %v1856
        %1858 = vmatprep.mubr.bf16.mxu0 %v963
        %1859 = vmatmul.mubr.bf16.gmra.mrb[0].mxu0 %v962
        %v1860 = vpop.f32.mrb[0].mxu0
        %v1861 = vadd.f32 %v1099, %v1860
        %v1862 = vpop.f32.mrb[0].mxu0
        %v1863 = vadd.f32 %v1103, %v1862
        %v1864 = vpop.f32.mrb[0].mxu0
        %v1865 = vadd.f32 %v1099, %v1864
        %v1866 = vpop.f32.mrb[0].mxu0
        %v1867 = vadd.f32 %v1103, %v1866
        %1868 = vdwg.mxu0
        %1869 = vmatprep.subr.bf16.mxu0 %v1565
        %1870 = vmatpush1.bf16.msra.mxu0 %v1564
        %1871 = vmatprep.subr.bf16.mxu0 %v1569
        %1872 = vmatpush1.bf16.msra.mxu0 %v1568
        %1873 = vmatprep.subr.bf16.mxu0 %v1573
        %1874 = vmatpush1.bf16.msra.mxu0 %v1572
        %1875 = vmatprep.subr.bf16.mxu0 %v1577
        %1876 = vmatpush1.bf16.msra.mxu0 %v1576
        %1877 = vmatprep.subr.bf16.mxu0 %v1581
        %1878 = vmatpush1.bf16.msra.mxu0 %v1580
        %1879 = vmatprep.subr.bf16.mxu0 %v1585
        %1880 = vmatpush1.bf16.msra.mxu0 %v1584
        %1881 = vmatprep.subr.bf16.mxu0 %v1589
        %1882 = vmatpush1.bf16.msra.mxu0 %v1588
        %1883 = vmatprep.subr.bf16.mxu0 %v1593
        %1884 = vmatpush1.bf16.msra.mxu0 %v1592
        %1885 = vmatprep.subr.bf16.mxu0 %v1597
        %1886 = vmatpush1.bf16.msra.mxu0 %v1596
        %1887 = vmatprep.subr.bf16.mxu0 %v1601
        %1888 = vmatpush1.bf16.msra.mxu0 %v1600
        %1889 = vmatprep.subr.bf16.mxu0 %v1605
        %1890 = vmatpush1.bf16.msra.mxu0 %v1604
        %1891 = vmatprep.subr.bf16.mxu0 %v1609
        %1892 = vmatpush1.bf16.msra.mxu0 %v1608
        %1893 = vmatprep.subr.bf16.mxu0 %v1613
        %1894 = vmatpush1.bf16.msra.mxu0 %v1612
        %1895 = vmatprep.subr.bf16.mxu0 %v1617
        %1896 = vmatpush1.bf16.msra.mxu0 %v1616
        %1897 = vmatprep.subr.bf16.mxu0 %v1621
        %1898 = vmatpush1.bf16.msra.mxu0 %v1620
        %1899 = vmatprep.subr.bf16.mxu0 %v1625
        %1900 = vmatpush1.bf16.msra.mxu0 %v1624
        %1901 = vmatprep.mubr.bf16.mxu0 %v937
        %1902 = vmatmul.mubr.bf16.gmra.mrb[0].mxu0 %v936
        %v1903 = vpop.f32.mrb[0].mxu0
        %v1904 = vadd.f32 %v1791, %v1903
        %v1905 = vpop.f32.mrb[0].mxu0
        %v1906 = vadd.f32 %v1793, %v1905
        %v1907 = vpop.f32.mrb[0].mxu0
        %v1908 = vadd.f32 %v1795, %v1907
        %v1909 = vpop.f32.mrb[0].mxu0
        %v1910 = vadd.f32 %v1797, %v1909
        %1911 = vmatprep.mubr.bf16.mxu0 %v941
        %1912 = vmatmul.mubr.bf16.gmra.mrb[0].mxu0 %v940
        %v1913 = vpop.f32.mrb[0].mxu0
        %v1914 = vadd.f32 %v1801, %v1913
        %v1915 = vpop.f32.mrb[0].mxu0
        %v1916 = vadd.f32 %v1803, %v1915
        %v1917 = vpop.f32.mrb[0].mxu0
        %v1918 = vadd.f32 %v1805, %v1917
        %v1919 = vpop.f32.mrb[0].mxu0
        %v1920 = vadd.f32 %v1807, %v1919
        %1921 = vmatprep.mubr.bf16.mxu0 %v945
        %1922 = vmatmul.mubr.bf16.gmra.mrb[0].mxu0 %v944
        %v1923 = vpop.f32.mrb[0].mxu0
        %v1924 = vadd.f32 %v1811, %v1923
        %v1925 = vpop.f32.mrb[0].mxu0
        %v1926 = vadd.f32 %v1813, %v1925
        %v1927 = vpop.f32.mrb[0].mxu0
        %v1928 = vadd.f32 %v1815, %v1927
        %v1929 = vpop.f32.mrb[0].mxu0
        %v1930 = vadd.f32 %v1817, %v1929
        %1931 = vmatprep.mubr.bf16.mxu0 %v949
        %1932 = vmatmul.mubr.bf16.gmra.mrb[0].mxu0 %v948
        %v1933 = vpop.f32.mrb[0].mxu0
        %v1934 = vadd.f32 %v1821, %v1933
        %v1935 = vpop.f32.mrb[0].mxu0
        %v1936 = vadd.f32 %v1823, %v1935
        %v1937 = vpop.f32.mrb[0].mxu0
        %v1938 = vadd.f32 %v1825, %v1937
        %v1939 = vpop.f32.mrb[0].mxu0
        %v1940 = vadd.f32 %v1827, %v1939
        %1941 = vmatprep.mubr.bf16.mxu0 %v953
        %1942 = vmatmul.mubr.bf16.gmra.mrb[0].mxu0 %v952
        %v1943 = vpop.f32.mrb[0].mxu0
        %v1944 = vadd.f32 %v1831, %v1943
        %v1945 = vpop.f32.mrb[0].mxu0
        %v1946 = vadd.f32 %v1833, %v1945
        %v1947 = vpop.f32.mrb[0].mxu0
        %v1948 = vadd.f32 %v1835, %v1947
        %v1949 = vpop.f32.mrb[0].mxu0
        %v1950 = vadd.f32 %v1837, %v1949
        %1951 = vmatprep.mubr.bf16.mxu0 %v957
        %1952 = vmatmul.mubr.bf16.gmra.mrb[0].mxu0 %v956
        %v1953 = vpop.f32.mrb[0].mxu0
        %v1954 = vadd.f32 %v1841, %v1953
        %v1955 = vpop.f32.mrb[0].mxu0
        %v1956 = vadd.f32 %v1843, %v1955
        %v1957 = vpop.f32.mrb[0].mxu0
        %v1958 = vadd.f32 %v1845, %v1957
        %v1959 = vpop.f32.mrb[0].mxu0
        %v1960 = vadd.f32 %v1847, %v1959
        %1961 = vmatprep.mubr.bf16.mxu0 %v961
        %1962 = vmatmul.mubr.bf16.gmra.mrb[0].mxu0 %v960
        %v1963 = vpop.f32.mrb[0].mxu0
        %v1964 = vadd.f32 %v1851, %v1963
        %v1965 = vpop.f32.mrb[0].mxu0
        %v1966 = vadd.f32 %v1853, %v1965
        %v1967 = vpop.f32.mrb[0].mxu0
        %v1968 = vadd.f32 %v1855, %v1967
        %v1969 = vpop.f32.mrb[0].mxu0
        %v1970 = vadd.f32 %v1857, %v1969
        %1971 = vmatprep.mubr.bf16.mxu0 %v965
        %1972 = vmatmul.mubr.bf16.gmra.mrb[0].mxu0 %v964
        %v1973 = vpop.f32.mrb[0].mxu0
        %v1974 = vadd.f32 %v1861, %v1973
        %v1975 = vpop.f32.mrb[0].mxu0
        %v1976 = vadd.f32 %v1863, %v1975
        %v1977 = vpop.f32.mrb[0].mxu0
        %v1978 = vadd.f32 %v1865, %v1977
        %v1979 = vpop.f32.mrb[0].mxu0
        %v1980 = vadd.f32 %v1867, %v1979
        %1981 = vdwg.mxu0
        %1982 = vmatprep.subr.bf16.mxu0 %v1503
        %1983 = vmatpush1.bf16.msra.mxu0 %v1502
        %1984 = vmatprep.subr.bf16.mxu0 %v1507
        %1985 = vmatpush1.bf16.msra.mxu0 %v1506
        %1986 = vmatprep.subr.bf16.mxu0 %v1511
        %1987 = vmatpush1.bf16.msra.mxu0 %v1510
        %1988 = vmatprep.subr.bf16.mxu0 %v1515
        %1989 = vmatpush1.bf16.msra.mxu0 %v1514
        %1990 = vmatprep.subr.bf16.mxu0 %v1519
        %1991 = vmatpush1.bf16.msra.mxu0 %v1518
        %1992 = vmatprep.subr.bf16.mxu0 %v1523
        %1993 = vmatpush1.bf16.msra.mxu0 %v1522
        %1994 = vmatprep.subr.bf16.mxu0 %v1527
        %1995 = vmatpush1.bf16.msra.mxu0 %v1526
        %1996 = vmatprep.subr.bf16.mxu0 %v1531
        %1997 = vmatpush1.bf16.msra.mxu0 %v1530
        %1998 = vmatprep.subr.bf16.mxu0 %v1535
        %1999 = vmatpush1.bf16.msra.mxu0 %v1534
        %2000 = vmatprep.subr.bf16.mxu0 %v1539
        %2001 = vmatpush1.bf16.msra.mxu0 %v1538
        %2002 = vmatprep.subr.bf16.mxu0 %v1543
        %2003 = vmatpush1.bf16.msra.mxu0 %v1542
        %2004 = vmatprep.subr.bf16.mxu0 %v1547
        %2005 = vmatpush1.bf16.msra.mxu0 %v1546
        %2006 = vmatprep.subr.bf16.mxu0 %v1551
        %2007 = vmatpush1.bf16.msra.mxu0 %v1550
        %2008 = vmatprep.subr.bf16.mxu0 %v1555
        %2009 = vmatpush1.bf16.msra.mxu0 %v1554
        %2010 = vmatprep.subr.bf16.mxu0 %v1559
        %2011 = vmatpush1.bf16.msra.mxu0 %v1558
        %2012 = vmatprep.subr.bf16.mxu0 %v1563
        %2013 = vmatpush1.bf16.msra.mxu0 %v1562
        %2014 = vmatprep.mubr.bf16.mxu0 %v935
        %2015 = vmatmul.mubr.bf16.gmra.mrb[0].mxu0 %v934
        %v2016 = vpop.f32.mrb[0].mxu0
        %v2017 = vadd.f32 %v1107, %v2016
        %v2018 = vpop.f32.mrb[0].mxu0
        %v2019 = vadd.f32 %v1111, %v2018
        %v2020 = vpop.f32.mrb[0].mxu0
        %v2021 = vadd.f32 %v1107, %v2020
        %v2022 = vpop.f32.mrb[0].mxu0
        %v2023 = vadd.f32 %v1111, %v2022
        %2024 = vmatprep.mubr.bf16.mxu0 %v939
        %2025 = vmatmul.mubr.bf16.gmra.mrb[0].mxu0 %v938
        %v2026 = vpop.f32.mrb[0].mxu0
        %v2027 = vadd.f32 %v1107, %v2026
        %v2028 = vpop.f32.mrb[0].mxu0
        %v2029 = vadd.f32 %v1111, %v2028
        %v2030 = vpop.f32.mrb[0].mxu0
        %v2031 = vadd.f32 %v1107, %v2030
        %v2032 = vpop.f32.mrb[0].mxu0
        %v2033 = vadd.f32 %v1111, %v2032
        %2034 = vmatprep.mubr.bf16.mxu0 %v943
        %2035 = vmatmul.mubr.bf16.gmra.mrb[0].mxu0 %v942
        %v2036 = vpop.f32.mrb[0].mxu0
        %v2037 = vadd.f32 %v1107, %v2036
        %v2038 = vpop.f32.mrb[0].mxu0
        %v2039 = vadd.f32 %v1111, %v2038
        %v2040 = vpop.f32.mrb[0].mxu0
        %v2041 = vadd.f32 %v1107, %v2040
        %v2042 = vpop.f32.mrb[0].mxu0
        %v2043 = vadd.f32 %v1111, %v2042
        %2044 = vmatprep.mubr.bf16.mxu0 %v947
        %2045 = vmatmul.mubr.bf16.gmra.mrb[0].mxu0 %v946
        %v2046 = vpop.f32.mrb[0].mxu0
        %v2047 = vadd.f32 %v1107, %v2046
        %v2048 = vpop.f32.mrb[0].mxu0
        %v2049 = vadd.f32 %v1111, %v2048
        %v2050 = vpop.f32.mrb[0].mxu0
        %v2051 = vadd.f32 %v1107, %v2050
        %v2052 = vpop.f32.mrb[0].mxu0
        %v2053 = vadd.f32 %v1111, %v2052
        %2054 = vmatprep.mubr.bf16.mxu0 %v951
        %2055 = vmatmul.mubr.bf16.gmra.mrb[0].mxu0 %v950
        %v2056 = vpop.f32.mrb[0].mxu0
        %v2057 = vadd.f32 %v1107, %v2056
        %v2058 = vpop.f32.mrb[0].mxu0
        %v2059 = vadd.f32 %v1111, %v2058
        %v2060 = vpop.f32.mrb[0].mxu0
        %v2061 = vadd.f32 %v1107, %v2060
        %v2062 = vpop.f32.mrb[0].mxu0
        %v2063 = vadd.f32 %v1111, %v2062
        %2064 = vmatprep.mubr.bf16.mxu0 %v955
        %2065 = vmatmul.mubr.bf16.gmra.mrb[0].mxu0 %v954
        %v2066 = vpop.f32.mrb[0].mxu0
        %v2067 = vadd.f32 %v1107, %v2066
        %v2068 = vpop.f32.mrb[0].mxu0
        %v2069 = vadd.f32 %v1111, %v2068
        %v2070 = vpop.f32.mrb[0].mxu0
        %v2071 = vadd.f32 %v1107, %v2070
        %v2072 = vpop.f32.mrb[0].mxu0
        %v2073 = vadd.f32 %v1111, %v2072
        %2074 = vmatprep.mubr.bf16.mxu0 %v959
        %2075 = vmatmul.mubr.bf16.gmra.mrb[0].mxu0 %v958
        %v2076 = vpop.f32.mrb[0].mxu0
        %v2077 = vadd.f32 %v1107, %v2076
        %v2078 = vpop.f32.mrb[0].mxu0
        %v2079 = vadd.f32 %v1111, %v2078
        %v2080 = vpop.f32.mrb[0].mxu0
        %v2081 = vadd.f32 %v1107, %v2080
        %v2082 = vpop.f32.mrb[0].mxu0
        %v2083 = vadd.f32 %v1111, %v2082
        %2084 = vmatprep.mubr.bf16.mxu0 %v963
        %2085 = vmatmul.mubr.bf16.gmra.mrb[0].mxu0 %v962
        %v2086 = vpop.f32.mrb[0].mxu0
        %v2087 = vadd.f32 %v1107, %v2086
        %v2088 = vpop.f32.mrb[0].mxu0
        %v2089 = vadd.f32 %v1111, %v2088
        %v2090 = vpop.f32.mrb[0].mxu0
        %v2091 = vadd.f32 %v1107, %v2090
        %v2092 = vpop.f32.mrb[0].mxu0
        %v2093 = vadd.f32 %v1111, %v2092
        %2094 = vdwg.mxu0
        %2095 = vmatprep.subr.bf16.mxu0 %v1567
        %2096 = vmatpush1.bf16.msra.mxu0 %v1566
        %2097 = vmatprep.subr.bf16.mxu0 %v1571
        %2098 = vmatpush1.bf16.msra.mxu0 %v1570
        %2099 = vmatprep.subr.bf16.mxu0 %v1575
        %2100 = vmatpush1.bf16.msra.mxu0 %v1574
        %2101 = vmatprep.subr.bf16.mxu0 %v1579
        %2102 = vmatpush1.bf16.msra.mxu0 %v1578
        %2103 = vmatprep.subr.bf16.mxu0 %v1583
        %2104 = vmatpush1.bf16.msra.mxu0 %v1582
        %2105 = vmatprep.subr.bf16.mxu0 %v1587
        %2106 = vmatpush1.bf16.msra.mxu0 %v1586
        %2107 = vmatprep.subr.bf16.mxu0 %v1591
        %2108 = vmatpush1.bf16.msra.mxu0 %v1590
        %2109 = vmatprep.subr.bf16.mxu0 %v1595
        %2110 = vmatpush1.bf16.msra.mxu0 %v1594
        %2111 = vmatprep.subr.bf16.mxu0 %v1599
        %2112 = vmatpush1.bf16.msra.mxu0 %v1598
        %2113 = vmatprep.subr.bf16.mxu0 %v1603
        %2114 = vmatpush1.bf16.msra.mxu0 %v1602
        %2115 = vmatprep.subr.bf16.mxu0 %v1607
        %2116 = vmatpush1.bf16.msra.mxu0 %v1606
        %2117 = vmatprep.subr.bf16.mxu0 %v1611
        %2118 = vmatpush1.bf16.msra.mxu0 %v1610
        %2119 = vmatprep.subr.bf16.mxu0 %v1615
        %2120 = vmatpush1.bf16.msra.mxu0 %v1614
        %2121 = vmatprep.subr.bf16.mxu0 %v1619
        %2122 = vmatpush1.bf16.msra.mxu0 %v1618
        %2123 = vmatprep.subr.bf16.mxu0 %v1623
        %2124 = vmatpush1.bf16.msra.mxu0 %v1622
        %2125 = vmatprep.subr.bf16.mxu0 %v1627
        %2126 = vmatpush1.bf16.msra.mxu0 %v1626
        %2127 = vmatprep.mubr.bf16.mxu0 %v937
        %2128 = vmatmul.mubr.bf16.gmra.mrb[0].mxu0 %v936
        %v2129 = vpop.f32.mrb[0].mxu0
        %v2130 = vadd.f32 %v2017, %v2129
        %v2131 = vpop.f32.mrb[0].mxu0
        %v2132 = vadd.f32 %v2019, %v2131
        %v2133 = vpop.f32.mrb[0].mxu0
        %v2134 = vadd.f32 %v2021, %v2133
        %v2135 = vpop.f32.mrb[0].mxu0
        %v2136 = vadd.f32 %v2023, %v2135
        %2137 = vmatprep.mubr.bf16.mxu0 %v941
        %2138 = vmatmul.mubr.bf16.gmra.mrb[0].mxu0 %v940
        %v2139 = vpop.f32.mrb[0].mxu0
        %v2140 = vadd.f32 %v2027, %v2139
        %v2141 = vpop.f32.mrb[0].mxu0
        %v2142 = vadd.f32 %v2029, %v2141
        %v2143 = vpop.f32.mrb[0].mxu0
        %v2144 = vadd.f32 %v2031, %v2143
        %v2145 = vpop.f32.mrb[0].mxu0
        %v2146 = vadd.f32 %v2033, %v2145
        %2147 = vmatprep.mubr.bf16.mxu0 %v945
        %2148 = vmatmul.mubr.bf16.gmra.mrb[0].mxu0 %v944
        %v2149 = vpop.f32.mrb[0].mxu0
        %v2150 = vadd.f32 %v2037, %v2149
        %v2151 = vpop.f32.mrb[0].mxu0
        %v2152 = vadd.f32 %v2039, %v2151
        %v2153 = vpop.f32.mrb[0].mxu0
        %v2154 = vadd.f32 %v2041, %v2153
        %v2155 = vpop.f32.mrb[0].mxu0
        %v2156 = vadd.f32 %v2043, %v2155
        %2157 = vmatprep.mubr.bf16.mxu0 %v949
        %2158 = vmatmul.mubr.bf16.gmra.mrb[0].mxu0 %v948
        %v2159 = vpop.f32.mrb[0].mxu0
        %v2160 = vadd.f32 %v2047, %v2159
        %v2161 = vpop.f32.mrb[0].mxu0
        %v2162 = vadd.f32 %v2049, %v2161
        %v2163 = vpop.f32.mrb[0].mxu0
        %v2164 = vadd.f32 %v2051, %v2163
        %v2165 = vpop.f32.mrb[0].mxu0
        %v2166 = vadd.f32 %v2053, %v2165
        %2167 = vmatprep.mubr.bf16.mxu0 %v953
        %2168 = vmatmul.mubr.bf16.gmra.mrb[0].mxu0 %v952
        %v2169 = vpop.f32.mrb[0].mxu0
        %v2170 = vadd.f32 %v2057, %v2169
        %v2171 = vpop.f32.mrb[0].mxu0
        %v2172 = vadd.f32 %v2059, %v2171
        %v2173 = vpop.f32.mrb[0].mxu0
        %v2174 = vadd.f32 %v2061, %v2173
        %v2175 = vpop.f32.mrb[0].mxu0
        %v2176 = vadd.f32 %v2063, %v2175
        %2177 = vmatprep.mubr.bf16.mxu0 %v957
        %2178 = vmatmul.mubr.bf16.gmra.mrb[0].mxu0 %v956
        %v2179 = vpop.f32.mrb[0].mxu0
        %v2180 = vadd.f32 %v2067, %v2179
        %v2181 = vpop.f32.mrb[0].mxu0
        %v2182 = vadd.f32 %v2069, %v2181
        %v2183 = vpop.f32.mrb[0].mxu0
        %v2184 = vadd.f32 %v2071, %v2183
        %v2185 = vpop.f32.mrb[0].mxu0
        %v2186 = vadd.f32 %v2073, %v2185
        %2187 = vmatprep.mubr.bf16.mxu0 %v961
        %2188 = vmatmul.mubr.bf16.gmra.mrb[0].mxu0 %v960
        %v2189 = vpop.f32.mrb[0].mxu0
        %v2190 = vadd.f32 %v2077, %v2189
        %v2191 = vpop.f32.mrb[0].mxu0
        %v2192 = vadd.f32 %v2079, %v2191
        %v2193 = vpop.f32.mrb[0].mxu0
        %v2194 = vadd.f32 %v2081, %v2193
        %v2195 = vpop.f32.mrb[0].mxu0
        %v2196 = vadd.f32 %v2083, %v2195
        %2197 = vmatprep.mubr.bf16.mxu0 %v965
        %2198 = vmatmul.mubr.bf16.gmra.mrb[0].mxu0 %v964
        %v2199 = vpop.f32.mrb[0].mxu0
        %v2200 = vadd.f32 %v2087, %v2199
        %v2201 = vpop.f32.mrb[0].mxu0
        %v2202 = vadd.f32 %v2089, %v2201
        %v2203 = vpop.f32.mrb[0].mxu0
        %v2204 = vadd.f32 %v2091, %v2203
        %v2205 = vpop.f32.mrb[0].mxu0
        %v2206 = vadd.f32 %v2093, %v2205
        %2207 = vdwg.mxu0
        %vm2208 = vcmp.ge.f32.partialorder %v1904, 0.0
        %vm2209 = vcmp.ge.f32.partialorder %v1906, 0.0
        %vm2210 = vcmp.ge.f32.partialorder %v2130, 0.0
        %vm2211 = vcmp.ge.f32.partialorder %v2132, 0.0
        %vm2212 = vcmp.ge.f32.partialorder %v1908, 0.0
        %vm2213 = vcmp.ge.f32.partialorder %v1910, 0.0
        %vm2214 = vcmp.ge.f32.partialorder %v2134, 0.0
        %vm2215 = vcmp.ge.f32.partialorder %v2136, 0.0
        %vm2216 = vcmp.ge.f32.partialorder %v1914, 0.0
        %vm2217 = vcmp.ge.f32.partialorder %v1916, 0.0
        %vm2218 = vcmp.ge.f32.partialorder %v2140, 0.0
        %vm2219 = vcmp.ge.f32.partialorder %v2142, 0.0
        %vm2220 = vcmp.ge.f32.partialorder %v1918, 0.0
        %vm2221 = vcmp.ge.f32.partialorder %v1920, 0.0
        %vm2222 = vcmp.ge.f32.partialorder %v2144, 0.0
        %vm2223 = vcmp.ge.f32.partialorder %v2146, 0.0
        %vm2224 = vcmp.ge.f32.partialorder %v1924, 0.0
        %vm2225 = vcmp.ge.f32.partialorder %v1926, 0.0
        %vm2226 = vcmp.ge.f32.partialorder %v2150, 0.0
        %vm2227 = vcmp.ge.f32.partialorder %v2152, 0.0
        %vm2228 = vcmp.ge.f32.partialorder %v1928, 0.0
        %vm2229 = vcmp.ge.f32.partialorder %v1930, 0.0
        %vm2230 = vcmp.ge.f32.partialorder %v2154, 0.0
        %vm2231 = vcmp.ge.f32.partialorder %v2156, 0.0
        %vm2232 = vcmp.ge.f32.partialorder %v1934, 0.0
        %vm2233 = vcmp.ge.f32.partialorder %v1936, 0.0
        %vm2234 = vcmp.ge.f32.partialorder %v2160, 0.0
        %vm2235 = vcmp.ge.f32.partialorder %v2162, 0.0
        %vm2236 = vcmp.ge.f32.partialorder %v1938, 0.0
        %vm2237 = vcmp.ge.f32.partialorder %v1940, 0.0
        %vm2238 = vcmp.ge.f32.partialorder %v2164, 0.0
        %vm2239 = vcmp.ge.f32.partialorder %v2166, 0.0
        %vm2240 = vcmp.ge.f32.partialorder %v1944, 0.0
        %vm2241 = vcmp.ge.f32.partialorder %v1946, 0.0
        %vm2242 = vcmp.ge.f32.partialorder %v2170, 0.0
        %vm2243 = vcmp.ge.f32.partialorder %v2172, 0.0
        %vm2244 = vcmp.ge.f32.partialorder %v1948, 0.0
        %vm2245 = vcmp.ge.f32.partialorder %v1950, 0.0
        %vm2246 = vcmp.ge.f32.partialorder %v2174, 0.0
        %vm2247 = vcmp.ge.f32.partialorder %v2176, 0.0
        %vm2248 = vcmp.ge.f32.partialorder %v1954, 0.0
        %vm2249 = vcmp.ge.f32.partialorder %v1956, 0.0
        %vm2250 = vcmp.ge.f32.partialorder %v2180, 0.0
        %vm2251 = vcmp.ge.f32.partialorder %v2182, 0.0
        %vm2252 = vcmp.ge.f32.partialorder %v1958, 0.0
        %vm2253 = vcmp.ge.f32.partialorder %v1960, 0.0
        %vm2254 = vcmp.ge.f32.partialorder %v2184, 0.0
        %vm2255 = vcmp.ge.f32.partialorder %v2186, 0.0
        %vm2256 = vcmp.ge.f32.partialorder %v1964, 0.0
        %vm2257 = vcmp.ge.f32.partialorder %v1966, 0.0
        %vm2258 = vcmp.ge.f32.partialorder %v2190, 0.0
        %vm2259 = vcmp.ge.f32.partialorder %v2192, 0.0
        %vm2260 = vcmp.ge.f32.partialorder %v1968, 0.0
        %vm2261 = vcmp.ge.f32.partialorder %v1970, 0.0
        %vm2262 = vcmp.ge.f32.partialorder %v2194, 0.0
        %vm2263 = vcmp.ge.f32.partialorder %v2196, 0.0
        %vm2264 = vcmp.ge.f32.partialorder %v1974, 0.0
        %vm2265 = vcmp.ge.f32.partialorder %v1976, 0.0
        %vm2266 = vcmp.ge.f32.partialorder %v2200, 0.0
        %vm2267 = vcmp.ge.f32.partialorder %v2202, 0.0
        %vm2268 = vcmp.ge.f32.partialorder %v1978, 0.0
        %vm2269 = vcmp.ge.f32.partialorder %v1980, 0.0
        %vm2270 = vcmp.ge.f32.partialorder %v2204, 0.0
        %vm2271 = vcmp.ge.f32.partialorder %v2206, 0.0
        %v2272 = vmul.f32 %v1904, 0.2
        %v2273 = vmul.f32 %v1906, 0.2
        %v2274 = vmul.f32 %v2130, 0.2
        %v2275 = vmul.f32 %v2132, 0.2
        %v2276 = vmul.f32 %v1908, 0.2
        %v2277 = vmul.f32 %v1910, 0.2
        %v2278 = vmul.f32 %v2134, 0.2
        %v2279 = vmul.f32 %v2136, 0.2
        %v2280 = vmul.f32 %v1914, 0.2
        %v2281 = vmul.f32 %v1916, 0.2
        %v2282 = vmul.f32 %v2140, 0.2
        %v2283 = vmul.f32 %v2142, 0.2
        %v2284 = vmul.f32 %v1918, 0.2
        %v2285 = vmul.f32 %v1920, 0.2
        %v2286 = vmul.f32 %v2144, 0.2
        %v2287 = vmul.f32 %v2146, 0.2
        %v2288 = vmul.f32 %v1924, 0.2
        %v2289 = vmul.f32 %v1926, 0.2
        %v2290 = vmul.f32 %v2150, 0.2
        %v2291 = vmul.f32 %v2152, 0.2
        %v2292 = vmul.f32 %v1928, 0.2
        %v2293 = vmul.f32 %v1930, 0.2
        %v2294 = vmul.f32 %v2154, 0.2
        %v2295 = vmul.f32 %v2156, 0.2
        %v2296 = vmul.f32 %v1934, 0.2
        %v2297 = vmul.f32 %v1936, 0.2
        %v2298 = vmul.f32 %v2160, 0.2
        %v2299 = vmul.f32 %v2162, 0.2
        %v2300 = vmul.f32 %v1938, 0.2
        %v2301 = vmul.f32 %v1940, 0.2
        %v2302 = vmul.f32 %v2164, 0.2
        %v2303 = vmul.f32 %v2166, 0.2
        %v2304 = vmul.f32 %v1944, 0.2
        %v2305 = vmul.f32 %v1946, 0.2
        %v2306 = vmul.f32 %v2170, 0.2
        %v2307 = vmul.f32 %v2172, 0.2
        %v2308 = vmul.f32 %v1948, 0.2
        %v2309 = vmul.f32 %v1950, 0.2
        %v2310 = vmul.f32 %v2174, 0.2
        %v2311 = vmul.f32 %v2176, 0.2
        %v2312 = vmul.f32 %v1954, 0.2
        %v2313 = vmul.f32 %v1956, 0.2
        %v2314 = vmul.f32 %v2180, 0.2
        %v2315 = vmul.f32 %v2182, 0.2
        %v2316 = vmul.f32 %v1958, 0.2
        %v2317 = vmul.f32 %v1960, 0.2
        %v2318 = vmul.f32 %v2184, 0.2
        %v2319 = vmul.f32 %v2186, 0.2
        %v2320 = vmul.f32 %v1964, 0.2
        %v2321 = vmul.f32 %v1966, 0.2
        %v2322 = vmul.f32 %v2190, 0.2
        %v2323 = vmul.f32 %v2192, 0.2
        %v2324 = vmul.f32 %v1968, 0.2
        %v2325 = vmul.f32 %v1970, 0.2
        %v2326 = vmul.f32 %v2194, 0.2
        %v2327 = vmul.f32 %v2196, 0.2
        %v2328 = vmul.f32 %v1974, 0.2
        %v2329 = vmul.f32 %v1976, 0.2
        %v2330 = vmul.f32 %v2200, 0.2
        %v2331 = vmul.f32 %v2202, 0.2
        %v2332 = vmul.f32 %v1978, 0.2
        %v2333 = vmul.f32 %v1980, 0.2
        %v2334 = vmul.f32 %v2204, 0.2
        %v2335 = vmul.f32 %v2206, 0.2
        %v2336 = vsel %vm2208, %v1904, %v2272
        %v2337 = vsel %vm2209, %v1906, %v2273
        %v2338 = vsel %vm2210, %v2130, %v2274
        %v2339 = vsel %vm2211, %v2132, %v2275
        %v2340 = vsel %vm2212, %v1908, %v2276
        %v2341 = vsel %vm2213, %v1910, %v2277
        %v2342 = vsel %vm2214, %v2134, %v2278
        %v2343 = vsel %vm2215, %v2136, %v2279
        %v2344 = vsel %vm2216, %v1914, %v2280
        %v2345 = vsel %vm2217, %v1916, %v2281
        %v2346 = vsel %vm2218, %v2140, %v2282
        %v2347 = vsel %vm2219, %v2142, %v2283
        %v2348 = vsel %vm2220, %v1918, %v2284
        %v2349 = vsel %vm2221, %v1920, %v2285
        %v2350 = vsel %vm2222, %v2144, %v2286
        %v2351 = vsel %vm2223, %v2146, %v2287
        %v2352 = vsel %vm2224, %v1924, %v2288
        %v2353 = vsel %vm2225, %v1926, %v2289
        %v2354 = vsel %vm2226, %v2150, %v2290
        %v2355 = vsel %vm2227, %v2152, %v2291
        %v2356 = vsel %vm2228, %v1928, %v2292
        %v2357 = vsel %vm2229, %v1930, %v2293
        %v2358 = vsel %vm2230, %v2154, %v2294
        %v2359 = vsel %vm2231, %v2156, %v2295
        %v2360 = vsel %vm2232, %v1934, %v2296
        %v2361 = vsel %vm2233, %v1936, %v2297
        %v2362 = vsel %vm2234, %v2160, %v2298
        %v2363 = vsel %vm2235, %v2162, %v2299
        %v2364 = vsel %vm2236, %v1938, %v2300
        %v2365 = vsel %vm2237, %v1940, %v2301
        %v2366 = vsel %vm2238, %v2164, %v2302
        %v2367 = vsel %vm2239, %v2166, %v2303
        %v2368 = vsel %vm2240, %v1944, %v2304
        %v2369 = vsel %vm2241, %v1946, %v2305
        %v2370 = vsel %vm2242, %v2170, %v2306
        %v2371 = vsel %vm2243, %v2172, %v2307
        %v2372 = vsel %vm2244, %v1948, %v2308
        %v2373 = vsel %vm2245, %v1950, %v2309
        %v2374 = vsel %vm2246, %v2174, %v2310
        %v2375 = vsel %vm2247, %v2176, %v2311
        %v2376 = vsel %vm2248, %v1954, %v2312
        %v2377 = vsel %vm2249, %v1956, %v2313
        %v2378 = vsel %vm2250, %v2180, %v2314
        %v2379 = vsel %vm2251, %v2182, %v2315
        %v2380 = vsel %vm2252, %v1958, %v2316
        %v2381 = vsel %vm2253, %v1960, %v2317
        %v2382 = vsel %vm2254, %v2184, %v2318
        %v2383 = vsel %vm2255, %v2186, %v2319
        %v2384 = vsel %vm2256, %v1964, %v2320
        %v2385 = vsel %vm2257, %v1966, %v2321
        %v2386 = vsel %vm2258, %v2190, %v2322
        %v2387 = vsel %vm2259, %v2192, %v2323
        %v2388 = vsel %vm2260, %v1968, %v2324
        %v2389 = vsel %vm2261, %v1970, %v2325
        %v2390 = vsel %vm2262, %v2194, %v2326
        %v2391 = vsel %vm2263, %v2196, %v2327
        %v2392 = vsel %vm2264, %v1974, %v2328
        %v2393 = vsel %vm2265, %v1976, %v2329
        %v2394 = vsel %vm2266, %v2200, %v2330
        %v2395 = vsel %vm2267, %v2202, %v2331
        %v2396 = vsel %vm2268, %v1978, %v2332
        %v2397 = vsel %vm2269, %v1980, %v2333
        %v2398 = vsel %vm2270, %v2204, %v2334
        %v2399 = vsel %vm2271, %v2206, %v2335
        %v2400 = vpack.c.bf16 %v2340, %v2336
        %v2401 = vpack.c.bf16 %v2341, %v2337
        %v2402 = vpack.c.bf16 %v2342, %v2338
        %v2403 = vpack.c.bf16 %v2343, %v2339
        %v2404 = vpack.c.bf16 %v2348, %v2344
        %v2405 = vpack.c.bf16 %v2349, %v2345
        %v2406 = vpack.c.bf16 %v2350, %v2346
        %v2407 = vpack.c.bf16 %v2351, %v2347
        %v2408 = vpack.c.bf16 %v2356, %v2352
        %v2409 = vpack.c.bf16 %v2357, %v2353
        %v2410 = vpack.c.bf16 %v2358, %v2354
        %v2411 = vpack.c.bf16 %v2359, %v2355
        %v2412 = vpack.c.bf16 %v2364, %v2360
        %v2413 = vpack.c.bf16 %v2365, %v2361
        %v2414 = vpack.c.bf16 %v2366, %v2362
        %v2415 = vpack.c.bf16 %v2367, %v2363
        %v2416 = vpack.c.bf16 %v2372, %v2368
        %v2417 = vpack.c.bf16 %v2373, %v2369
        %v2418 = vpack.c.bf16 %v2374, %v2370
        %v2419 = vpack.c.bf16 %v2375, %v2371
        %v2420 = vpack.c.bf16 %v2380, %v2376
        %v2421 = vpack.c.bf16 %v2381, %v2377
        %v2422 = vpack.c.bf16 %v2382, %v2378
        %v2423 = vpack.c.bf16 %v2383, %v2379
        %v2424 = vpack.c.bf16 %v2388, %v2384
        %v2425 = vpack.c.bf16 %v2389, %v2385
        %v2426 = vpack.c.bf16 %v2390, %v2386
        %v2427 = vpack.c.bf16 %v2391, %v2387
        %v2428 = vpack.c.bf16 %v2396, %v2392
        %v2429 = vpack.c.bf16 %v2397, %v2393
        %v2430 = vpack.c.bf16 %v2398, %v2394
        %v2431 = vpack.c.bf16 %v2399, %v2395
        %v2432 = vld [vmem:[#allocation6] sm:$0xff]
        %v2433 = vld [vmem:[#allocation6 + $0x8] sm:$0xff]
        %v2434 = vld [vmem:[#allocation6 + $0x10] sm:$0xff]
        %v2435 = vld [vmem:[#allocation6 + $0x18] sm:$0xff]
        %v2436 = vld [vmem:[#allocation6 + $0x20] sm:$0xff]
        %v2437 = vld [vmem:[#allocation6 + $0x28] sm:$0xff]
        %v2438 = vld [vmem:[#allocation6 + $0x30] sm:$0xff]
        %v2439 = vld [vmem:[#allocation6 + $0x38] sm:$0xff]
        %v2440 = vld [vmem:[#allocation6 + $0x40] sm:$0xff]
        %v2441 = vld [vmem:[#allocation6 + $0x48] sm:$0xff]
        %v2442 = vld [vmem:[#allocation6 + $0x50] sm:$0xff]
        %v2443 = vld [vmem:[#allocation6 + $0x58] sm:$0xff]
        %v2444 = vld [vmem:[#allocation6 + $0x60] sm:$0xff]
        %v2445 = vld [vmem:[#allocation6 + $0x68] sm:$0xff]
        %v2446 = vld [vmem:[#allocation6 + $0x70] sm:$0xff]
        %v2447 = vld [vmem:[#allocation6 + $0x78] sm:$0xff]
        %v2448 = vld [vmem:[#allocation6 + $0x80] sm:$0xff]
        %v2449 = vld [vmem:[#allocation6 + $0x88] sm:$0xff]
        %v2450 = vld [vmem:[#allocation6 + $0x90] sm:$0xff]
        %v2451 = vld [vmem:[#allocation6 + $0x98] sm:$0xff]
        %v2452 = vld [vmem:[#allocation6 + $0xa0] sm:$0xff]
        %v2453 = vld [vmem:[#allocation6 + $0xa8] sm:$0xff]
        %v2454 = vld [vmem:[#allocation6 + $0xb0] sm:$0xff]
        %v2455 = vld [vmem:[#allocation6 + $0xb8] sm:$0xff]
        %v2456 = vld [vmem:[#allocation6 + $0xc0] sm:$0xff]
        %v2457 = vld [vmem:[#allocation6 + $0xc8] sm:$0xff]
        %v2458 = vld [vmem:[#allocation6 + $0xd0] sm:$0xff]
        %v2459 = vld [vmem:[#allocation6 + $0xd8] sm:$0xff]
        %v2460 = vld [vmem:[#allocation6 + $0xe0] sm:$0xff]
        %v2461 = vld [vmem:[#allocation6 + $0xe8] sm:$0xff]
        %v2462 = vld [vmem:[#allocation6 + $0xf0] sm:$0xff]
        %v2463 = vld [vmem:[#allocation6 + $0xf8] sm:$0xff]
        %v2464 = vld [vmem:[#allocation6 + $0x100] sm:$0xff]
        %v2465 = vld [vmem:[#allocation6 + $0x108] sm:$0xff]
        %v2466 = vld [vmem:[#allocation6 + $0x110] sm:$0xff]
        %v2467 = vld [vmem:[#allocation6 + $0x118] sm:$0xff]
        %v2468 = vld [vmem:[#allocation6 + $0x120] sm:$0xff]
        %v2469 = vld [vmem:[#allocation6 + $0x128] sm:$0xff]
        %v2470 = vld [vmem:[#allocation6 + $0x130] sm:$0xff]
        %v2471 = vld [vmem:[#allocation6 + $0x138] sm:$0xff]
        %v2472 = vld [vmem:[#allocation6 + $0x140] sm:$0xff]
        %v2473 = vld [vmem:[#allocation6 + $0x148] sm:$0xff]
        %v2474 = vld [vmem:[#allocation6 + $0x150] sm:$0xff]
        %v2475 = vld [vmem:[#allocation6 + $0x158] sm:$0xff]
        %v2476 = vld [vmem:[#allocation6 + $0x160] sm:$0xff]
        %v2477 = vld [vmem:[#allocation6 + $0x168] sm:$0xff]
        %v2478 = vld [vmem:[#allocation6 + $0x170] sm:$0xff]
        %v2479 = vld [vmem:[#allocation6 + $0x178] sm:$0xff]
        %v2480 = vld [vmem:[#allocation6 + $0x180] sm:$0xff]
        %v2481 = vld [vmem:[#allocation6 + $0x188] sm:$0xff]
        %v2482 = vld [vmem:[#allocation6 + $0x190] sm:$0xff]
        %v2483 = vld [vmem:[#allocation6 + $0x198] sm:$0xff]
        %v2484 = vld [vmem:[#allocation6 + $0x1a0] sm:$0xff]
        %v2485 = vld [vmem:[#allocation6 + $0x1a8] sm:$0xff]
        %v2486 = vld [vmem:[#allocation6 + $0x1b0] sm:$0xff]
        %v2487 = vld [vmem:[#allocation6 + $0x1b8] sm:$0xff]
        %v2488 = vld [vmem:[#allocation6 + $0x1c0] sm:$0xff]
        %v2489 = vld [vmem:[#allocation6 + $0x1c8] sm:$0xff]
        %v2490 = vld [vmem:[#allocation6 + $0x1d0] sm:$0xff]
        %v2491 = vld [vmem:[#allocation6 + $0x1d8] sm:$0xff]
        %v2492 = vld [vmem:[#allocation6 + $0x1e0] sm:$0xff]
        %v2493 = vld [vmem:[#allocation6 + $0x1e8] sm:$0xff]
        %v2494 = vld [vmem:[#allocation6 + $0x1f0] sm:$0xff]
        %v2495 = vld [vmem:[#allocation6 + $0x1f8] sm:$0xff]
        %v2496 = vld [vmem:[#allocation6 + $0x200] sm:$0xff]
        %v2497 = vld [vmem:[#allocation6 + $0x208] sm:$0xff]
        %v2498 = vld [vmem:[#allocation6 + $0x210] sm:$0xff]
        %v2499 = vld [vmem:[#allocation6 + $0x218] sm:$0xff]
        %v2500 = vld [vmem:[#allocation6 + $0x220] sm:$0xff]
        %v2501 = vld [vmem:[#allocation6 + $0x228] sm:$0xff]
        %v2502 = vld [vmem:[#allocation6 + $0x230] sm:$0xff]
        %v2503 = vld [vmem:[#allocation6 + $0x238] sm:$0xff]
        %v2504 = vld [vmem:[#allocation6 + $0x240] sm:$0xff]
        %v2505 = vld [vmem:[#allocation6 + $0x248] sm:$0xff]
        %v2506 = vld [vmem:[#allocation6 + $0x250] sm:$0xff]
        %v2507 = vld [vmem:[#allocation6 + $0x258] sm:$0xff]
        %v2508 = vld [vmem:[#allocation6 + $0x260] sm:$0xff]
        %v2509 = vld [vmem:[#allocation6 + $0x268] sm:$0xff]
        %v2510 = vld [vmem:[#allocation6 + $0x270] sm:$0xff]
        %v2511 = vld [vmem:[#allocation6 + $0x278] sm:$0xff]
        %v2512 = vld [vmem:[#allocation6 + $0x280] sm:$0xff]
        %v2513 = vld [vmem:[#allocation6 + $0x288] sm:$0xff]
        %v2514 = vld [vmem:[#allocation6 + $0x290] sm:$0xff]
        %v2515 = vld [vmem:[#allocation6 + $0x298] sm:$0xff]
        %v2516 = vld [vmem:[#allocation6 + $0x2a0] sm:$0xff]
        %v2517 = vld [vmem:[#allocation6 + $0x2a8] sm:$0xff]
        %v2518 = vld [vmem:[#allocation6 + $0x2b0] sm:$0xff]
        %v2519 = vld [vmem:[#allocation6 + $0x2b8] sm:$0xff]
        %v2520 = vld [vmem:[#allocation6 + $0x2c0] sm:$0xff]
        %v2521 = vld [vmem:[#allocation6 + $0x2c8] sm:$0xff]
        %v2522 = vld [vmem:[#allocation6 + $0x2d0] sm:$0xff]
        %v2523 = vld [vmem:[#allocation6 + $0x2d8] sm:$0xff]
        %v2524 = vld [vmem:[#allocation6 + $0x2e0] sm:$0xff]
        %v2525 = vld [vmem:[#allocation6 + $0x2e8] sm:$0xff]
        %v2526 = vld [vmem:[#allocation6 + $0x2f0] sm:$0xff]
        %v2527 = vld [vmem:[#allocation6 + $0x2f8] sm:$0xff]
        %v2528 = vld [vmem:[#allocation6 + $0x300] sm:$0xff]
        %v2529 = vld [vmem:[#allocation6 + $0x308] sm:$0xff]
        %v2530 = vld [vmem:[#allocation6 + $0x310] sm:$0xff]
        %v2531 = vld [vmem:[#allocation6 + $0x318] sm:$0xff]
        %v2532 = vld [vmem:[#allocation6 + $0x320] sm:$0xff]
        %v2533 = vld [vmem:[#allocation6 + $0x328] sm:$0xff]
        %v2534 = vld [vmem:[#allocation6 + $0x330] sm:$0xff]
        %v2535 = vld [vmem:[#allocation6 + $0x338] sm:$0xff]
        %v2536 = vld [vmem:[#allocation6 + $0x340] sm:$0xff]
        %v2537 = vld [vmem:[#allocation6 + $0x348] sm:$0xff]
        %v2538 = vld [vmem:[#allocation6 + $0x350] sm:$0xff]
        %v2539 = vld [vmem:[#allocation6 + $0x358] sm:$0xff]
        %v2540 = vld [vmem:[#allocation6 + $0x360] sm:$0xff]
        %v2541 = vld [vmem:[#allocation6 + $0x368] sm:$0xff]
        %v2542 = vld [vmem:[#allocation6 + $0x370] sm:$0xff]
        %v2543 = vld [vmem:[#allocation6 + $0x378] sm:$0xff]
        %v2544 = vld [vmem:[#allocation6 + $0x380] sm:$0xff]
        %v2545 = vld [vmem:[#allocation6 + $0x388] sm:$0xff]
        %v2546 = vld [vmem:[#allocation6 + $0x390] sm:$0xff]
        %v2547 = vld [vmem:[#allocation6 + $0x398] sm:$0xff]
        %v2548 = vld [vmem:[#allocation6 + $0x3a0] sm:$0xff]
        %v2549 = vld [vmem:[#allocation6 + $0x3a8] sm:$0xff]
        %v2550 = vld [vmem:[#allocation6 + $0x3b0] sm:$0xff]
        %v2551 = vld [vmem:[#allocation6 + $0x3b8] sm:$0xff]
        %v2552 = vld [vmem:[#allocation6 + $0x3c0] sm:$0xff]
        %v2553 = vld [vmem:[#allocation6 + $0x3c8] sm:$0xff]
        %v2554 = vld [vmem:[#allocation6 + $0x3d0] sm:$0xff]
        %v2555 = vld [vmem:[#allocation6 + $0x3d8] sm:$0xff]
        %v2556 = vld [vmem:[#allocation6 + $0x3e0] sm:$0xff]
        %v2557 = vld [vmem:[#allocation6 + $0x3e8] sm:$0xff]
        %v2558 = vld [vmem:[#allocation6 + $0x3f0] sm:$0xff]
        %v2559 = vld [vmem:[#allocation6 + $0x3f8] sm:$0xff]
        %v2560 = vld [vmem:[%s6] sm:$0xf]
        %v2562 = vlaneseq
        %v2563 = vshrl.u32 %v2562, 7
        %v2564 = vsub.s32 0, %v2563
        %v2565 = vrot.slane %v2560, %v2564
        %v2566 = vlaneseq
        %v2567 = vshrl.u32 %v2566, 7
        %v2568 = vsub.s32 1, %v2567
        %v2569 = vrot.slane %v2560, %v2568
        %v2570 = vlaneseq
        %v2571 = vshrl.u32 %v2570, 7
        %v2572 = vsub.s32 2, %v2571
        %v2573 = vrot.slane %v2560, %v2572
        %v2574 = vlaneseq
        %v2575 = vshrl.u32 %v2574, 7
        %v2576 = vsub.s32 3, %v2575
        %v2577 = vrot.slane %v2560, %v2576
        %v2710 = vunpack.c.l.b16 %v2432
        %v2711 = vunpack.c.h.b16 %v2432
        %v2712 = vunpack.c.l.b16 %v2433
        %v2713 = vunpack.c.h.b16 %v2433
        %v2714 = vunpack.c.l.b16 %v2434
        %v2715 = vunpack.c.h.b16 %v2434
        %v2716 = vunpack.c.l.b16 %v2435
        %v2717 = vunpack.c.h.b16 %v2435
        %v2718 = vunpack.c.l.b16 %v2436
        %v2719 = vunpack.c.h.b16 %v2436
        %v2720 = vunpack.c.l.b16 %v2437
        %v2721 = vunpack.c.h.b16 %v2437
        %v2722 = vunpack.c.l.b16 %v2438
        %v2723 = vunpack.c.h.b16 %v2438
        %v2724 = vunpack.c.l.b16 %v2439
        %v2725 = vunpack.c.h.b16 %v2439
        %v2726 = vunpack.c.l.b16 %v2440
        %v2727 = vunpack.c.h.b16 %v2440
        %v2728 = vunpack.c.l.b16 %v2441
        %v2729 = vunpack.c.h.b16 %v2441
        %v2730 = vunpack.c.l.b16 %v2442
        %v2731 = vunpack.c.h.b16 %v2442
        %v2732 = vunpack.c.l.b16 %v2443
        %v2733 = vunpack.c.h.b16 %v2443
        %v2734 = vunpack.c.l.b16 %v2444
        %v2735 = vunpack.c.h.b16 %v2444
        %v2736 = vunpack.c.l.b16 %v2445
        %v2737 = vunpack.c.h.b16 %v2445
        %v2738 = vunpack.c.l.b16 %v2446
        %v2739 = vunpack.c.h.b16 %v2446
        %v2740 = vunpack.c.l.b16 %v2447
        %v2741 = vunpack.c.h.b16 %v2447
        %v2742 = vunpack.c.l.b16 %v2448
        %v2743 = vunpack.c.h.b16 %v2448
        %v2744 = vunpack.c.l.b16 %v2449
        %v2745 = vunpack.c.h.b16 %v2449
        %v2746 = vunpack.c.l.b16 %v2450
        %v2747 = vunpack.c.h.b16 %v2450
        %v2748 = vunpack.c.l.b16 %v2451
        %v2749 = vunpack.c.h.b16 %v2451
        %v2750 = vunpack.c.l.b16 %v2452
        %v2751 = vunpack.c.h.b16 %v2452
        %v2752 = vunpack.c.l.b16 %v2453
        %v2753 = vunpack.c.h.b16 %v2453
        %v2754 = vunpack.c.l.b16 %v2454
        %v2755 = vunpack.c.h.b16 %v2454
        %v2756 = vunpack.c.l.b16 %v2455
        %v2757 = vunpack.c.h.b16 %v2455
        %v2758 = vunpack.c.l.b16 %v2456
        %v2759 = vunpack.c.h.b16 %v2456
        %v2760 = vunpack.c.l.b16 %v2457
        %v2761 = vunpack.c.h.b16 %v2457
        %v2762 = vunpack.c.l.b16 %v2458
        %v2763 = vunpack.c.h.b16 %v2458
        %v2764 = vunpack.c.l.b16 %v2459
        %v2765 = vunpack.c.h.b16 %v2459
        %v2766 = vunpack.c.l.b16 %v2460
        %v2767 = vunpack.c.h.b16 %v2460
        %v2768 = vunpack.c.l.b16 %v2461
        %v2769 = vunpack.c.h.b16 %v2461
        %v2770 = vunpack.c.l.b16 %v2462
        %v2771 = vunpack.c.h.b16 %v2462
        %v2772 = vunpack.c.l.b16 %v2463
        %v2773 = vunpack.c.h.b16 %v2463
        %v2774 = vunpack.c.l.b16 %v2464
        %v2775 = vunpack.c.h.b16 %v2464
        %v2776 = vunpack.c.l.b16 %v2465
        %v2777 = vunpack.c.h.b16 %v2465
        %v2778 = vunpack.c.l.b16 %v2466
        %v2779 = vunpack.c.h.b16 %v2466
        %v2780 = vunpack.c.l.b16 %v2467
        %v2781 = vunpack.c.h.b16 %v2467
        %v2782 = vunpack.c.l.b16 %v2468
        %v2783 = vunpack.c.h.b16 %v2468
        %v2784 = vunpack.c.l.b16 %v2469
        %v2785 = vunpack.c.h.b16 %v2469
        %v2786 = vunpack.c.l.b16 %v2470
        %v2787 = vunpack.c.h.b16 %v2470
        %v2788 = vunpack.c.l.b16 %v2471
        %v2789 = vunpack.c.h.b16 %v2471
        %v2790 = vunpack.c.l.b16 %v2472
        %v2791 = vunpack.c.h.b16 %v2472
        %v2792 = vunpack.c.l.b16 %v2473
        %v2793 = vunpack.c.h.b16 %v2473
        %v2794 = vunpack.c.l.b16 %v2474
        %v2795 = vunpack.c.h.b16 %v2474
        %v2796 = vunpack.c.l.b16 %v2475
        %v2797 = vunpack.c.h.b16 %v2475
        %v2798 = vunpack.c.l.b16 %v2476
        %v2799 = vunpack.c.h.b16 %v2476
        %v2800 = vunpack.c.l.b16 %v2477
        %v2801 = vunpack.c.h.b16 %v2477
        %v2802 = vunpack.c.l.b16 %v2478
        %v2803 = vunpack.c.h.b16 %v2478
        %v2804 = vunpack.c.l.b16 %v2479
        %v2805 = vunpack.c.h.b16 %v2479
        %v2806 = vunpack.c.l.b16 %v2480
        %v2807 = vunpack.c.h.b16 %v2480
        %v2808 = vunpack.c.l.b16 %v2481
        %v2809 = vunpack.c.h.b16 %v2481
        %v2810 = vunpack.c.l.b16 %v2482
        %v2811 = vunpack.c.h.b16 %v2482
        %v2812 = vunpack.c.l.b16 %v2483
        %v2813 = vunpack.c.h.b16 %v2483
        %v2814 = vunpack.c.l.b16 %v2484
        %v2815 = vunpack.c.h.b16 %v2484
        %v2816 = vunpack.c.l.b16 %v2485
        %v2817 = vunpack.c.h.b16 %v2485
        %v2818 = vunpack.c.l.b16 %v2486
        %v2819 = vunpack.c.h.b16 %v2486
        %v2820 = vunpack.c.l.b16 %v2487
        %v2821 = vunpack.c.h.b16 %v2487
        %v2822 = vunpack.c.l.b16 %v2488
        %v2823 = vunpack.c.h.b16 %v2488
        %v2824 = vunpack.c.l.b16 %v2489
        %v2825 = vunpack.c.h.b16 %v2489
        %v2826 = vunpack.c.l.b16 %v2490
        %v2827 = vunpack.c.h.b16 %v2490
        %v2828 = vunpack.c.l.b16 %v2491
        %v2829 = vunpack.c.h.b16 %v2491
        %v2830 = vunpack.c.l.b16 %v2492
        %v2831 = vunpack.c.h.b16 %v2492
        %v2832 = vunpack.c.l.b16 %v2493
        %v2833 = vunpack.c.h.b16 %v2493
        %v2834 = vunpack.c.l.b16 %v2494
        %v2835 = vunpack.c.h.b16 %v2494
        %v2836 = vunpack.c.l.b16 %v2495
        %v2837 = vunpack.c.h.b16 %v2495
        %v2838 = vunpack.c.l.b16 %v2496
        %v2839 = vunpack.c.h.b16 %v2496
        %v2840 = vunpack.c.l.b16 %v2497
        %v2841 = vunpack.c.h.b16 %v2497
        %v2842 = vunpack.c.l.b16 %v2498
        %v2843 = vunpack.c.h.b16 %v2498
        %v2844 = vunpack.c.l.b16 %v2499
        %v2845 = vunpack.c.h.b16 %v2499
        %v2846 = vunpack.c.l.b16 %v2500
        %v2847 = vunpack.c.h.b16 %v2500
        %v2848 = vunpack.c.l.b16 %v2501
        %v2849 = vunpack.c.h.b16 %v2501
        %v2850 = vunpack.c.l.b16 %v2502
        %v2851 = vunpack.c.h.b16 %v2502
        %v2852 = vunpack.c.l.b16 %v2503
        %v2853 = vunpack.c.h.b16 %v2503
        %v2854 = vunpack.c.l.b16 %v2504
        %v2855 = vunpack.c.h.b16 %v2504
        %v2856 = vunpack.c.l.b16 %v2505
        %v2857 = vunpack.c.h.b16 %v2505
        %v2858 = vunpack.c.l.b16 %v2506
        %v2859 = vunpack.c.h.b16 %v2506
        %v2860 = vunpack.c.l.b16 %v2507
        %v2861 = vunpack.c.h.b16 %v2507
        %v2862 = vunpack.c.l.b16 %v2508
        %v2863 = vunpack.c.h.b16 %v2508
        %v2864 = vunpack.c.l.b16 %v2509
        %v2865 = vunpack.c.h.b16 %v2509
        %v2866 = vunpack.c.l.b16 %v2510
        %v2867 = vunpack.c.h.b16 %v2510
        %v2868 = vunpack.c.l.b16 %v2511
        %v2869 = vunpack.c.h.b16 %v2511
        %v2870 = vunpack.c.l.b16 %v2512
        %v2871 = vunpack.c.h.b16 %v2512
        %v2872 = vunpack.c.l.b16 %v2513
        %v2873 = vunpack.c.h.b16 %v2513
        %v2874 = vunpack.c.l.b16 %v2514
        %v2875 = vunpack.c.h.b16 %v2514
        %v2876 = vunpack.c.l.b16 %v2515
        %v2877 = vunpack.c.h.b16 %v2515
        %v2878 = vunpack.c.l.b16 %v2516
        %v2879 = vunpack.c.h.b16 %v2516
        %v2880 = vunpack.c.l.b16 %v2517
        %v2881 = vunpack.c.h.b16 %v2517
        %v2882 = vunpack.c.l.b16 %v2518
        %v2883 = vunpack.c.h.b16 %v2518
        %v2884 = vunpack.c.l.b16 %v2519
        %v2885 = vunpack.c.h.b16 %v2519
        %v2886 = vunpack.c.l.b16 %v2520
        %v2887 = vunpack.c.h.b16 %v2520
        %v2888 = vunpack.c.l.b16 %v2521
        %v2889 = vunpack.c.h.b16 %v2521
        %v2890 = vunpack.c.l.b16 %v2522
        %v2891 = vunpack.c.h.b16 %v2522
        %v2892 = vunpack.c.l.b16 %v2523
        %v2893 = vunpack.c.h.b16 %v2523
        %v2894 = vunpack.c.l.b16 %v2524
        %v2895 = vunpack.c.h.b16 %v2524
        %v2896 = vunpack.c.l.b16 %v2525
        %v2897 = vunpack.c.h.b16 %v2525
        %v2898 = vunpack.c.l.b16 %v2526
        %v2899 = vunpack.c.h.b16 %v2526
        %v2900 = vunpack.c.l.b16 %v2527
        %v2901 = vunpack.c.h.b16 %v2527
        %v2902 = vunpack.c.l.b16 %v2528
        %v2903 = vunpack.c.h.b16 %v2528
        %v2904 = vunpack.c.l.b16 %v2529
        %v2905 = vunpack.c.h.b16 %v2529
        %v2906 = vunpack.c.l.b16 %v2530
        %v2907 = vunpack.c.h.b16 %v2530
        %v2908 = vunpack.c.l.b16 %v2531
        %v2909 = vunpack.c.h.b16 %v2531
        %v2910 = vunpack.c.l.b16 %v2532
        %v2911 = vunpack.c.h.b16 %v2532
        %v2912 = vunpack.c.l.b16 %v2533
        %v2913 = vunpack.c.h.b16 %v2533
        %v2914 = vunpack.c.l.b16 %v2534
        %v2915 = vunpack.c.h.b16 %v2534
        %v2916 = vunpack.c.l.b16 %v2535
        %v2917 = vunpack.c.h.b16 %v2535
        %v2918 = vunpack.c.l.b16 %v2536
        %v2919 = vunpack.c.h.b16 %v2536
        %v2920 = vunpack.c.l.b16 %v2537
        %v2921 = vunpack.c.h.b16 %v2537
        %v2922 = vunpack.c.l.b16 %v2538
        %v2923 = vunpack.c.h.b16 %v2538
        %v2924 = vunpack.c.l.b16 %v2539
        %v2925 = vunpack.c.h.b16 %v2539
        %v2926 = vunpack.c.l.b16 %v2540
        %v2927 = vunpack.c.h.b16 %v2540
        %v2928 = vunpack.c.l.b16 %v2541
        %v2929 = vunpack.c.h.b16 %v2541
        %v2930 = vunpack.c.l.b16 %v2542
        %v2931 = vunpack.c.h.b16 %v2542
        %v2932 = vunpack.c.l.b16 %v2543
        %v2933 = vunpack.c.h.b16 %v2543
        %v2934 = vunpack.c.l.b16 %v2544
        %v2935 = vunpack.c.h.b16 %v2544
        %v2936 = vunpack.c.l.b16 %v2545
        %v2937 = vunpack.c.h.b16 %v2545
        %v2938 = vunpack.c.l.b16 %v2546
        %v2939 = vunpack.c.h.b16 %v2546
        %v2940 = vunpack.c.l.b16 %v2547
        %v2941 = vunpack.c.h.b16 %v2547
        %v2942 = vunpack.c.l.b16 %v2548
        %v2943 = vunpack.c.h.b16 %v2548
        %v2944 = vunpack.c.l.b16 %v2549
        %v2945 = vunpack.c.h.b16 %v2549
        %v2946 = vunpack.c.l.b16 %v2550
        %v2947 = vunpack.c.h.b16 %v2550
        %v2948 = vunpack.c.l.b16 %v2551
        %v2949 = vunpack.c.h.b16 %v2551
        %v2950 = vunpack.c.l.b16 %v2552
        %v2951 = vunpack.c.h.b16 %v2552
        %v2952 = vunpack.c.l.b16 %v2553
        %v2953 = vunpack.c.h.b16 %v2553
        %v2954 = vunpack.c.l.b16 %v2554
        %v2955 = vunpack.c.h.b16 %v2554
        %v2956 = vunpack.c.l.b16 %v2555
        %v2957 = vunpack.c.h.b16 %v2555
        %v2958 = vunpack.c.l.b16 %v2556
        %v2959 = vunpack.c.h.b16 %v2556
        %v2960 = vunpack.c.l.b16 %v2557
        %v2961 = vunpack.c.h.b16 %v2557
        %v2962 = vunpack.c.l.b16 %v2558
        %v2963 = vunpack.c.h.b16 %v2558
        %v2964 = vunpack.c.l.b16 %v2559
        %v2965 = vunpack.c.h.b16 %v2559
        %v2966 = vpack.c.b16 %v2714, %v2710
        %v2967 = vpack.c.b16 %v2715, %v2711
        %v2968 = vpack.c.b16 %v2716, %v2712
        %v2969 = vpack.c.b16 %v2717, %v2713
        %v2970 = vpack.c.b16 %v2722, %v2718
        %v2971 = vpack.c.b16 %v2723, %v2719
        %v2972 = vpack.c.b16 %v2724, %v2720
        %v2973 = vpack.c.b16 %v2725, %v2721
        %v2974 = vpack.c.b16 %v2730, %v2726
        %v2975 = vpack.c.b16 %v2731, %v2727
        %v2976 = vpack.c.b16 %v2732, %v2728
        %v2977 = vpack.c.b16 %v2733, %v2729
        %v2978 = vpack.c.b16 %v2738, %v2734
        %v2979 = vpack.c.b16 %v2739, %v2735
        %v2980 = vpack.c.b16 %v2740, %v2736
        %v2981 = vpack.c.b16 %v2741, %v2737
        %v2982 = vpack.c.b16 %v2746, %v2742
        %v2983 = vpack.c.b16 %v2747, %v2743
        %v2984 = vpack.c.b16 %v2748, %v2744
        %v2985 = vpack.c.b16 %v2749, %v2745
        %v2986 = vpack.c.b16 %v2754, %v2750
        %v2987 = vpack.c.b16 %v2755, %v2751
        %v2988 = vpack.c.b16 %v2756, %v2752
        %v2989 = vpack.c.b16 %v2757, %v2753
        %v2990 = vpack.c.b16 %v2762, %v2758
        %v2991 = vpack.c.b16 %v2763, %v2759
        %v2992 = vpack.c.b16 %v2764, %v2760
        %v2993 = vpack.c.b16 %v2765, %v2761
        %v2994 = vpack.c.b16 %v2770, %v2766
        %v2995 = vpack.c.b16 %v2771, %v2767
        %v2996 = vpack.c.b16 %v2772, %v2768
        %v2997 = vpack.c.b16 %v2773, %v2769
        %v2998 = vpack.c.b16 %v2778, %v2774
        %v2999 = vpack.c.b16 %v2779, %v2775
        %v3000 = vpack.c.b16 %v2780, %v2776
        %v3001 = vpack.c.b16 %v2781, %v2777
        %v3002 = vpack.c.b16 %v2786, %v2782
        %v3003 = vpack.c.b16 %v2787, %v2783
        %v3004 = vpack.c.b16 %v2788, %v2784
        %v3005 = vpack.c.b16 %v2789, %v2785
        %v3006 = vpack.c.b16 %v2794, %v2790
        %v3007 = vpack.c.b16 %v2795, %v2791
        %v3008 = vpack.c.b16 %v2796, %v2792
        %v3009 = vpack.c.b16 %v2797, %v2793
        %v3010 = vpack.c.b16 %v2802, %v2798
        %v3011 = vpack.c.b16 %v2803, %v2799
        %v3012 = vpack.c.b16 %v2804, %v2800
        %v3013 = vpack.c.b16 %v2805, %v2801
        %v3014 = vpack.c.b16 %v2810, %v2806
        %v3015 = vpack.c.b16 %v2811, %v2807
        %v3016 = vpack.c.b16 %v2812, %v2808
        %v3017 = vpack.c.b16 %v2813, %v2809
        %v3018 = vpack.c.b16 %v2818, %v2814
        %v3019 = vpack.c.b16 %v2819, %v2815
        %v3020 = vpack.c.b16 %v2820, %v2816
        %v3021 = vpack.c.b16 %v2821, %v2817
        %v3022 = vpack.c.b16 %v2826, %v2822
        %v3023 = vpack.c.b16 %v2827, %v2823
        %v3024 = vpack.c.b16 %v2828, %v2824
        %v3025 = vpack.c.b16 %v2829, %v2825
        %v3026 = vpack.c.b16 %v2834, %v2830
        %v3027 = vpack.c.b16 %v2835, %v2831
        %v3028 = vpack.c.b16 %v2836, %v2832
        %v3029 = vpack.c.b16 %v2837, %v2833
        %v3030 = vpack.c.b16 %v2842, %v2838
        %v3031 = vpack.c.b16 %v2843, %v2839
        %v3032 = vpack.c.b16 %v2844, %v2840
        %v3033 = vpack.c.b16 %v2845, %v2841
        %v3034 = vpack.c.b16 %v2850, %v2846
        %v3035 = vpack.c.b16 %v2851, %v2847
        %v3036 = vpack.c.b16 %v2852, %v2848
        %v3037 = vpack.c.b16 %v2853, %v2849
        %v3038 = vpack.c.b16 %v2858, %v2854
        %v3039 = vpack.c.b16 %v2859, %v2855
        %v3040 = vpack.c.b16 %v2860, %v2856
        %v3041 = vpack.c.b16 %v2861, %v2857
        %v3042 = vpack.c.b16 %v2866, %v2862
        %v3043 = vpack.c.b16 %v2867, %v2863
        %v3044 = vpack.c.b16 %v2868, %v2864
        %v3045 = vpack.c.b16 %v2869, %v2865
        %v3046 = vpack.c.b16 %v2874, %v2870
        %v3047 = vpack.c.b16 %v2875, %v2871
        %v3048 = vpack.c.b16 %v2876, %v2872
        %v3049 = vpack.c.b16 %v2877, %v2873
        %v3050 = vpack.c.b16 %v2882, %v2878
        %v3051 = vpack.c.b16 %v2883, %v2879
        %v3052 = vpack.c.b16 %v2884, %v2880
        %v3053 = vpack.c.b16 %v2885, %v2881
        %v3054 = vpack.c.b16 %v2890, %v2886
        %v3055 = vpack.c.b16 %v2891, %v2887
        %v3056 = vpack.c.b16 %v2892, %v2888
        %v3057 = vpack.c.b16 %v2893, %v2889
        %v3058 = vpack.c.b16 %v2898, %v2894
        %v3059 = vpack.c.b16 %v2899, %v2895
        %v3060 = vpack.c.b16 %v2900, %v2896
        %v3061 = vpack.c.b16 %v2901, %v2897
        %v3062 = vpack.c.b16 %v2906, %v2902
        %v3063 = vpack.c.b16 %v2907, %v2903
        %v3064 = vpack.c.b16 %v2908, %v2904
        %v3065 = vpack.c.b16 %v2909, %v2905
        %v3066 = vpack.c.b16 %v2914, %v2910
        %v3067 = vpack.c.b16 %v2915, %v2911
        %v3068 = vpack.c.b16 %v2916, %v2912
        %v3069 = vpack.c.b16 %v2917, %v2913
        %v3070 = vpack.c.b16 %v2922, %v2918
        %v3071 = vpack.c.b16 %v2923, %v2919
        %v3072 = vpack.c.b16 %v2924, %v2920
        %v3073 = vpack.c.b16 %v2925, %v2921
        %v3074 = vpack.c.b16 %v2930, %v2926
        %v3075 = vpack.c.b16 %v2931, %v2927
        %v3076 = vpack.c.b16 %v2932, %v2928
        %v3077 = vpack.c.b16 %v2933, %v2929
        %v3078 = vpack.c.b16 %v2938, %v2934
        %v3079 = vpack.c.b16 %v2939, %v2935
        %v3080 = vpack.c.b16 %v2940, %v2936
        %v3081 = vpack.c.b16 %v2941, %v2937
        %v3082 = vpack.c.b16 %v2946, %v2942
        %v3083 = vpack.c.b16 %v2947, %v2943
        %v3084 = vpack.c.b16 %v2948, %v2944
        %v3085 = vpack.c.b16 %v2949, %v2945
        %v3086 = vpack.c.b16 %v2954, %v2950
        %v3087 = vpack.c.b16 %v2955, %v2951
        %v3088 = vpack.c.b16 %v2956, %v2952
        %v3089 = vpack.c.b16 %v2957, %v2953
        %v3090 = vpack.c.b16 %v2962, %v2958
        %v3091 = vpack.c.b16 %v2963, %v2959
        %v3092 = vpack.c.b16 %v2964, %v2960
        %v3093 = vpack.c.b16 %v2965, %v2961
        %3222 = vmatprep.subr.bf16.mxu0 %v2967
        %3223 = vmatpush1.bf16.msra.mxu0 %v2966
        %3224 = vmatprep.subr.bf16.mxu0 %v2971
        %3225 = vmatpush1.bf16.msra.mxu0 %v2970
        %3226 = vmatprep.subr.bf16.mxu0 %v2975
        %3227 = vmatpush1.bf16.msra.mxu0 %v2974
        %3228 = vmatprep.subr.bf16.mxu0 %v2979
        %3229 = vmatpush1.bf16.msra.mxu0 %v2978
        %3230 = vmatprep.subr.bf16.mxu0 %v2983
        %3231 = vmatpush1.bf16.msra.mxu0 %v2982
        %3232 = vmatprep.subr.bf16.mxu0 %v2987
        %3233 = vmatpush1.bf16.msra.mxu0 %v2986
        %3234 = vmatprep.subr.bf16.mxu0 %v2991
        %3235 = vmatpush1.bf16.msra.mxu0 %v2990
        %3236 = vmatprep.subr.bf16.mxu0 %v2995
        %3237 = vmatpush1.bf16.msra.mxu0 %v2994
        %3238 = vmatprep.subr.bf16.mxu0 %v2999
        %3239 = vmatpush1.bf16.msra.mxu0 %v2998
        %3240 = vmatprep.subr.bf16.mxu0 %v3003
        %3241 = vmatpush1.bf16.msra.mxu0 %v3002
        %3242 = vmatprep.subr.bf16.mxu0 %v3007
        %3243 = vmatpush1.bf16.msra.mxu0 %v3006
        %3244 = vmatprep.subr.bf16.mxu0 %v3011
        %3245 = vmatpush1.bf16.msra.mxu0 %v3010
        %3246 = vmatprep.subr.bf16.mxu0 %v3015
        %3247 = vmatpush1.bf16.msra.mxu0 %v3014
        %3248 = vmatprep.subr.bf16.mxu0 %v3019
        %3249 = vmatpush1.bf16.msra.mxu0 %v3018
        %3250 = vmatprep.subr.bf16.mxu0 %v3023
        %3251 = vmatpush1.bf16.msra.mxu0 %v3022
        %3252 = vmatprep.subr.bf16.mxu0 %v3027
        %3253 = vmatpush1.bf16.msra.mxu0 %v3026
        %3254 = vmatprep.mubr.bf16.mxu0 %v2401
        %3255 = vmatmul.mubr.bf16.gmra.mrb[0].mxu0 %v2400
        %v3256 = vpop.f32.mrb[0].mxu0
        %v3257 = vadd.f32 %v2565, %v3256
        %v3258 = vpop.f32.mrb[0].mxu0
        %v3259 = vadd.f32 %v2569, %v3258
        %v3260 = vpop.f32.mrb[0].mxu0
        %v3261 = vadd.f32 %v2565, %v3260
        %v3262 = vpop.f32.mrb[0].mxu0
        %v3263 = vadd.f32 %v2569, %v3262
        %3264 = vmatprep.mubr.bf16.mxu0 %v2405
        %3265 = vmatmul.mubr.bf16.gmra.mrb[0].mxu0 %v2404
        %v3266 = vpop.f32.mrb[0].mxu0
        %v3267 = vadd.f32 %v2565, %v3266
        %v3268 = vpop.f32.mrb[0].mxu0
        %v3269 = vadd.f32 %v2569, %v3268
        %v3270 = vpop.f32.mrb[0].mxu0
        %v3271 = vadd.f32 %v2565, %v3270
        %v3272 = vpop.f32.mrb[0].mxu0
        %v3273 = vadd.f32 %v2569, %v3272
        %3274 = vmatprep.mubr.bf16.mxu0 %v2409
        %3275 = vmatmul.mubr.bf16.gmra.mrb[0].mxu0 %v2408
        %v3276 = vpop.f32.mrb[0].mxu0
        %v3277 = vadd.f32 %v2565, %v3276
        %v3278 = vpop.f32.mrb[0].mxu0
        %v3279 = vadd.f32 %v2569, %v3278
        %v3280 = vpop.f32.mrb[0].mxu0
        %v3281 = vadd.f32 %v2565, %v3280
        %v3282 = vpop.f32.mrb[0].mxu0
        %v3283 = vadd.f32 %v2569, %v3282
        %3284 = vmatprep.mubr.bf16.mxu0 %v2413
        %3285 = vmatmul.mubr.bf16.gmra.mrb[0].mxu0 %v2412
        %v3286 = vpop.f32.mrb[0].mxu0
        %v3287 = vadd.f32 %v2565, %v3286
        %v3288 = vpop.f32.mrb[0].mxu0
        %v3289 = vadd.f32 %v2569, %v3288
        %v3290 = vpop.f32.mrb[0].mxu0
        %v3291 = vadd.f32 %v2565, %v3290
        %v3292 = vpop.f32.mrb[0].mxu0
        %v3293 = vadd.f32 %v2569, %v3292
        %3294 = vmatprep.mubr.bf16.mxu0 %v2417
        %3295 = vmatmul.mubr.bf16.gmra.mrb[0].mxu0 %v2416
        %v3296 = vpop.f32.mrb[0].mxu0
        %v3297 = vadd.f32 %v2565, %v3296
        %v3298 = vpop.f32.mrb[0].mxu0
        %v3299 = vadd.f32 %v2569, %v3298
        %v3300 = vpop.f32.mrb[0].mxu0
        %v3301 = vadd.f32 %v2565, %v3300
        %v3302 = vpop.f32.mrb[0].mxu0
        %v3303 = vadd.f32 %v2569, %v3302
        %3304 = vmatprep.mubr.bf16.mxu0 %v2421
        %3305 = vmatmul.mubr.bf16.gmra.mrb[0].mxu0 %v2420
        %v3306 = vpop.f32.mrb[0].mxu0
        %v3307 = vadd.f32 %v2565, %v3306
        %v3308 = vpop.f32.mrb[0].mxu0
        %v3309 = vadd.f32 %v2569, %v3308
        %v3310 = vpop.f32.mrb[0].mxu0
        %v3311 = vadd.f32 %v2565, %v3310
        %v3312 = vpop.f32.mrb[0].mxu0
        %v3313 = vadd.f32 %v2569, %v3312
        %3314 = vmatprep.mubr.bf16.mxu0 %v2425
        %3315 = vmatmul.mubr.bf16.gmra.mrb[0].mxu0 %v2424
        %v3316 = vpop.f32.mrb[0].mxu0
        %v3317 = vadd.f32 %v2565, %v3316
        %v3318 = vpop.f32.mrb[0].mxu0
        %v3319 = vadd.f32 %v2569, %v3318
        %v3320 = vpop.f32.mrb[0].mxu0
        %v3321 = vadd.f32 %v2565, %v3320
        %v3322 = vpop.f32.mrb[0].mxu0
        %v3323 = vadd.f32 %v2569, %v3322
        %3324 = vmatprep.mubr.bf16.mxu0 %v2429
        %3325 = vmatmul.mubr.bf16.gmra.mrb[0].mxu0 %v2428
        %v3326 = vpop.f32.mrb[0].mxu0
        %v3327 = vadd.f32 %v2565, %v3326
        %v3328 = vpop.f32.mrb[0].mxu0
        %v3329 = vadd.f32 %v2569, %v3328
        %v3330 = vpop.f32.mrb[0].mxu0
        %v3331 = vadd.f32 %v2565, %v3330
        %v3332 = vpop.f32.mrb[0].mxu0
        %v3333 = vadd.f32 %v2569, %v3332
        %3334 = vdwg.mxu0
        %3335 = vmatprep.subr.bf16.mxu0 %v3031
        %3336 = vmatpush1.bf16.msra.mxu0 %v3030
        %3337 = vmatprep.subr.bf16.mxu0 %v3035
        %3338 = vmatpush1.bf16.msra.mxu0 %v3034
        %3339 = vmatprep.subr.bf16.mxu0 %v3039
        %3340 = vmatpush1.bf16.msra.mxu0 %v3038
        %3341 = vmatprep.subr.bf16.mxu0 %v3043
        %3342 = vmatpush1.bf16.msra.mxu0 %v3042
        %3343 = vmatprep.subr.bf16.mxu0 %v3047
        %3344 = vmatpush1.bf16.msra.mxu0 %v3046
        %3345 = vmatprep.subr.bf16.mxu0 %v3051
        %3346 = vmatpush1.bf16.msra.mxu0 %v3050
        %3347 = vmatprep.subr.bf16.mxu0 %v3055
        %3348 = vmatpush1.bf16.msra.mxu0 %v3054
        %3349 = vmatprep.subr.bf16.mxu0 %v3059
        %3350 = vmatpush1.bf16.msra.mxu0 %v3058
        %3351 = vmatprep.subr.bf16.mxu0 %v3063
        %3352 = vmatpush1.bf16.msra.mxu0 %v3062
        %3353 = vmatprep.subr.bf16.mxu0 %v3067
        %3354 = vmatpush1.bf16.msra.mxu0 %v3066
        %3355 = vmatprep.subr.bf16.mxu0 %v3071
        %3356 = vmatpush1.bf16.msra.mxu0 %v3070
        %3357 = vmatprep.subr.bf16.mxu0 %v3075
        %3358 = vmatpush1.bf16.msra.mxu0 %v3074
        %3359 = vmatprep.subr.bf16.mxu0 %v3079
        %3360 = vmatpush1.bf16.msra.mxu0 %v3078
        %3361 = vmatprep.subr.bf16.mxu0 %v3083
        %3362 = vmatpush1.bf16.msra.mxu0 %v3082
        %3363 = vmatprep.subr.bf16.mxu0 %v3087
        %3364 = vmatpush1.bf16.msra.mxu0 %v3086
        %3365 = vmatprep.subr.bf16.mxu0 %v3091
        %3366 = vmatpush1.bf16.msra.mxu0 %v3090
        %3367 = vmatprep.mubr.bf16.mxu0 %v2403
        %3368 = vmatmul.mubr.bf16.gmra.mrb[0].mxu0 %v2402
        %v3369 = vpop.f32.mrb[0].mxu0
        %v3370 = vadd.f32 %v3257, %v3369
        %v3371 = vpop.f32.mrb[0].mxu0
        %v3372 = vadd.f32 %v3259, %v3371
        %v3373 = vpop.f32.mrb[0].mxu0
        %v3374 = vadd.f32 %v3261, %v3373
        %v3375 = vpop.f32.mrb[0].mxu0
        %v3376 = vadd.f32 %v3263, %v3375
        %3377 = vmatprep.mubr.bf16.mxu0 %v2407
        %3378 = vmatmul.mubr.bf16.gmra.mrb[0].mxu0 %v2406
        %v3379 = vpop.f32.mrb[0].mxu0
        %v3380 = vadd.f32 %v3267, %v3379
        %v3381 = vpop.f32.mrb[0].mxu0
        %v3382 = vadd.f32 %v3269, %v3381
        %v3383 = vpop.f32.mrb[0].mxu0
        %v3384 = vadd.f32 %v3271, %v3383
        %v3385 = vpop.f32.mrb[0].mxu0
        %v3386 = vadd.f32 %v3273, %v3385
        %3387 = vmatprep.mubr.bf16.mxu0 %v2411
        %3388 = vmatmul.mubr.bf16.gmra.mrb[0].mxu0 %v2410
        %v3389 = vpop.f32.mrb[0].mxu0
        %v3390 = vadd.f32 %v3277, %v3389
        %v3391 = vpop.f32.mrb[0].mxu0
        %v3392 = vadd.f32 %v3279, %v3391
        %v3393 = vpop.f32.mrb[0].mxu0
        %v3394 = vadd.f32 %v3281, %v3393
        %v3395 = vpop.f32.mrb[0].mxu0
        %v3396 = vadd.f32 %v3283, %v3395
        %3397 = vmatprep.mubr.bf16.mxu0 %v2415
        %3398 = vmatmul.mubr.bf16.gmra.mrb[0].mxu0 %v2414
        %v3399 = vpop.f32.mrb[0].mxu0
        %v3400 = vadd.f32 %v3287, %v3399
        %v3401 = vpop.f32.mrb[0].mxu0
        %v3402 = vadd.f32 %v3289, %v3401
        %v3403 = vpop.f32.mrb[0].mxu0
        %v3404 = vadd.f32 %v3291, %v3403
        %v3405 = vpop.f32.mrb[0].mxu0
        %v3406 = vadd.f32 %v3293, %v3405
        %3407 = vmatprep.mubr.bf16.mxu0 %v2419
        %3408 = vmatmul.mubr.bf16.gmra.mrb[0].mxu0 %v2418
        %v3409 = vpop.f32.mrb[0].mxu0
        %v3410 = vadd.f32 %v3297, %v3409
        %v3411 = vpop.f32.mrb[0].mxu0
        %v3412 = vadd.f32 %v3299, %v3411
        %v3413 = vpop.f32.mrb[0].mxu0
        %v3414 = vadd.f32 %v3301, %v3413
        %v3415 = vpop.f32.mrb[0].mxu0
        %v3416 = vadd.f32 %v3303, %v3415
        %3417 = vmatprep.mubr.bf16.mxu0 %v2423
        %3418 = vmatmul.mubr.bf16.gmra.mrb[0].mxu0 %v2422
        %v3419 = vpop.f32.mrb[0].mxu0
        %v3420 = vadd.f32 %v3307, %v3419
        %v3421 = vpop.f32.mrb[0].mxu0
        %v3422 = vadd.f32 %v3309, %v3421
        %v3423 = vpop.f32.mrb[0].mxu0
        %v3424 = vadd.f32 %v3311, %v3423
        %v3425 = vpop.f32.mrb[0].mxu0
        %v3426 = vadd.f32 %v3313, %v3425
        %3427 = vmatprep.mubr.bf16.mxu0 %v2427
        %3428 = vmatmul.mubr.bf16.gmra.mrb[0].mxu0 %v2426
        %v3429 = vpop.f32.mrb[0].mxu0
        %v3430 = vadd.f32 %v3317, %v3429
        %v3431 = vpop.f32.mrb[0].mxu0
        %v3432 = vadd.f32 %v3319, %v3431
        %v3433 = vpop.f32.mrb[0].mxu0
        %v3434 = vadd.f32 %v3321, %v3433
        %v3435 = vpop.f32.mrb[0].mxu0
        %v3436 = vadd.f32 %v3323, %v3435
        %3437 = vmatprep.mubr.bf16.mxu0 %v2431
        %3438 = vmatmul.mubr.bf16.gmra.mrb[0].mxu0 %v2430
        %v3439 = vpop.f32.mrb[0].mxu0
        %v3440 = vadd.f32 %v3327, %v3439
        %v3441 = vpop.f32.mrb[0].mxu0
        %v3442 = vadd.f32 %v3329, %v3441
        %v3443 = vpop.f32.mrb[0].mxu0
        %v3444 = vadd.f32 %v3331, %v3443
        %v3445 = vpop.f32.mrb[0].mxu0
        %v3446 = vadd.f32 %v3333, %v3445
        %3447 = vdwg.mxu0
        %3448 = vmatprep.subr.bf16.mxu0 %v2969
        %3449 = vmatpush1.bf16.msra.mxu0 %v2968
        %3450 = vmatprep.subr.bf16.mxu0 %v2973
        %3451 = vmatpush1.bf16.msra.mxu0 %v2972
        %3452 = vmatprep.subr.bf16.mxu0 %v2977
        %3453 = vmatpush1.bf16.msra.mxu0 %v2976
        %3454 = vmatprep.subr.bf16.mxu0 %v2981
        %3455 = vmatpush1.bf16.msra.mxu0 %v2980
        %3456 = vmatprep.subr.bf16.mxu0 %v2985
        %3457 = vmatpush1.bf16.msra.mxu0 %v2984
        %3458 = vmatprep.subr.bf16.mxu0 %v2989
        %3459 = vmatpush1.bf16.msra.mxu0 %v2988
        %3460 = vmatprep.subr.bf16.mxu0 %v2993
        %3461 = vmatpush1.bf16.msra.mxu0 %v2992
        %3462 = vmatprep.subr.bf16.mxu0 %v2997
        %3463 = vmatpush1.bf16.msra.mxu0 %v2996
        %3464 = vmatprep.subr.bf16.mxu0 %v3001
        %3465 = vmatpush1.bf16.msra.mxu0 %v3000
        %3466 = vmatprep.subr.bf16.mxu0 %v3005
        %3467 = vmatpush1.bf16.msra.mxu0 %v3004
        %3468 = vmatprep.subr.bf16.mxu0 %v3009
        %3469 = vmatpush1.bf16.msra.mxu0 %v3008
        %3470 = vmatprep.subr.bf16.mxu0 %v3013
        %3471 = vmatpush1.bf16.msra.mxu0 %v3012
        %3472 = vmatprep.subr.bf16.mxu0 %v3017
        %3473 = vmatpush1.bf16.msra.mxu0 %v3016
        %3474 = vmatprep.subr.bf16.mxu0 %v3021
        %3475 = vmatpush1.bf16.msra.mxu0 %v3020
        %3476 = vmatprep.subr.bf16.mxu0 %v3025
        %3477 = vmatpush1.bf16.msra.mxu0 %v3024
        %3478 = vmatprep.subr.bf16.mxu0 %v3029
        %3479 = vmatpush1.bf16.msra.mxu0 %v3028
        %3480 = vmatprep.mubr.bf16.mxu0 %v2401
        %3481 = vmatmul.mubr.bf16.gmra.mrb[0].mxu0 %v2400
        %v3482 = vpop.f32.mrb[0].mxu0
        %v3483 = vadd.f32 %v2573, %v3482
        %v3484 = vpop.f32.mrb[0].mxu0
        %v3485 = vadd.f32 %v2577, %v3484
        %v3486 = vpop.f32.mrb[0].mxu0
        %v3487 = vadd.f32 %v2573, %v3486
        %v3488 = vpop.f32.mrb[0].mxu0
        %v3489 = vadd.f32 %v2577, %v3488
        %3490 = vmatprep.mubr.bf16.mxu0 %v2405
        %3491 = vmatmul.mubr.bf16.gmra.mrb[0].mxu0 %v2404
        %v3492 = vpop.f32.mrb[0].mxu0
        %v3493 = vadd.f32 %v2573, %v3492
        %v3494 = vpop.f32.mrb[0].mxu0
        %v3495 = vadd.f32 %v2577, %v3494
        %v3496 = vpop.f32.mrb[0].mxu0
        %v3497 = vadd.f32 %v2573, %v3496
        %v3498 = vpop.f32.mrb[0].mxu0
        %v3499 = vadd.f32 %v2577, %v3498
        %3500 = vmatprep.mubr.bf16.mxu0 %v2409
        %3501 = vmatmul.mubr.bf16.gmra.mrb[0].mxu0 %v2408
        %v3502 = vpop.f32.mrb[0].mxu0
        %v3503 = vadd.f32 %v2573, %v3502
        %v3504 = vpop.f32.mrb[0].mxu0
        %v3505 = vadd.f32 %v2577, %v3504
        %v3506 = vpop.f32.mrb[0].mxu0
        %v3507 = vadd.f32 %v2573, %v3506
        %v3508 = vpop.f32.mrb[0].mxu0
        %v3509 = vadd.f32 %v2577, %v3508
        %3510 = vmatprep.mubr.bf16.mxu0 %v2413
        %3511 = vmatmul.mubr.bf16.gmra.mrb[0].mxu0 %v2412
        %v3512 = vpop.f32.mrb[0].mxu0
        %v3513 = vadd.f32 %v2573, %v3512
        %v3514 = vpop.f32.mrb[0].mxu0
        %v3515 = vadd.f32 %v2577, %v3514
        %v3516 = vpop.f32.mrb[0].mxu0
        %v3517 = vadd.f32 %v2573, %v3516
        %v3518 = vpop.f32.mrb[0].mxu0
        %v3519 = vadd.f32 %v2577, %v3518
        %3520 = vmatprep.mubr.bf16.mxu0 %v2417
        %3521 = vmatmul.mubr.bf16.gmra.mrb[0].mxu0 %v2416
        %v3522 = vpop.f32.mrb[0].mxu0
        %v3523 = vadd.f32 %v2573, %v3522
        %v3524 = vpop.f32.mrb[0].mxu0
        %v3525 = vadd.f32 %v2577, %v3524
        %v3526 = vpop.f32.mrb[0].mxu0
        %v3527 = vadd.f32 %v2573, %v3526
        %v3528 = vpop.f32.mrb[0].mxu0
        %v3529 = vadd.f32 %v2577, %v3528
        %3530 = vmatprep.mubr.bf16.mxu0 %v2421
        %3531 = vmatmul.mubr.bf16.gmra.mrb[0].mxu0 %v2420
        %v3532 = vpop.f32.mrb[0].mxu0
        %v3533 = vadd.f32 %v2573, %v3532
        %v3534 = vpop.f32.mrb[0].mxu0
        %v3535 = vadd.f32 %v2577, %v3534
        %v3536 = vpop.f32.mrb[0].mxu0
        %v3537 = vadd.f32 %v2573, %v3536
        %v3538 = vpop.f32.mrb[0].mxu0
        %v3539 = vadd.f32 %v2577, %v3538
        %3540 = vmatprep.mubr.bf16.mxu0 %v2425
        %3541 = vmatmul.mubr.bf16.gmra.mrb[0].mxu0 %v2424
        %v3542 = vpop.f32.mrb[0].mxu0
        %v3543 = vadd.f32 %v2573, %v3542
        %v3544 = vpop.f32.mrb[0].mxu0
        %v3545 = vadd.f32 %v2577, %v3544
        %v3546 = vpop.f32.mrb[0].mxu0
        %v3547 = vadd.f32 %v2573, %v3546
        %v3548 = vpop.f32.mrb[0].mxu0
        %v3549 = vadd.f32 %v2577, %v3548
        %3550 = vmatprep.mubr.bf16.mxu0 %v2429
        %3551 = vmatmul.mubr.bf16.gmra.mrb[0].mxu0 %v2428
        %v3552 = vpop.f32.mrb[0].mxu0
        %v3553 = vadd.f32 %v2573, %v3552
        %v3554 = vpop.f32.mrb[0].mxu0
        %v3555 = vadd.f32 %v2577, %v3554
        %v3556 = vpop.f32.mrb[0].mxu0
        %v3557 = vadd.f32 %v2573, %v3556
        %v3558 = vpop.f32.mrb[0].mxu0
        %v3559 = vadd.f32 %v2577, %v3558
        %3560 = vdwg.mxu0
        %3561 = vmatprep.subr.bf16.mxu0 %v3033
        %3562 = vmatpush1.bf16.msra.mxu0 %v3032
        %3563 = vmatprep.subr.bf16.mxu0 %v3037
        %3564 = vmatpush1.bf16.msra.mxu0 %v3036
        %3565 = vmatprep.subr.bf16.mxu0 %v3041
        %3566 = vmatpush1.bf16.msra.mxu0 %v3040
        %3567 = vmatprep.subr.bf16.mxu0 %v3045
        %3568 = vmatpush1.bf16.msra.mxu0 %v3044
        %3569 = vmatprep.subr.bf16.mxu0 %v3049
        %3570 = vmatpush1.bf16.msra.mxu0 %v3048
        %3571 = vmatprep.subr.bf16.mxu0 %v3053
        %3572 = vmatpush1.bf16.msra.mxu0 %v3052
        %3573 = vmatprep.subr.bf16.mxu0 %v3057
        %3574 = vmatpush1.bf16.msra.mxu0 %v3056
        %3575 = vmatprep.subr.bf16.mxu0 %v3061
        %3576 = vmatpush1.bf16.msra.mxu0 %v3060
        %3577 = vmatprep.subr.bf16.mxu0 %v3065
        %3578 = vmatpush1.bf16.msra.mxu0 %v3064
        %3579 = vmatprep.subr.bf16.mxu0 %v3069
        %3580 = vmatpush1.bf16.msra.mxu0 %v3068
        %3581 = vmatprep.subr.bf16.mxu0 %v3073
        %3582 = vmatpush1.bf16.msra.mxu0 %v3072
        %3583 = vmatprep.subr.bf16.mxu0 %v3077
        %3584 = vmatpush1.bf16.msra.mxu0 %v3076
        %3585 = vmatprep.subr.bf16.mxu0 %v3081
        %3586 = vmatpush1.bf16.msra.mxu0 %v3080
        %3587 = vmatprep.subr.bf16.mxu0 %v3085
        %3588 = vmatpush1.bf16.msra.mxu0 %v3084
        %3589 = vmatprep.subr.bf16.mxu0 %v3089
        %3590 = vmatpush1.bf16.msra.mxu0 %v3088
        %3591 = vmatprep.subr.bf16.mxu0 %v3093
        %3592 = vmatpush1.bf16.msra.mxu0 %v3092
        %3593 = vmatprep.mubr.bf16.mxu0 %v2403
        %3594 = vmatmul.mubr.bf16.gmra.mrb[0].mxu0 %v2402
        %v3595 = vpop.f32.mrb[0].mxu0
        %v3596 = vadd.f32 %v3483, %v3595
        %v3597 = vpop.f32.mrb[0].mxu0
        %v3598 = vadd.f32 %v3485, %v3597
        %v3599 = vpop.f32.mrb[0].mxu0
        %v3600 = vadd.f32 %v3487, %v3599
        %v3601 = vpop.f32.mrb[0].mxu0
        %v3602 = vadd.f32 %v3489, %v3601
        %3603 = vmatprep.mubr.bf16.mxu0 %v2407
        %3604 = vmatmul.mubr.bf16.gmra.mrb[0].mxu0 %v2406
        %v3605 = vpop.f32.mrb[0].mxu0
        %v3606 = vadd.f32 %v3493, %v3605
        %v3607 = vpop.f32.mrb[0].mxu0
        %v3608 = vadd.f32 %v3495, %v3607
        %v3609 = vpop.f32.mrb[0].mxu0
        %v3610 = vadd.f32 %v3497, %v3609
        %v3611 = vpop.f32.mrb[0].mxu0
        %v3612 = vadd.f32 %v3499, %v3611
        %3613 = vmatprep.mubr.bf16.mxu0 %v2411
        %3614 = vmatmul.mubr.bf16.gmra.mrb[0].mxu0 %v2410
        %v3615 = vpop.f32.mrb[0].mxu0
        %v3616 = vadd.f32 %v3503, %v3615
        %v3617 = vpop.f32.mrb[0].mxu0
        %v3618 = vadd.f32 %v3505, %v3617
        %v3619 = vpop.f32.mrb[0].mxu0
        %v3620 = vadd.f32 %v3507, %v3619
        %v3621 = vpop.f32.mrb[0].mxu0
        %v3622 = vadd.f32 %v3509, %v3621
        %3623 = vmatprep.mubr.bf16.mxu0 %v2415
        %3624 = vmatmul.mubr.bf16.gmra.mrb[0].mxu0 %v2414
        %v3625 = vpop.f32.mrb[0].mxu0
        %v3626 = vadd.f32 %v3513, %v3625
        %v3627 = vpop.f32.mrb[0].mxu0
        %v3628 = vadd.f32 %v3515, %v3627
        %v3629 = vpop.f32.mrb[0].mxu0
        %v3630 = vadd.f32 %v3517, %v3629
        %v3631 = vpop.f32.mrb[0].mxu0
        %v3632 = vadd.f32 %v3519, %v3631
        %3633 = vmatprep.mubr.bf16.mxu0 %v2419
        %3634 = vmatmul.mubr.bf16.gmra.mrb[0].mxu0 %v2418
        %v3635 = vpop.f32.mrb[0].mxu0
        %v3636 = vadd.f32 %v3523, %v3635
        %v3637 = vpop.f32.mrb[0].mxu0
        %v3638 = vadd.f32 %v3525, %v3637
        %v3639 = vpop.f32.mrb[0].mxu0
        %v3640 = vadd.f32 %v3527, %v3639
        %v3641 = vpop.f32.mrb[0].mxu0
        %v3642 = vadd.f32 %v3529, %v3641
        %3643 = vmatprep.mubr.bf16.mxu0 %v2423
        %3644 = vmatmul.mubr.bf16.gmra.mrb[0].mxu0 %v2422
        %v3645 = vpop.f32.mrb[0].mxu0
        %v3646 = vadd.f32 %v3533, %v3645
        %v3647 = vpop.f32.mrb[0].mxu0
        %v3648 = vadd.f32 %v3535, %v3647
        %v3649 = vpop.f32.mrb[0].mxu0
        %v3650 = vadd.f32 %v3537, %v3649
        %v3651 = vpop.f32.mrb[0].mxu0
        %v3652 = vadd.f32 %v3539, %v3651
        %3653 = vmatprep.mubr.bf16.mxu0 %v2427
        %3654 = vmatmul.mubr.bf16.gmra.mrb[0].mxu0 %v2426
        %v3655 = vpop.f32.mrb[0].mxu0
        %v3656 = vadd.f32 %v3543, %v3655
        %v3657 = vpop.f32.mrb[0].mxu0
        %v3658 = vadd.f32 %v3545, %v3657
        %v3659 = vpop.f32.mrb[0].mxu0
        %v3660 = vadd.f32 %v3547, %v3659
        %v3661 = vpop.f32.mrb[0].mxu0
        %v3662 = vadd.f32 %v3549, %v3661
        %3663 = vmatprep.mubr.bf16.mxu0 %v2431
        %3664 = vmatmul.mubr.bf16.gmra.mrb[0].mxu0 %v2430
        %v3665 = vpop.f32.mrb[0].mxu0
        %v3666 = vadd.f32 %v3553, %v3665
        %v3667 = vpop.f32.mrb[0].mxu0
        %v3668 = vadd.f32 %v3555, %v3667
        %v3669 = vpop.f32.mrb[0].mxu0
        %v3670 = vadd.f32 %v3557, %v3669
        %v3671 = vpop.f32.mrb[0].mxu0
        %v3672 = vadd.f32 %v3559, %v3671
        %3673 = vdwg.mxu0
        %vm3674 = vcmp.ge.f32.partialorder %v3370, 0.0
        %vm3675 = vcmp.ge.f32.partialorder %v3372, 0.0
        %vm3676 = vcmp.ge.f32.partialorder %v3596, 0.0
        %vm3677 = vcmp.ge.f32.partialorder %v3598, 0.0
        %vm3678 = vcmp.ge.f32.partialorder %v3374, 0.0
        %vm3679 = vcmp.ge.f32.partialorder %v3376, 0.0
        %vm3680 = vcmp.ge.f32.partialorder %v3600, 0.0
        %vm3681 = vcmp.ge.f32.partialorder %v3602, 0.0
        %vm3682 = vcmp.ge.f32.partialorder %v3380, 0.0
        %vm3683 = vcmp.ge.f32.partialorder %v3382, 0.0
        %vm3684 = vcmp.ge.f32.partialorder %v3606, 0.0
        %vm3685 = vcmp.ge.f32.partialorder %v3608, 0.0
        %vm3686 = vcmp.ge.f32.partialorder %v3384, 0.0
        %vm3687 = vcmp.ge.f32.partialorder %v3386, 0.0
        %vm3688 = vcmp.ge.f32.partialorder %v3610, 0.0
        %vm3689 = vcmp.ge.f32.partialorder %v3612, 0.0
        %vm3690 = vcmp.ge.f32.partialorder %v3390, 0.0
        %vm3691 = vcmp.ge.f32.partialorder %v3392, 0.0
        %vm3692 = vcmp.ge.f32.partialorder %v3616, 0.0
        %vm3693 = vcmp.ge.f32.partialorder %v3618, 0.0
        %vm3694 = vcmp.ge.f32.partialorder %v3394, 0.0
        %vm3695 = vcmp.ge.f32.partialorder %v3396, 0.0
        %vm3696 = vcmp.ge.f32.partialorder %v3620, 0.0
        %vm3697 = vcmp.ge.f32.partialorder %v3622, 0.0
        %vm3698 = vcmp.ge.f32.partialorder %v3400, 0.0
        %vm3699 = vcmp.ge.f32.partialorder %v3402, 0.0
        %vm3700 = vcmp.ge.f32.partialorder %v3626, 0.0
        %vm3701 = vcmp.ge.f32.partialorder %v3628, 0.0
        %vm3702 = vcmp.ge.f32.partialorder %v3404, 0.0
        %vm3703 = vcmp.ge.f32.partialorder %v3406, 0.0
        %vm3704 = vcmp.ge.f32.partialorder %v3630, 0.0
        %vm3705 = vcmp.ge.f32.partialorder %v3632, 0.0
        %vm3706 = vcmp.ge.f32.partialorder %v3410, 0.0
        %vm3707 = vcmp.ge.f32.partialorder %v3412, 0.0
        %vm3708 = vcmp.ge.f32.partialorder %v3636, 0.0
        %vm3709 = vcmp.ge.f32.partialorder %v3638, 0.0
        %vm3710 = vcmp.ge.f32.partialorder %v3414, 0.0
        %vm3711 = vcmp.ge.f32.partialorder %v3416, 0.0
        %vm3712 = vcmp.ge.f32.partialorder %v3640, 0.0
        %vm3713 = vcmp.ge.f32.partialorder %v3642, 0.0
        %vm3714 = vcmp.ge.f32.partialorder %v3420, 0.0
        %vm3715 = vcmp.ge.f32.partialorder %v3422, 0.0
        %vm3716 = vcmp.ge.f32.partialorder %v3646, 0.0
        %vm3717 = vcmp.ge.f32.partialorder %v3648, 0.0
        %vm3718 = vcmp.ge.f32.partialorder %v3424, 0.0
        %vm3719 = vcmp.ge.f32.partialorder %v3426, 0.0
        %vm3720 = vcmp.ge.f32.partialorder %v3650, 0.0
        %vm3721 = vcmp.ge.f32.partialorder %v3652, 0.0
        %vm3722 = vcmp.ge.f32.partialorder %v3430, 0.0
        %vm3723 = vcmp.ge.f32.partialorder %v3432, 0.0
        %vm3724 = vcmp.ge.f32.partialorder %v3656, 0.0
        %vm3725 = vcmp.ge.f32.partialorder %v3658, 0.0
        %vm3726 = vcmp.ge.f32.partialorder %v3434, 0.0
        %vm3727 = vcmp.ge.f32.partialorder %v3436, 0.0
        %vm3728 = vcmp.ge.f32.partialorder %v3660, 0.0
        %vm3729 = vcmp.ge.f32.partialorder %v3662, 0.0
        %vm3730 = vcmp.ge.f32.partialorder %v3440, 0.0
        %vm3731 = vcmp.ge.f32.partialorder %v3442, 0.0
        %vm3732 = vcmp.ge.f32.partialorder %v3666, 0.0
        %vm3733 = vcmp.ge.f32.partialorder %v3668, 0.0
        %vm3734 = vcmp.ge.f32.partialorder %v3444, 0.0
        %vm3735 = vcmp.ge.f32.partialorder %v3446, 0.0
        %vm3736 = vcmp.ge.f32.partialorder %v3670, 0.0
        %vm3737 = vcmp.ge.f32.partialorder %v3672, 0.0
        %v3738 = vmul.f32 %v3370, 0.2
        %v3739 = vmul.f32 %v3372, 0.2
        %v3740 = vmul.f32 %v3596, 0.2
        %v3741 = vmul.f32 %v3598, 0.2
        %v3742 = vmul.f32 %v3374, 0.2
        %v3743 = vmul.f32 %v3376, 0.2
        %v3744 = vmul.f32 %v3600, 0.2
        %v3745 = vmul.f32 %v3602, 0.2
        %v3746 = vmul.f32 %v3380, 0.2
        %v3747 = vmul.f32 %v3382, 0.2
        %v3748 = vmul.f32 %v3606, 0.2
        %v3749 = vmul.f32 %v3608, 0.2
        %v3750 = vmul.f32 %v3384, 0.2
        %v3751 = vmul.f32 %v3386, 0.2
        %v3752 = vmul.f32 %v3610, 0.2
        %v3753 = vmul.f32 %v3612, 0.2
        %v3754 = vmul.f32 %v3390, 0.2
        %v3755 = vmul.f32 %v3392, 0.2
        %v3756 = vmul.f32 %v3616, 0.2
        %v3757 = vmul.f32 %v3618, 0.2
        %v3758 = vmul.f32 %v3394, 0.2
        %v3759 = vmul.f32 %v3396, 0.2
        %v3760 = vmul.f32 %v3620, 0.2
        %v3761 = vmul.f32 %v3622, 0.2
        %v3762 = vmul.f32 %v3400, 0.2
        %v3763 = vmul.f32 %v3402, 0.2
        %v3764 = vmul.f32 %v3626, 0.2
        %v3765 = vmul.f32 %v3628, 0.2
        %v3766 = vmul.f32 %v3404, 0.2
        %v3767 = vmul.f32 %v3406, 0.2
        %v3768 = vmul.f32 %v3630, 0.2
        %v3769 = vmul.f32 %v3632, 0.2
        %v3770 = vmul.f32 %v3410, 0.2
        %v3771 = vmul.f32 %v3412, 0.2
        %v3772 = vmul.f32 %v3636, 0.2
        %v3773 = vmul.f32 %v3638, 0.2
        %v3774 = vmul.f32 %v3414, 0.2
        %v3775 = vmul.f32 %v3416, 0.2
        %v3776 = vmul.f32 %v3640, 0.2
        %v3777 = vmul.f32 %v3642, 0.2
        %v3778 = vmul.f32 %v3420, 0.2
        %v3779 = vmul.f32 %v3422, 0.2
        %v3780 = vmul.f32 %v3646, 0.2
        %v3781 = vmul.f32 %v3648, 0.2
        %v3782 = vmul.f32 %v3424, 0.2
        %v3783 = vmul.f32 %v3426, 0.2
        %v3784 = vmul.f32 %v3650, 0.2
        %v3785 = vmul.f32 %v3652, 0.2
        %v3786 = vmul.f32 %v3430, 0.2
        %v3787 = vmul.f32 %v3432, 0.2
        %v3788 = vmul.f32 %v3656, 0.2
        %v3789 = vmul.f32 %v3658, 0.2
        %v3790 = vmul.f32 %v3434, 0.2
        %v3791 = vmul.f32 %v3436, 0.2
        %v3792 = vmul.f32 %v3660, 0.2
        %v3793 = vmul.f32 %v3662, 0.2
        %v3794 = vmul.f32 %v3440, 0.2
        %v3795 = vmul.f32 %v3442, 0.2
        %v3796 = vmul.f32 %v3666, 0.2
        %v3797 = vmul.f32 %v3668, 0.2
        %v3798 = vmul.f32 %v3444, 0.2
        %v3799 = vmul.f32 %v3446, 0.2
        %v3800 = vmul.f32 %v3670, 0.2
        %v3801 = vmul.f32 %v3672, 0.2
        %v3802 = vsel %vm3674, %v3370, %v3738
        %v3803 = vsel %vm3675, %v3372, %v3739
        %v3804 = vsel %vm3676, %v3596, %v3740
        %v3805 = vsel %vm3677, %v3598, %v3741
        %v3806 = vsel %vm3678, %v3374, %v3742
        %v3807 = vsel %vm3679, %v3376, %v3743
        %v3808 = vsel %vm3680, %v3600, %v3744
        %v3809 = vsel %vm3681, %v3602, %v3745
        %v3810 = vsel %vm3682, %v3380, %v3746
        %v3811 = vsel %vm3683, %v3382, %v3747
        %v3812 = vsel %vm3684, %v3606, %v3748
        %v3813 = vsel %vm3685, %v3608, %v3749
        %v3814 = vsel %vm3686, %v3384, %v3750
        %v3815 = vsel %vm3687, %v3386, %v3751
        %v3816 = vsel %vm3688, %v3610, %v3752
        %v3817 = vsel %vm3689, %v3612, %v3753
        %v3818 = vsel %vm3690, %v3390, %v3754
        %v3819 = vsel %vm3691, %v3392, %v3755
        %v3820 = vsel %vm3692, %v3616, %v3756
        %v3821 = vsel %vm3693, %v3618, %v3757
        %v3822 = vsel %vm3694, %v3394, %v3758
        %v3823 = vsel %vm3695, %v3396, %v3759
        %v3824 = vsel %vm3696, %v3620, %v3760
        %v3825 = vsel %vm3697, %v3622, %v3761
        %v3826 = vsel %vm3698, %v3400, %v3762
        %v3827 = vsel %vm3699, %v3402, %v3763
        %v3828 = vsel %vm3700, %v3626, %v3764
        %v3829 = vsel %vm3701, %v3628, %v3765
        %v3830 = vsel %vm3702, %v3404, %v3766
        %v3831 = vsel %vm3703, %v3406, %v3767
        %v3832 = vsel %vm3704, %v3630, %v3768
        %v3833 = vsel %vm3705, %v3632, %v3769
        %v3834 = vsel %vm3706, %v3410, %v3770
        %v3835 = vsel %vm3707, %v3412, %v3771
        %v3836 = vsel %vm3708, %v3636, %v3772
        %v3837 = vsel %vm3709, %v3638, %v3773
        %v3838 = vsel %vm3710, %v3414, %v3774
        %v3839 = vsel %vm3711, %v3416, %v3775
        %v3840 = vsel %vm3712, %v3640, %v3776
        %v3841 = vsel %vm3713, %v3642, %v3777
        %v3842 = vsel %vm3714, %v3420, %v3778
        %v3843 = vsel %vm3715, %v3422, %v3779
        %v3844 = vsel %vm3716, %v3646, %v3780
        %v3845 = vsel %vm3717, %v3648, %v3781
        %v3846 = vsel %vm3718, %v3424, %v3782
        %v3847 = vsel %vm3719, %v3426, %v3783
        %v3848 = vsel %vm3720, %v3650, %v3784
        %v3849 = vsel %vm3721, %v3652, %v3785
        %v3850 = vsel %vm3722, %v3430, %v3786
        %v3851 = vsel %vm3723, %v3432, %v3787
        %v3852 = vsel %vm3724, %v3656, %v3788
        %v3853 = vsel %vm3725, %v3658, %v3789
        %v3854 = vsel %vm3726, %v3434, %v3790
        %v3855 = vsel %vm3727, %v3436, %v3791
        %v3856 = vsel %vm3728, %v3660, %v3792
        %v3857 = vsel %vm3729, %v3662, %v3793
        %v3858 = vsel %vm3730, %v3440, %v3794
        %v3859 = vsel %vm3731, %v3442, %v3795
        %v3860 = vsel %vm3732, %v3666, %v3796
        %v3861 = vsel %vm3733, %v3668, %v3797
        %v3862 = vsel %vm3734, %v3444, %v3798
        %v3863 = vsel %vm3735, %v3446, %v3799
        %v3864 = vsel %vm3736, %v3670, %v3800
        %v3865 = vsel %vm3737, %v3672, %v3801
        %v3866 = vpack.c.bf16 %v3806, %v3802
        %v3867 = vpack.c.bf16 %v3807, %v3803
        %v3868 = vpack.c.bf16 %v3808, %v3804
        %v3869 = vpack.c.bf16 %v3809, %v3805
        %v3870 = vpack.c.bf16 %v3814, %v3810
        %v3871 = vpack.c.bf16 %v3815, %v3811
        %v3872 = vpack.c.bf16 %v3816, %v3812
        %v3873 = vpack.c.bf16 %v3817, %v3813
        %v3874 = vpack.c.bf16 %v3822, %v3818
        %v3875 = vpack.c.bf16 %v3823, %v3819
        %v3876 = vpack.c.bf16 %v3824, %v3820
        %v3877 = vpack.c.bf16 %v3825, %v3821
        %v3878 = vpack.c.bf16 %v3830, %v3826
        %v3879 = vpack.c.bf16 %v3831, %v3827
        %v3880 = vpack.c.bf16 %v3832, %v3828
        %v3881 = vpack.c.bf16 %v3833, %v3829
        %v3882 = vpack.c.bf16 %v3838, %v3834
        %v3883 = vpack.c.bf16 %v3839, %v3835
        %v3884 = vpack.c.bf16 %v3840, %v3836
        %v3885 = vpack.c.bf16 %v3841, %v3837
        %v3886 = vpack.c.bf16 %v3846, %v3842
        %v3887 = vpack.c.bf16 %v3847, %v3843
        %v3888 = vpack.c.bf16 %v3848, %v3844
        %v3889 = vpack.c.bf16 %v3849, %v3845
        %v3890 = vpack.c.bf16 %v3854, %v3850
        %v3891 = vpack.c.bf16 %v3855, %v3851
        %v3892 = vpack.c.bf16 %v3856, %v3852
        %v3893 = vpack.c.bf16 %v3857, %v3853
        %v3894 = vpack.c.bf16 %v3862, %v3858
        %v3895 = vpack.c.bf16 %v3863, %v3859
        %v3896 = vpack.c.bf16 %v3864, %v3860
        %v3897 = vpack.c.bf16 %v3865, %v3861
        %v3898 = vld [vmem:[%s7] sm:$0xff]
        %v3899 = vld [vmem:[%s7 + $0x8] sm:$0xff]
        %v3902 = vunpack.c.l.b16 %v3898
        %v3903 = vunpack.c.h.b16 %v3898
        %v3904 = vunpack.c.l.b16 %v3899
        %v3905 = vunpack.c.h.b16 %v3899
        %v3906 = vpack.c.b16 %v3902, %v3902
        %v3907 = vpack.c.b16 %v3903, %v3903
        %v3908 = vpack.c.b16 %v3904, %v3904
        %v3909 = vpack.c.b16 %v3905, %v3905
        %3914 = vmatprep.subr.bf16.mxu0 %v3867
        %3915 = vmatpush1.bf16.xpose.msra.mxu0 %v3866
        %3916 = vmatprep.subr.bf16.mxu0 %v3871
        %3917 = vmatpush1.bf16.xpose.msra.mxu0 %v3870
        %3918 = vmatprep.subr.bf16.mxu0 %v3875
        %3919 = vmatpush1.bf16.xpose.msra.mxu0 %v3874
        %3920 = vmatprep.subr.bf16.mxu0 %v3879
        %3921 = vmatpush1.bf16.xpose.msra.mxu0 %v3878
        %3922 = vmatprep.subr.bf16.mxu0 %v3883
        %3923 = vmatpush1.bf16.xpose.msra.mxu0 %v3882
        %3924 = vmatprep.subr.bf16.mxu0 %v3887
        %3925 = vmatpush1.bf16.xpose.msra.mxu0 %v3886
        %3926 = vmatprep.subr.bf16.mxu0 %v3891
        %3927 = vmatpush1.bf16.xpose.msra.mxu0 %v3890
        %3928 = vmatprep.subr.bf16.mxu0 %v3895
        %3929 = vmatpush1.bf16.xpose.msra.mxu0 %v3894
        %3930 = vmatprep.subr.bf16.mxu0 0
        %3931 = vmatpush1.bf16.xpose.msra.mxu0 0
        %3932 = vmatprep.subr.bf16.mxu0 0
        %3933 = vmatpush1.bf16.xpose.msra.mxu0 0
        %3934 = vmatprep.subr.bf16.mxu0 0
        %3935 = vmatpush1.bf16.xpose.msra.mxu0 0
        %3936 = vmatprep.subr.bf16.mxu0 0
        %3937 = vmatpush1.bf16.xpose.msra.mxu0 0
        %3938 = vmatprep.subr.bf16.mxu0 0
        %3939 = vmatpush1.bf16.xpose.msra.mxu0 0
        %3940 = vmatprep.subr.bf16.mxu0 0
        %3941 = vmatpush1.bf16.xpose.msra.mxu0 0
        %3942 = vmatprep.subr.bf16.mxu0 0
        %3943 = vmatpush1.bf16.xpose.msra.mxu0 0
        %3944 = vmatprep.subr.bf16.mxu0 0
        %3945 = vmatpush1.bf16.xpose.msra.mxu0 0
        %3946 = vmatprep.mubr.bf16.mxu0 %v3907
        %3947 = vmatmul.mubr.bf16.gmra.mrb[0].mxu0 %v3906
        %v3948 = vpop.f32.mrb[0].mxu0
        %v3949 = vadd.f32 0.0, %v3948
        %v3950 = vpop.f32.mrb[0].mxu0
        %v3951 = vpop.f32.mrb[0].mxu0
        %v3952 = vpop.f32.mrb[0].mxu0
        %3953 = vdwg.mxu0
        %3954 = vmatprep.subr.bf16.mxu0 %v3869
        %3955 = vmatpush1.bf16.xpose.msra.mxu0 %v3868
        %3956 = vmatprep.subr.bf16.mxu0 %v3873
        %3957 = vmatpush1.bf16.xpose.msra.mxu0 %v3872
        %3958 = vmatprep.subr.bf16.mxu0 %v3877
        %3959 = vmatpush1.bf16.xpose.msra.mxu0 %v3876
        %3960 = vmatprep.subr.bf16.mxu0 %v3881
        %3961 = vmatpush1.bf16.xpose.msra.mxu0 %v3880
        %3962 = vmatprep.subr.bf16.mxu0 %v3885
        %3963 = vmatpush1.bf16.xpose.msra.mxu0 %v3884
        %3964 = vmatprep.subr.bf16.mxu0 %v3889
        %3965 = vmatpush1.bf16.xpose.msra.mxu0 %v3888
        %3966 = vmatprep.subr.bf16.mxu0 %v3893
        %3967 = vmatpush1.bf16.xpose.msra.mxu0 %v3892
        %3968 = vmatprep.subr.bf16.mxu0 %v3897
        %3969 = vmatpush1.bf16.xpose.msra.mxu0 %v3896
        %3970 = vmatprep.subr.bf16.mxu0 0
        %3971 = vmatpush1.bf16.xpose.msra.mxu0 0
        %3972 = vmatprep.subr.bf16.mxu0 0
        %3973 = vmatpush1.bf16.xpose.msra.mxu0 0
        %3974 = vmatprep.subr.bf16.mxu0 0
        %3975 = vmatpush1.bf16.xpose.msra.mxu0 0
        %3976 = vmatprep.subr.bf16.mxu0 0
        %3977 = vmatpush1.bf16.xpose.msra.mxu0 0
        %3978 = vmatprep.subr.bf16.mxu0 0
        %3979 = vmatpush1.bf16.xpose.msra.mxu0 0
        %3980 = vmatprep.subr.bf16.mxu0 0
        %3981 = vmatpush1.bf16.xpose.msra.mxu0 0
        %3982 = vmatprep.subr.bf16.mxu0 0
        %3983 = vmatpush1.bf16.xpose.msra.mxu0 0
        %3984 = vmatprep.subr.bf16.mxu0 0
        %3985 = vmatpush1.bf16.xpose.msra.mxu0 0
        %3986 = vmatprep.mubr.bf16.mxu0 %v3909
        %3987 = vmatmul.mubr.bf16.gmra.mrb[0].mxu0 %v3908
        %v3988 = vpop.f32.mrb[0].mxu0
        %v3989 = vadd.f32 %v3949, %v3988
        %v3990 = vpop.f32.mrb[0].mxu0
        %v3991 = vpop.f32.mrb[0].mxu0
        %v3992 = vpop.f32.mrb[0].mxu0
        %3993 = vdwg.mxu0
        %v3994 = vstv %s364
        %v3995 = vadd.f32 %v3989, %v3994
        %3996 = vst [vmem:[%s356] sm:$0x1] %v3995
        %s3997 = sand.u32 %s228, 1
        %s3998 = scalar_lea.sflag [#allocation5], %s3997
        %s3999 = sand.u32 %s228, 1
        %s4000 = scalar_lea.vmem [#allocation8], %s3999
        // Predicated region
        $region65: #{tpu_custom_call.1} parent=55 // pred_check
          %p4001 = pneg %p238
        $region66: #{tpu_custom_call.1} parent=55 // pred_check_branch
          %4003 = sbr.rel (%p4001) target = $region68
        $region67: #{tpu_custom_call.1} parent=55 // pred_region
          %s4005 = ssub.s32 16, 16
          %4006 = vsyncadd %s3998, %s4005
          %s4007 = smul.addr %s26, 16
          %s4008 = scalar_lea.hbm %s9, %s4007
          %s4010 = sshll.u32 %s4000, 4
          %s4011 = int_to_ptr.vmem [resolvable:$true] %s4010
          %4013 = dma.vmem_to_hbm [thread:$0]  %s4011, 16, %s4008, %s3998
        $region68: #{tpu_custom_call.1} parent=55 // pred_fallthru
          _
      $region56: #{tpu_custom_call.1} parent=5 // pred_fallthru
        _
      %p4014 = scmp.le.s32.totalorder 2, %s21
      // Predicated region
      $region69: #{tpu_custom_call.1} parent=5 // pred_check
        %p4015 = pneg %p4014
      $region70: #{tpu_custom_call.1} parent=5 // pred_check_branch
        %4017 = sbr.rel (%p4015) target = $region72
      $region71: #{tpu_custom_call.1} parent=5 // pred_region
        %s4018 = ssub.s32 %s21, 2
        // Predicated region
        $region73: #{tpu_custom_call.1} parent=71 // pred_check
          %p4019 = pneg %p244
        $region74: #{tpu_custom_call.1} parent=71 // pred_check_branch
          %4021 = sbr.rel (%p4019) target = $region76
        $region75: #{tpu_custom_call.1} parent=71 // pred_region
          %s4022 = sand.u32 %s229, 1
          %s4023 = scalar_lea.sflag [#allocation5], %s4022
          %s4024 = sand.u32 %s229, 1
          %s4025 = scalar_lea.vmem [#allocation8], %s4024
          %4026 = dma.done %s4023, 16
        $region76: #{tpu_custom_call.1} parent=71 // pred_fallthru
          _
      $region72: #{tpu_custom_call.1} parent=5 // pred_fallthru
        _
    $region6: #{tpu_custom_call.1} parent=1 // loop_footer
      %s25 = sadd.s32 1, %s21
    $region7: #{tpu_custom_call.1} parent=1 // loop_footer_branch
      %20 = sbr.rel target = $region3
    $region8: #{tpu_custom_call.1} parent=1 // loop_exit
      _
    %4027 = vsyncpa [#allocation4], 1
    %s4028 = scalar_lea.sflag [#allocation4], 1
    %4029 = vsyncpa %s4028, 1
    %4030 = vsyncpa [#allocation7], 1
    %4031 = vsyncpa [#allocation5], 1
    %s4032 = scalar_lea.sflag [#allocation5], 1
    %4033 = vsyncpa %s4032, 1

</llo_original>
